<compile_context>
chip_gen: v7x
topology: tpu7x:2x2x1
jax: 0.10.0
libtpu: 0.0.40
codegen_flags: <defaults>
</compile_context>

<pallas_src>
import jax
import jax.numpy as jnp
import numpy as np
from jax.experimental import pallas as pl
from jax.experimental.pallas import tpu as pltpu


# --------------------------------------------------------------------------
# Kernel 1: conv (3 accumulating MXU dots over the depth taps, per plane)
#           + per-step per-channel batch-stat partial sums.
# One grid step (n, dc) produces D_CHUNK output planes, each laid out as
# (C_out, H*W) -> lane-dense, already NCDHW-flat, stored in bf16.
# --------------------------------------------------------------------------
def make_conv_stats_kernel(d_chunk, hw):
    def kernel(x_ref, w_ref, y_ref, psum_ref, pssq_ref):
        # x_ref : (D+2, 9*C_in, H*W)    bf16  -- whole padded-depth slab of batch n
        # w_ref : (3, C_out, 9*C_in)    bf16  -- constant across the grid (single DMA)
        # y_ref : (C_out, D_CHUNK*H*W)  bf16  -- lane-dense NCDHW-flat output chunk
        # psum_ref / pssq_ref : (C_out, 1) f32
        d0 = pl.program_id(1) * d_chunk
        w0 = w_ref[0]
        w1 = w_ref[1]
        w2 = w_ref[2]
        s = jnp.zeros(psum_ref.shape, jnp.float32)
        q = jnp.zeros(pssq_ref.shape, jnp.float32)
        # Short static loop over the depth chunk; the only dynamic index is on
        # the leading (untiled) depth axis of the slab.
        for ld in range(d_chunk):
            d = d0 + ld
            acc = jnp.dot(w0, x_ref[d], preferred_element_type=jnp.float32)
            acc += jnp.dot(w1, x_ref[d + 1], preferred_element_type=jnp.float32)
            acc += jnp.dot(w2, x_ref[d + 2], preferred_element_type=jnp.float32)
            # TODO(synk): on v5e (and small-C_in blocks generally) fold kd into the
            # contraction (one K=27*C_in dot) to fill the 128-deep MXU and drop
            # two MRF pops + two VALU accumulate adds per plane.
            y_ref[:, ld * hw:(ld + 1) * hw] = acc.astype(y_ref.dtype)
            # stats come from the f32 accumulator (before the bf16 down-cast)
            s = s + jnp.sum(acc, axis=1, keepdims=True)
            q = q + jnp.sum(acc * acc, axis=1, keepdims=True)
        psum_ref[...] = s      # one small store per grid step (not per plane)
        pssq_ref[...] = q
    return kernel


# --------------------------------------------------------------------------
# Kernel 2: fused BatchNorm (precomputed per-channel scale/shift, packed into
# one (C_out, 2) operand) + ReLU.  bf16 in / bf16 out, in place over y.
# --------------------------------------------------------------------------
def bn_relu_kernel(y_ref, p_ref, o_ref):
    p = p_ref[...]                                   # (C_out, 2) f32: [scale, shift]
    y = y_ref[...].astype(jnp.float32)               # BN/ReLU math stays f32
    o_ref[...] = jnp.maximum(y * p[:, 0:1] + p[:, 1:2], 0.0).astype(o_ref.dtype)


def conv3d_block(x, w, b, gamma, beta, eps=1e-5,
                 matmul_dtype=jnp.bfloat16, out_dtype=jnp.bfloat16):
    """x: (N, C_in, D, H, W).  w: (C_out, C_in, 3, 3, 3).  Returns NCDHW, bf16."""
    N, C_in, D, H, W = x.shape
    C_out = w.shape[0]
    HW = H * W
    K9 = 9 * C_in
    S = D * HW
    assert HW % 128 == 0, "H*W must be a multiple of 128 (lane-dense blocks)"
    assert C_out % 8 == 0, "C_out must be a multiple of 8 (sublane-aligned blocks)"
    # TODO(synk): relax the HW%128 requirement (tile the flattened D*H*W axis with
    # halo handling) so the deeper, smaller UNTER3D levels are covered too.

    del b  # bias before training-mode BatchNorm is a mathematical no-op

    # Depth chunking: keep >= 2 chunks (feeds both v7x TensorCores even when
    # N == 1) and a bounded per-step output block.
    D_CHUNK = D
    while D_CHUNK % 2 == 0 and (
            D // D_CHUNK < 2 or C_out * D_CHUNK * HW * 2 > 4 * 2**20):
        D_CHUNK //= 2
    DC = D // D_CHUNK

    # ---- glue: pad -> depth-major transpose -> 9 (kh,kw)-shifted views stacked
    #      on the contraction axis (9x of the input, not 27x im2col).
    xpad = jnp.pad(x, ((0, 0), (0, 0), (1, 1), (1, 1), (1, 1)))
    xpad = jnp.transpose(xpad, (0, 2, 1, 3, 4))                  # (N, D+2, C_in, H+2, W+2)
    shifted = [xpad[:, :, :, kh:kh + H, kw:kw + W]
               for kh in range(3) for kw in range(3)]            # 9 x (N, D+2, C_in, H, W)
    xcol = jnp.stack(shifted, axis=2)                            # (N, D+2, 9, C_in, H, W)
    xcol = xcol.reshape(N, D + 2, K9, HW).astype(matmul_dtype)   # (N, D+2, 9*C_in, H*W)
    # TODO(synk): build the 9 (kh,kw) shifts in VMEM with pltpu.roll (+/-1, +/-W on
    # the lane axis + row-boundary masks) to drop the 9x xcol HBM round trip.

    # weights: (C_out, C_in, kd, kh, kw) -> (3, C_out, 9*C_in); K order = (kh, kw, ci)
    # matching xcol's contraction-axis layout.
    wmat = jnp.transpose(w, (2, 0, 3, 4, 1)).reshape(3, C_out, K9).astype(matmul_dtype)

    # Conservative VMEM budget guard (v7x has only 64 MiB physical per TC):
    # slab + weights + y block, all double-buffered.
    est_vmem = 2 * ((D + 2) * K9 * HW + 3 * C_out * K9 + C_out * D_CHUNK * HW) * 2
    assert est_vmem <= 24 * 2**20, (
        "padded-depth slab too large for VMEM; needs depth-windowed x blocks")
    # TODO(synk): depth-windowed (overlapping) x fetch for volumes whose padded
    # slab does not fit VMEM, and pipeline_mode=pl.Buffered(1) on the constant
    # weight spec for very large C_out layers on v7x.

    y, psum, pssq = pl.pallas_call(
        make_conv_stats_kernel(D_CHUNK, HW),
        out_shape=(
            jax.ShapeDtypeStruct((N, C_out, S), jnp.bfloat16),       # conv out, NCDHW-flat
            jax.ShapeDtypeStruct((N * DC, C_out, 1), jnp.float32),   # per-step channel sum
            jax.ShapeDtypeStruct((N * DC, C_out, 1), jnp.float32),   # per-step channel sum^2
        ),
        grid_spec=pltpu.PrefetchScalarGridSpec(
            num_scalar_prefetch=0,
            grid=(N, DC),
            in_specs=[
                # Whole padded-depth slab per n; dc-invariant index map so Pallas
                # skips the re-DMA across depth chunks (no 3x halo re-read).
                pl.BlockSpec((None, D + 2, K9, HW), lambda n, dc: (n, 0, 0, 0)),
                # Constant weight: index never changes -> fetched once.
                pl.BlockSpec((3, C_out, K9), lambda n, dc: (0, 0, 0)),
            ],
            out_specs=(
                pl.BlockSpec((None, C_out, D_CHUNK * HW), lambda n, dc: (n, 0, dc)),
                pl.BlockSpec((None, C_out, 1), lambda n, dc, DC=DC: (n * DC + dc, 0, 0)),
                pl.BlockSpec((None, C_out, 1), lambda n, dc, DC=DC: (n * DC + dc, 0, 0)),
            ),
        ),
        compiler_params=pltpu.CompilerParams(
            dimension_semantics=("parallel", "parallel"),
            vmem_limit_bytes=32 * 1024 * 1024,   # raised above v5e's 16 MiB default;
                                                 # actual usage asserted <= 24 MiB (v7x-safe)
        ),
    )(xcol, wmat)

    # ---- glue: fold batch stats (from the f32 accumulator) into per-channel
    #      scale/shift.  Training-mode BatchNorm3d: biased variance, eps=1e-5.
    M = N * D * HW
    total = jnp.sum(psum[:, :, 0], axis=0)                       # (C_out,)
    total_sq = jnp.sum(pssq[:, :, 0], axis=0)                    # (C_out,)
    mean = total / M
    var = jnp.maximum(total_sq / M - mean * mean, 0.0)           # clamp f32 cancellation
    scale = gamma.astype(jnp.float32) * jax.lax.rsqrt(var + eps)
    shift = beta.astype(jnp.float32) - mean * scale
    params = jnp.stack([scale, shift], axis=1)                   # (C_out, 2) packed

    # ---- kernel 2: fused BN + ReLU on large lane-dense tiles, in place over y.
    cand = [t for t in range(128, S + 1, 128)
            if S % t == 0 and 4 * C_out * t * 2 <= 12 * 2**20]   # 2x(in+out) bf16 blocks
    cand2 = [t for t in cand if N * (S // t) >= 2]               # >=2 blocks for v7x 2 TCs
    TS = max(cand2 if cand2 else cand)

    alias = {0: 0} if jnp.dtype(out_dtype) == y.dtype else {}
    out = pl.pallas_call(
        bn_relu_kernel,
        out_shape=jax.ShapeDtypeStruct((N, C_out, S), out_dtype),
        grid_spec=pltpu.PrefetchScalarGridSpec(
            num_scalar_prefetch=0,
            grid=(N, S // TS),
            in_specs=[
                pl.BlockSpec((None, C_out, TS), lambda n, s: (n, 0, s)),
                pl.BlockSpec((C_out, 2), lambda n, s: (0, 0)),
            ],
            out_specs=pl.BlockSpec((None, C_out, TS), lambda n, s: (n, 0, s)),
        ),
        compiler_params=pltpu.CompilerParams(
            dimension_semantics=("parallel", "parallel"),
            vmem_limit_bytes=32 * 1024 * 1024,
        ),
        input_output_aliases=alias,                              # write BN+ReLU over y
    )(y, params)

    return out.reshape(N, C_out, D, H, W)        # free reshape, no transpose pass


def reference(x, w, b, gamma, beta, eps=1e-5):
    """Pure-JAX reference: Conv3d(pad=1) -> BatchNorm3d(training) -> ReLU (f32)."""
    y = jax.lax.conv_general_dilated(
        x, w, window_strides=(1, 1, 1), padding=((1, 1), (1, 1), (1, 1)),
        dimension_numbers=("NCDHW", "OIDHW", "NCDHW"))
    y = y + b.reshape(1, -1, 1, 1, 1)
    mean = jnp.mean(y, axis=(0, 2, 3, 4), keepdims=True)
    var = jnp.mean((y - mean) ** 2, axis=(0, 2, 3, 4), keepdims=True)
    y = (y - mean) / jnp.sqrt(var + eps)
    y = y * gamma.reshape(1, -1, 1, 1, 1) + beta.reshape(1, -1, 1, 1, 1)
    return jnp.maximum(y, 0.0)


if __name__ == "__main__":
    N, D, H, W = 2, 16, 16, 16
    key = jax.random.PRNGKey(0)
    k1, k2, k3, k4, k5 = jax.random.split(key, 5)

    block = jax.jit(conv3d_block)
    # bf16-round inputs for the reference so it sees the same operand rounding
    rd = lambda a: a.astype(jnp.bfloat16).astype(jnp.float32)
    f32 = lambda a: np.asarray(a.astype(jnp.float32))

    # --- enc1-style block of UNTER3D: Conv3DBlock(in_channels=4, base_filters=32) ---
    C_in1, C_out1 = 4, 32
    x = jax.random.normal(k1, (N, C_in1, D, H, W), dtype=jnp.float32)
    w1 = jax.random.normal(k2, (C_out1, C_in1, 3, 3, 3), dtype=jnp.float32) / np.sqrt(C_in1 * 27)
    b1 = 0.1 * jax.random.normal(k3, (C_out1,), dtype=jnp.float32)
    g1 = jnp.ones((C_out1,), jnp.float32)
    be1 = jnp.zeros((C_out1,), jnp.float32)

    out1 = jax.block_until_ready(block(x, w1, b1, g1, be1))
    ref1 = reference(rd(x), rd(w1), b1, g1, be1)
    # bf16 intermediates (y and the block output) -> compare at bf16 granularity
    np.testing.assert_allclose(f32(out1), np.asarray(ref1), rtol=2e-2, atol=4e-2)

    # --- enc2-style block: Conv3DBlock(32, 64) chained on the first block's output ---
    C_in2, C_out2 = C_out1, 64
    w2 = jax.random.normal(k4, (C_out2, C_in2, 3, 3, 3), dtype=jnp.float32) / np.sqrt(C_in2 * 27)
    b2 = 0.1 * jax.random.normal(k5, (C_out2,), dtype=jnp.float32)
    g2 = jnp.ones((C_out2,), jnp.float32)
    be2 = jnp.zeros((C_out2,), jnp.float32)

    out2 = jax.block_until_ready(block(out1, w2, b2, g2, be2))
    ref2 = reference(out1.astype(jnp.float32), rd(w2), b2, g2, be2)
    np.testing.assert_allclose(f32(out2), np.asarray(ref2), rtol=2e-2, atol=4e-2)

    print("KERNEL_OK")
</pallas_src>

<mosaic_0001>
module attributes {stable_mosaic.version = 11 : i64} {
  func.func @kernel(%arg0: i32, %arg1: i32, %arg2: memref<1x18x36x256xbf16, #tpu.memory_space<vmem>>, %arg3: memref<3x32x36xbf16, #tpu.memory_space<vmem>>, %arg4: memref<1x32x2048xbf16, #tpu.memory_space<vmem>>, %arg5: memref<1x32x1xf32, #tpu.memory_space<vmem>>, %arg6: memref<1x32x1xf32, #tpu.memory_space<vmem>>) attributes {dimension_semantics = [#tpu.dimension_semantics<parallel>, #tpu.dimension_semantics<parallel>], iteration_bounds = array<i64: 2, 2>, scalar_prefetch = 0 : i64, scratch_operands = 0 : i64, tpu.core_type = #tpu.core_type<tc>, window_params = [{transform_indices = @transform_0, window_bounds = array<i64: 1, 18, 36, 256>}, {pipeline_mode = #tpu.pipeline_mode<synchronous>, transform_indices = @transform_1, window_bounds = array<i64: 3, 32, 36>}, {transform_indices = @transform_2, window_bounds = array<i64: 1, 32, 2048>}, {transform_indices = @transform_3, window_bounds = array<i64: 1, 32, 1>}, {transform_indices = @transform_4, window_bounds = array<i64: 1, 32, 1>}]} {
    %c8_i32 = arith.constant 8 : i32
    %0 = arith.muli %arg1, %c8_i32 : i32
    %c0 = arith.constant 0 : index
    %c0_0 = arith.constant 0 : index
    %c0_1 = arith.constant 0 : index
    %1 = vector.load %arg3[%c0, %c0_0, %c0_1] : memref<3x32x36xbf16, #tpu.memory_space<vmem>>, vector<1x32x36xbf16>
    %2 = vector.shape_cast %1 : vector<1x32x36xbf16> to vector<32x36xbf16>
    %c1 = arith.constant 1 : index
    %c0_2 = arith.constant 0 : index
    %c0_3 = arith.constant 0 : index
    %3 = vector.load %arg3[%c1, %c0_2, %c0_3] : memref<3x32x36xbf16, #tpu.memory_space<vmem>>, vector<1x32x36xbf16>
    %4 = vector.shape_cast %3 : vector<1x32x36xbf16> to vector<32x36xbf16>
    %c2 = arith.constant 2 : index
    %c0_4 = arith.constant 0 : index
    %c0_5 = arith.constant 0 : index
    %5 = vector.load %arg3[%c2, %c0_4, %c0_5] : memref<3x32x36xbf16, #tpu.memory_space<vmem>>, vector<1x32x36xbf16>
    %6 = vector.shape_cast %5 : vector<1x32x36xbf16> to vector<32x36xbf16>
    %cst = arith.constant 0.000000e+00 : f32
    %7 = vector.broadcast %cst : f32 to vector<32x1xf32>
    %cst_6 = arith.constant 0.000000e+00 : f32
    %8 = vector.broadcast %cst_6 : f32 to vector<32x1xf32>
    %c0_i32 = arith.constant 0 : i32
    %9 = arith.addi %0, %c0_i32 : i32
    %c0_7 = arith.constant 0 : index
    %10 = arith.index_cast %9 : i32 to index
    %c0_8 = arith.constant 0 : index
    %c0_9 = arith.constant 0 : index
    %11 = vector.load %arg2[%c0_7, %10, %c0_8, %c0_9] : memref<1x18x36x256xbf16, #tpu.memory_space<vmem>>, vector<1x1x36x256xbf16>
    %12 = vector.shape_cast %11 : vector<1x1x36x256xbf16> to vector<36x256xbf16>
    %cst_10 = arith.constant dense<0.000000e+00> : vector<32x256xf32>
    %13 = tpu.matmul %2, %12, %cst_10 {dimension_numbers = #tpu.dot_dimension_numbers<[1], [0], [0], [1], [0, 0, 1, 1], [], []>} : vector<32x36xbf16>, vector<36x256xbf16>, vector<32x256xf32> -> vector<32x256xf32>
    %c1_i32 = arith.constant 1 : i32
    %14 = arith.addi %9, %c1_i32 : i32
    %c0_11 = arith.constant 0 : index
    %15 = arith.index_cast %14 : i32 to index
    %c0_12 = arith.constant 0 : index
    %c0_13 = arith.constant 0 : index
    %16 = vector.load %arg2[%c0_11, %15, %c0_12, %c0_13] : memref<1x18x36x256xbf16, #tpu.memory_space<vmem>>, vector<1x1x36x256xbf16>
    %17 = vector.shape_cast %16 : vector<1x1x36x256xbf16> to vector<36x256xbf16>
    %cst_14 = arith.constant dense<0.000000e+00> : vector<32x256xf32>
    %18 = tpu.matmul %4, %17, %cst_14 {dimension_numbers = #tpu.dot_dimension_numbers<[1], [0], [0], [1], [0, 0, 1, 1], [], []>} : vector<32x36xbf16>, vector<36x256xbf16>, vector<32x256xf32> -> vector<32x256xf32>
    %19 = arith.addf %13, %18 : vector<32x256xf32>
    %c2_i32 = arith.constant 2 : i32
    %20 = arith.addi %9, %c2_i32 : i32
    %c0_15 = arith.constant 0 : index
    %21 = arith.index_cast %20 : i32 to index
    %c0_16 = arith.constant 0 : index
    %c0_17 = arith.constant 0 : index
    %22 = vector.load %arg2[%c0_15, %21, %c0_16, %c0_17] : memref<1x18x36x256xbf16, #tpu.memory_space<vmem>>, vector<1x1x36x256xbf16>
    %23 = vector.shape_cast %22 : vector<1x1x36x256xbf16> to vector<36x256xbf16>
    %cst_18 = arith.constant dense<0.000000e+00> : vector<32x256xf32>
    %24 = tpu.matmul %6, %23, %cst_18 {dimension_numbers = #tpu.dot_dimension_numbers<[1], [0], [0], [1], [0, 0, 1, 1], [], []>} : vector<32x36xbf16>, vector<36x256xbf16>, vector<32x256xf32> -> vector<32x256xf32>
    %25 = arith.addf %19, %24 : vector<32x256xf32>
    %26 = arith.truncf %25 : vector<32x256xf32> to vector<32x256xbf16>
    %c0_19 = arith.constant 0 : index
    %c0_20 = arith.constant 0 : index
    %c0_21 = arith.constant 0 : index
    %27 = vector.load %arg4[%c0_19, %c0_20, %c0_21] : memref<1x32x2048xbf16, #tpu.memory_space<vmem>>, vector<1x32x256xbf16>
    %28 = vector.shape_cast %27 : vector<1x32x256xbf16> to vector<32x256xbf16>
    %29 = vector.shape_cast %26 : vector<32x256xbf16> to vector<1x32x256xbf16>
    tpu.vector_store %arg4[%c0_19, %c0_20, %c0_21], %29 {strides = array<i32>} : memref<1x32x2048xbf16, #tpu.memory_space<vmem>>, vector<1x32x256xbf16>,
    %cst_22 = arith.constant dense<0.000000e+00> : vector<32xf32>
    %30 = vector.multi_reduction <add>, %25, %cst_22 [1] : vector<32x256xf32> to vector<32xf32>
    %31 = vector.shape_cast %30 : vector<32xf32> to vector<32x1xf32>
    %32 = arith.addf %7, %31 : vector<32x1xf32>
    %33 = arith.mulf %25, %25 : vector<32x256xf32>
    %cst_23 = arith.constant dense<0.000000e+00> : vector<32xf32>
    %34 = vector.multi_reduction <add>, %33, %cst_23 [1] : vector<32x256xf32> to vector<32xf32>
    %35 = vector.shape_cast %34 : vector<32xf32> to vector<32x1xf32>
    %36 = arith.addf %8, %35 : vector<32x1xf32>
    %c1_i32_24 = arith.constant 1 : i32
    %37 = arith.addi %0, %c1_i32_24 : i32
    %c0_25 = arith.constant 0 : index
    %38 = arith.index_cast %37 : i32 to index
    %c0_26 = arith.constant 0 : index
    %c0_27 = arith.constant 0 : index
    %39 = vector.load %arg2[%c0_25, %38, %c0_26, %c0_27] : memref<1x18x36x256xbf16, #tpu.memory_space<vmem>>, vector<1x1x36x256xbf16>
    %40 = vector.shape_cast %39 : vector<1x1x36x256xbf16> to vector<36x256xbf16>
    %cst_28 = arith.constant dense<0.000000e+00> : vector<32x256xf32>
    %41 = tpu.matmul %2, %40, %cst_28 {dimension_numbers = #tpu.dot_dimension_numbers<[1], [0], [0], [1], [0, 0, 1, 1], [], []>} : vector<32x36xbf16>, vector<36x256xbf16>, vector<32x256xf32> -> vector<32x256xf32>
    %c1_i32_29 = arith.constant 1 : i32
    %42 = arith.addi %37, %c1_i32_29 : i32
    %c0_30 = arith.constant 0 : index
    %43 = arith.index_cast %42 : i32 to index
    %c0_31 = arith.constant 0 : index
    %c0_32 = arith.constant 0 : index
    %44 = vector.load %arg2[%c0_30, %43, %c0_31, %c0_32] : memref<1x18x36x256xbf16, #tpu.memory_space<vmem>>, vector<1x1x36x256xbf16>
    %45 = vector.shape_cast %44 : vector<1x1x36x256xbf16> to vector<36x256xbf16>
    %cst_33 = arith.constant dense<0.000000e+00> : vector<32x256xf32>
    %46 = tpu.matmul %4, %45, %cst_33 {dimension_numbers = #tpu.dot_dimension_numbers<[1], [0], [0], [1], [0, 0, 1, 1], [], []>} : vector<32x36xbf16>, vector<36x256xbf16>, vector<32x256xf32> -> vector<32x256xf32>
    %47 = arith.addf %41, %46 : vector<32x256xf32>
    %c2_i32_34 = arith.constant 2 : i32
    %48 = arith.addi %37, %c2_i32_34 : i32
    %c0_35 = arith.constant 0 : index
    %49 = arith.index_cast %48 : i32 to index
    %c0_36 = arith.constant 0 : index
    %c0_37 = arith.constant 0 : index
    %50 = vector.load %arg2[%c0_35, %49, %c0_36, %c0_37] : memref<1x18x36x256xbf16, #tpu.memory_space<vmem>>, vector<1x1x36x256xbf16>
    %51 = vector.shape_cast %50 : vector<1x1x36x256xbf16> to vector<36x256xbf16>
    %cst_38 = arith.constant dense<0.000000e+00> : vector<32x256xf32>
    %52 = tpu.matmul %6, %51, %cst_38 {dimension_numbers = #tpu.dot_dimension_numbers<[1], [0], [0], [1], [0, 0, 1, 1], [], []>} : vector<32x36xbf16>, vector<36x256xbf16>, vector<32x256xf32> -> vector<32x256xf32>
    %53 = arith.addf %47, %52 : vector<32x256xf32>
    %54 = arith.truncf %53 : vector<32x256xf32> to vector<32x256xbf16>
    %c0_39 = arith.constant 0 : index
    %c0_40 = arith.constant 0 : index
    %c256 = arith.constant 256 : index
    %55 = vector.load %arg4[%c0_39, %c0_40, %c256] : memref<1x32x2048xbf16, #tpu.memory_space<vmem>>, vector<1x32x256xbf16>
    %56 = vector.shape_cast %55 : vector<1x32x256xbf16> to vector<32x256xbf16>
    %57 = vector.shape_cast %54 : vector<32x256xbf16> to vector<1x32x256xbf16>
    tpu.vector_store %arg4[%c0_39, %c0_40, %c256], %57 {strides = array<i32>} : memref<1x32x2048xbf16, #tpu.memory_space<vmem>>, vector<1x32x256xbf16>,
    %cst_41 = arith.constant dense<0.000000e+00> : vector<32xf32>
    %58 = vector.multi_reduction <add>, %53, %cst_41 [1] : vector<32x256xf32> to vector<32xf32>
    %59 = vector.shape_cast %58 : vector<32xf32> to vector<32x1xf32>
    %60 = arith.addf %32, %59 : vector<32x1xf32>
    %61 = arith.mulf %53, %53 : vector<32x256xf32>
    %cst_42 = arith.constant dense<0.000000e+00> : vector<32xf32>
    %62 = vector.multi_reduction <add>, %61, %cst_42 [1] : vector<32x256xf32> to vector<32xf32>
    %63 = vector.shape_cast %62 : vector<32xf32> to vector<32x1xf32>
    %64 = arith.addf %36, %63 : vector<32x1xf32>
    %c2_i32_43 = arith.constant 2 : i32
    %65 = arith.addi %0, %c2_i32_43 : i32
    %c0_44 = arith.constant 0 : index
    %66 = arith.index_cast %65 : i32 to index
    %c0_45 = arith.constant 0 : index
    %c0_46 = arith.constant 0 : index
    %67 = vector.load %arg2[%c0_44, %66, %c0_45, %c0_46] : memref<1x18x36x256xbf16, #tpu.memory_space<vmem>>, vector<1x1x36x256xbf16>
    %68 = vector.shape_cast %67 : vector<1x1x36x256xbf16> to vector<36x256xbf16>
    %cst_47 = arith.constant dense<0.000000e+00> : vector<32x256xf32>
    %69 = tpu.matmul %2, %68, %cst_47 {dimension_numbers = #tpu.dot_dimension_numbers<[1], [0], [0], [1], [0, 0, 1, 1], [], []>} : vector<32x36xbf16>, vector<36x256xbf16>, vector<32x256xf32> -> vector<32x256xf32>
    %c1_i32_48 = arith.constant 1 : i32
    %70 = arith.addi %65, %c1_i32_48 : i32
    %c0_49 = arith.constant 0 : index
    %71 = arith.index_cast %70 : i32 to index
    %c0_50 = arith.constant 0 : index
    %c0_51 = arith.constant 0 : index
    %72 = vector.load %arg2[%c0_49, %71, %c0_50, %c0_51] : memref<1x18x36x256xbf16, #tpu.memory_space<vmem>>, vector<1x1x36x256xbf16>
    %73 = vector.shape_cast %72 : vector<1x1x36x256xbf16> to vector<36x256xbf16>
    %cst_52 = arith.constant dense<0.000000e+00> : vector<32x256xf32>
    %74 = tpu.matmul %4, %73, %cst_52 {dimension_numbers = #tpu.dot_dimension_numbers<[1], [0], [0], [1], [0, 0, 1, 1], [], []>} : vector<32x36xbf16>, vector<36x256xbf16>, vector<32x256xf32> -> vector<32x256xf32>
    %75 = arith.addf %69, %74 : vector<32x256xf32>
    %c2_i32_53 = arith.constant 2 : i32
    %76 = arith.addi %65, %c2_i32_53 : i32
    %c0_54 = arith.constant 0 : index
    %77 = arith.index_cast %76 : i32 to index
    %c0_55 = arith.constant 0 : index
    %c0_56 = arith.constant 0 : index
    %78 = vector.load %arg2[%c0_54, %77, %c0_55, %c0_56] : memref<1x18x36x256xbf16, #tpu.memory_space<vmem>>, vector<1x1x36x256xbf16>
    %79 = vector.shape_cast %78 : vector<1x1x36x256xbf16> to vector<36x256xbf16>
    %cst_57 = arith.constant dense<0.000000e+00> : vector<32x256xf32>
    %80 = tpu.matmul %6, %79, %cst_57 {dimension_numbers = #tpu.dot_dimension_numbers<[1], [0], [0], [1], [0, 0, 1, 1], [], []>} : vector<32x36xbf16>, vector<36x256xbf16>, vector<32x256xf32> -> vector<32x256xf32>
    %81 = arith.addf %75, %80 : vector<32x256xf32>
    %82 = arith.truncf %81 : vector<32x256xf32> to vector<32x256xbf16>
    %c0_58 = arith.constant 0 : index
    %c0_59 = arith.constant 0 : index
    %c512 = arith.constant 512 : index
    %83 = vector.load %arg4[%c0_58, %c0_59, %c512] : memref<1x32x2048xbf16, #tpu.memory_space<vmem>>, vector<1x32x256xbf16>
    %84 = vector.shape_cast %83 : vector<1x32x256xbf16> to vector<32x256xbf16>
    %85 = vector.shape_cast %82 : vector<32x256xbf16> to vector<1x32x256xbf16>
    tpu.vector_store %arg4[%c0_58, %c0_59, %c512], %85 {strides = array<i32>} : memref<1x32x2048xbf16, #tpu.memory_space<vmem>>, vector<1x32x256xbf16>,
    %cst_60 = arith.constant dense<0.000000e+00> : vector<32xf32>
    %86 = vector.multi_reduction <add>, %81, %cst_60 [1] : vector<32x256xf32> to vector<32xf32>
    %87 = vector.shape_cast %86 : vector<32xf32> to vector<32x1xf32>
    %88 = arith.addf %60, %87 : vector<32x1xf32>
    %89 = arith.mulf %81, %81 : vector<32x256xf32>
    %cst_61 = arith.constant dense<0.000000e+00> : vector<32xf32>
    %90 = vector.multi_reduction <add>, %89, %cst_61 [1] : vector<32x256xf32> to vector<32xf32>
    %91 = vector.shape_cast %90 : vector<32xf32> to vector<32x1xf32>
    %92 = arith.addf %64, %91 : vector<32x1xf32>
    %c3_i32 = arith.constant 3 : i32
    %93 = arith.addi %0, %c3_i32 : i32
    %c0_62 = arith.constant 0 : index
    %94 = arith.index_cast %93 : i32 to index
    %c0_63 = arith.constant 0 : index
    %c0_64 = arith.constant 0 : index
    %95 = vector.load %arg2[%c0_62, %94, %c0_63, %c0_64] : memref<1x18x36x256xbf16, #tpu.memory_space<vmem>>, vector<1x1x36x256xbf16>
    %96 = vector.shape_cast %95 : vector<1x1x36x256xbf16> to vector<36x256xbf16>
    %cst_65 = arith.constant dense<0.000000e+00> : vector<32x256xf32>
    %97 = tpu.matmul %2, %96, %cst_65 {dimension_numbers = #tpu.dot_dimension_numbers<[1], [0], [0], [1], [0, 0, 1, 1], [], []>} : vector<32x36xbf16>, vector<36x256xbf16>, vector<32x256xf32> -> vector<32x256xf32>
    %c1_i32_66 = arith.constant 1 : i32
    %98 = arith.addi %93, %c1_i32_66 : i32
    %c0_67 = arith.constant 0 : index
    %99 = arith.index_cast %98 : i32 to index
    %c0_68 = arith.constant 0 : index
    %c0_69 = arith.constant 0 : index
    %100 = vector.load %arg2[%c0_67, %99, %c0_68, %c0_69] : memref<1x18x36x256xbf16, #tpu.memory_space<vmem>>, vector<1x1x36x256xbf16>
    %101 = vector.shape_cast %100 : vector<1x1x36x256xbf16> to vector<36x256xbf16>
    %cst_70 = arith.constant dense<0.000000e+00> : vector<32x256xf32>
    %102 = tpu.matmul %4, %101, %cst_70 {dimension_numbers = #tpu.dot_dimension_numbers<[1], [0], [0], [1], [0, 0, 1, 1], [], []>} : vector<32x36xbf16>, vector<36x256xbf16>, vector<32x256xf32> -> vector<32x256xf32>
    %103 = arith.addf %97, %102 : vector<32x256xf32>
    %c2_i32_71 = arith.constant 2 : i32
    %104 = arith.addi %93, %c2_i32_71 : i32
    %c0_72 = arith.constant 0 : index
    %105 = arith.index_cast %104 : i32 to index
    %c0_73 = arith.constant 0 : index
    %c0_74 = arith.constant 0 : index
    %106 = vector.load %arg2[%c0_72, %105, %c0_73, %c0_74] : memref<1x18x36x256xbf16, #tpu.memory_space<vmem>>, vector<1x1x36x256xbf16>
    %107 = vector.shape_cast %106 : vector<1x1x36x256xbf16> to vector<36x256xbf16>
    %cst_75 = arith.constant dense<0.000000e+00> : vector<32x256xf32>
    %108 = tpu.matmul %6, %107, %cst_75 {dimension_numbers = #tpu.dot_dimension_numbers<[1], [0], [0], [1], [0, 0, 1, 1], [], []>} : vector<32x36xbf16>, vector<36x256xbf16>, vector<32x256xf32> -> vector<32x256xf32>
    %109 = arith.addf %103, %108 : vector<32x256xf32>
    %110 = arith.truncf %109 : vector<32x256xf32> to vector<32x256xbf16>
    %c0_76 = arith.constant 0 : index
    %c0_77 = arith.constant 0 : index
    %c768 = arith.constant 768 : index
    %111 = vector.load %arg4[%c0_76, %c0_77, %c768] : memref<1x32x2048xbf16, #tpu.memory_space<vmem>>, vector<1x32x256xbf16>
    %112 = vector.shape_cast %111 : vector<1x32x256xbf16> to vector<32x256xbf16>
    %113 = vector.shape_cast %110 : vector<32x256xbf16> to vector<1x32x256xbf16>
    tpu.vector_store %arg4[%c0_76, %c0_77, %c768], %113 {strides = array<i32>} : memref<1x32x2048xbf16, #tpu.memory_space<vmem>>, vector<1x32x256xbf16>,
    %cst_78 = arith.constant dense<0.000000e+00> : vector<32xf32>
    %114 = vector.multi_reduction <add>, %109, %cst_78 [1] : vector<32x256xf32> to vector<32xf32>
    %115 = vector.shape_cast %114 : vector<32xf32> to vector<32x1xf32>
    %116 = arith.addf %88, %115 : vector<32x1xf32>
    %117 = arith.mulf %109, %109 : vector<32x256xf32>
    %cst_79 = arith.constant dense<0.000000e+00> : vector<32xf32>
    %118 = vector.multi_reduction <add>, %117, %cst_79 [1] : vector<32x256xf32> to vector<32xf32>
    %119 = vector.shape_cast %118 : vector<32xf32> to vector<32x1xf32>
    %120 = arith.addf %92, %119 : vector<32x1xf32>
    %c4_i32 = arith.constant 4 : i32
    %121 = arith.addi %0, %c4_i32 : i32
    %c0_80 = arith.constant 0 : index
    %122 = arith.index_cast %121 : i32 to index
    %c0_81 = arith.constant 0 : index
    %c0_82 = arith.constant 0 : index
    %123 = vector.load %arg2[%c0_80, %122, %c0_81, %c0_82] : memref<1x18x36x256xbf16, #tpu.memory_space<vmem>>, vector<1x1x36x256xbf16>
    %124 = vector.shape_cast %123 : vector<1x1x36x256xbf16> to vector<36x256xbf16>
    %cst_83 = arith.constant dense<0.000000e+00> : vector<32x256xf32>
    %125 = tpu.matmul %2, %124, %cst_83 {dimension_numbers = #tpu.dot_dimension_numbers<[1], [0], [0], [1], [0, 0, 1, 1], [], []>} : vector<32x36xbf16>, vector<36x256xbf16>, vector<32x256xf32> -> vector<32x256xf32>
    %c1_i32_84 = arith.constant 1 : i32
    %126 = arith.addi %121, %c1_i32_84 : i32
    %c0_85 = arith.constant 0 : index
    %127 = arith.index_cast %126 : i32 to index
    %c0_86 = arith.constant 0 : index
    %c0_87 = arith.constant 0 : index
    %128 = vector.load %arg2[%c0_85, %127, %c0_86, %c0_87] : memref<1x18x36x256xbf16, #tpu.memory_space<vmem>>, vector<1x1x36x256xbf16>
    %129 = vector.shape_cast %128 : vector<1x1x36x256xbf16> to vector<36x256xbf16>
    %cst_88 = arith.constant dense<0.000000e+00> : vector<32x256xf32>
    %130 = tpu.matmul %4, %129, %cst_88 {dimension_numbers = #tpu.dot_dimension_numbers<[1], [0], [0], [1], [0, 0, 1, 1], [], []>} : vector<32x36xbf16>, vector<36x256xbf16>, vector<32x256xf32> -> vector<32x256xf32>
    %131 = arith.addf %125, %130 : vector<32x256xf32>
    %c2_i32_89 = arith.constant 2 : i32
    %132 = arith.addi %121, %c2_i32_89 : i32
    %c0_90 = arith.constant 0 : index
    %133 = arith.index_cast %132 : i32 to index
    %c0_91 = arith.constant 0 : index
    %c0_92 = arith.constant 0 : index
    %134 = vector.load %arg2[%c0_90, %133, %c0_91, %c0_92] : memref<1x18x36x256xbf16, #tpu.memory_space<vmem>>, vector<1x1x36x256xbf16>
    %135 = vector.shape_cast %134 : vector<1x1x36x256xbf16> to vector<36x256xbf16>
    %cst_93 = arith.constant dense<0.000000e+00> : vector<32x256xf32>
    %136 = tpu.matmul %6, %135, %cst_93 {dimension_numbers = #tpu.dot_dimension_numbers<[1], [0], [0], [1], [0, 0, 1, 1], [], []>} : vector<32x36xbf16>, vector<36x256xbf16>, vector<32x256xf32> -> vector<32x256xf32>
    %137 = arith.addf %131, %136 : vector<32x256xf32>
    %138 = arith.truncf %137 : vector<32x256xf32> to vector<32x256xbf16>
    %c0_94 = arith.constant 0 : index
    %c0_95 = arith.constant 0 : index
    %c1024 = arith.constant 1024 : index
    %139 = vector.load %arg4[%c0_94, %c0_95, %c1024] : memref<1x32x2048xbf16, #tpu.memory_space<vmem>>, vector<1x32x256xbf16>
    %140 = vector.shape_cast %139 : vector<1x32x256xbf16> to vector<32x256xbf16>
    %141 = vector.shape_cast %138 : vector<32x256xbf16> to vector<1x32x256xbf16>
    tpu.vector_store %arg4[%c0_94, %c0_95, %c1024], %141 {strides = array<i32>} : memref<1x32x2048xbf16, #tpu.memory_space<vmem>>, vector<1x32x256xbf16>,
    %cst_96 = arith.constant dense<0.000000e+00> : vector<32xf32>
    %142 = vector.multi_reduction <add>, %137, %cst_96 [1] : vector<32x256xf32> to vector<32xf32>
    %143 = vector.shape_cast %142 : vector<32xf32> to vector<32x1xf32>
    %144 = arith.addf %116, %143 : vector<32x1xf32>
    %145 = arith.mulf %137, %137 : vector<32x256xf32>
    %cst_97 = arith.constant dense<0.000000e+00> : vector<32xf32>
    %146 = vector.multi_reduction <add>, %145, %cst_97 [1] : vector<32x256xf32> to vector<32xf32>
    %147 = vector.shape_cast %146 : vector<32xf32> to vector<32x1xf32>
    %148 = arith.addf %120, %147 : vector<32x1xf32>
    %c5_i32 = arith.constant 5 : i32
    %149 = arith.addi %0, %c5_i32 : i32
    %c0_98 = arith.constant 0 : index
    %150 = arith.index_cast %149 : i32 to index
    %c0_99 = arith.constant 0 : index
    %c0_100 = arith.constant 0 : index
    %151 = vector.load %arg2[%c0_98, %150, %c0_99, %c0_100] : memref<1x18x36x256xbf16, #tpu.memory_space<vmem>>, vector<1x1x36x256xbf16>
    %152 = vector.shape_cast %151 : vector<1x1x36x256xbf16> to vector<36x256xbf16>
    %cst_101 = arith.constant dense<0.000000e+00> : vector<32x256xf32>
    %153 = tpu.matmul %2, %152, %cst_101 {dimension_numbers = #tpu.dot_dimension_numbers<[1], [0], [0], [1], [0, 0, 1, 1], [], []>} : vector<32x36xbf16>, vector<36x256xbf16>, vector<32x256xf32> -> vector<32x256xf32>
    %c1_i32_102 = arith.constant 1 : i32
    %154 = arith.addi %149, %c1_i32_102 : i32
    %c0_103 = arith.constant 0 : index
    %155 = arith.index_cast %154 : i32 to index
    %c0_104 = arith.constant 0 : index
    %c0_105 = arith.constant 0 : index
    %156 = vector.load %arg2[%c0_103, %155, %c0_104, %c0_105] : memref<1x18x36x256xbf16, #tpu.memory_space<vmem>>, vector<1x1x36x256xbf16>
    %157 = vector.shape_cast %156 : vector<1x1x36x256xbf16> to vector<36x256xbf16>
    %cst_106 = arith.constant dense<0.000000e+00> : vector<32x256xf32>
    %158 = tpu.matmul %4, %157, %cst_106 {dimension_numbers = #tpu.dot_dimension_numbers<[1], [0], [0], [1], [0, 0, 1, 1], [], []>} : vector<32x36xbf16>, vector<36x256xbf16>, vector<32x256xf32> -> vector<32x256xf32>
    %159 = arith.addf %153, %158 : vector<32x256xf32>
    %c2_i32_107 = arith.constant 2 : i32
    %160 = arith.addi %149, %c2_i32_107 : i32
    %c0_108 = arith.constant 0 : index
    %161 = arith.index_cast %160 : i32 to index
    %c0_109 = arith.constant 0 : index
    %c0_110 = arith.constant 0 : index
    %162 = vector.load %arg2[%c0_108, %161, %c0_109, %c0_110] : memref<1x18x36x256xbf16, #tpu.memory_space<vmem>>, vector<1x1x36x256xbf16>
    %163 = vector.shape_cast %162 : vector<1x1x36x256xbf16> to vector<36x256xbf16>
    %cst_111 = arith.constant dense<0.000000e+00> : vector<32x256xf32>
    %164 = tpu.matmul %6, %163, %cst_111 {dimension_numbers = #tpu.dot_dimension_numbers<[1], [0], [0], [1], [0, 0, 1, 1], [], []>} : vector<32x36xbf16>, vector<36x256xbf16>, vector<32x256xf32> -> vector<32x256xf32>
    %165 = arith.addf %159, %164 : vector<32x256xf32>
    %166 = arith.truncf %165 : vector<32x256xf32> to vector<32x256xbf16>
    %c0_112 = arith.constant 0 : index
    %c0_113 = arith.constant 0 : index
    %c1280 = arith.constant 1280 : index
    %167 = vector.load %arg4[%c0_112, %c0_113, %c1280] : memref<1x32x2048xbf16, #tpu.memory_space<vmem>>, vector<1x32x256xbf16>
    %168 = vector.shape_cast %167 : vector<1x32x256xbf16> to vector<32x256xbf16>
    %169 = vector.shape_cast %166 : vector<32x256xbf16> to vector<1x32x256xbf16>
    tpu.vector_store %arg4[%c0_112, %c0_113, %c1280], %169 {strides = array<i32>} : memref<1x32x2048xbf16, #tpu.memory_space<vmem>>, vector<1x32x256xbf16>,
    %cst_114 = arith.constant dense<0.000000e+00> : vector<32xf32>
    %170 = vector.multi_reduction <add>, %165, %cst_114 [1] : vector<32x256xf32> to vector<32xf32>
    %171 = vector.shape_cast %170 : vector<32xf32> to vector<32x1xf32>
    %172 = arith.addf %144, %171 : vector<32x1xf32>
    %173 = arith.mulf %165, %165 : vector<32x256xf32>
    %cst_115 = arith.constant dense<0.000000e+00> : vector<32xf32>
    %174 = vector.multi_reduction <add>, %173, %cst_115 [1] : vector<32x256xf32> to vector<32xf32>
    %175 = vector.shape_cast %174 : vector<32xf32> to vector<32x1xf32>
    %176 = arith.addf %148, %175 : vector<32x1xf32>
    %c6_i32 = arith.constant 6 : i32
    %177 = arith.addi %0, %c6_i32 : i32
    %c0_116 = arith.constant 0 : index
    %178 = arith.index_cast %177 : i32 to index
    %c0_117 = arith.constant 0 : index
    %c0_118 = arith.constant 0 : index
    %179 = vector.load %arg2[%c0_116, %178, %c0_117, %c0_118] : memref<1x18x36x256xbf16, #tpu.memory_space<vmem>>, vector<1x1x36x256xbf16>
    %180 = vector.shape_cast %179 : vector<1x1x36x256xbf16> to vector<36x256xbf16>
    %cst_119 = arith.constant dense<0.000000e+00> : vector<32x256xf32>
    %181 = tpu.matmul %2, %180, %cst_119 {dimension_numbers = #tpu.dot_dimension_numbers<[1], [0], [0], [1], [0, 0, 1, 1], [], []>} : vector<32x36xbf16>, vector<36x256xbf16>, vector<32x256xf32> -> vector<32x256xf32>
    %c1_i32_120 = arith.constant 1 : i32
    %182 = arith.addi %177, %c1_i32_120 : i32
    %c0_121 = arith.constant 0 : index
    %183 = arith.index_cast %182 : i32 to index
    %c0_122 = arith.constant 0 : index
    %c0_123 = arith.constant 0 : index
    %184 = vector.load %arg2[%c0_121, %183, %c0_122, %c0_123] : memref<1x18x36x256xbf16, #tpu.memory_space<vmem>>, vector<1x1x36x256xbf16>
    %185 = vector.shape_cast %184 : vector<1x1x36x256xbf16> to vector<36x256xbf16>
    %cst_124 = arith.constant dense<0.000000e+00> : vector<32x256xf32>
    %186 = tpu.matmul %4, %185, %cst_124 {dimension_numbers = #tpu.dot_dimension_numbers<[1], [0], [0], [1], [0, 0, 1, 1], [], []>} : vector<32x36xbf16>, vector<36x256xbf16>, vector<32x256xf32> -> vector<32x256xf32>
    %187 = arith.addf %181, %186 : vector<32x256xf32>
    %c2_i32_125 = arith.constant 2 : i32
    %188 = arith.addi %177, %c2_i32_125 : i32
    %c0_126 = arith.constant 0 : index
    %189 = arith.index_cast %188 : i32 to index
    %c0_127 = arith.constant 0 : index
    %c0_128 = arith.constant 0 : index
    %190 = vector.load %arg2[%c0_126, %189, %c0_127, %c0_128] : memref<1x18x36x256xbf16, #tpu.memory_space<vmem>>, vector<1x1x36x256xbf16>
    %191 = vector.shape_cast %190 : vector<1x1x36x256xbf16> to vector<36x256xbf16>
    %cst_129 = arith.constant dense<0.000000e+00> : vector<32x256xf32>
    %192 = tpu.matmul %6, %191, %cst_129 {dimension_numbers = #tpu.dot_dimension_numbers<[1], [0], [0], [1], [0, 0, 1, 1], [], []>} : vector<32x36xbf16>, vector<36x256xbf16>, vector<32x256xf32> -> vector<32x256xf32>
    %193 = arith.addf %187, %192 : vector<32x256xf32>
    %194 = arith.truncf %193 : vector<32x256xf32> to vector<32x256xbf16>
    %c0_130 = arith.constant 0 : index
    %c0_131 = arith.constant 0 : index
    %c1536 = arith.constant 1536 : index
    %195 = vector.load %arg4[%c0_130, %c0_131, %c1536] : memref<1x32x2048xbf16, #tpu.memory_space<vmem>>, vector<1x32x256xbf16>
    %196 = vector.shape_cast %195 : vector<1x32x256xbf16> to vector<32x256xbf16>
    %197 = vector.shape_cast %194 : vector<32x256xbf16> to vector<1x32x256xbf16>
    tpu.vector_store %arg4[%c0_130, %c0_131, %c1536], %197 {strides = array<i32>} : memref<1x32x2048xbf16, #tpu.memory_space<vmem>>, vector<1x32x256xbf16>,
    %cst_132 = arith.constant dense<0.000000e+00> : vector<32xf32>
    %198 = vector.multi_reduction <add>, %193, %cst_132 [1] : vector<32x256xf32> to vector<32xf32>
    %199 = vector.shape_cast %198 : vector<32xf32> to vector<32x1xf32>
    %200 = arith.addf %172, %199 : vector<32x1xf32>
    %201 = arith.mulf %193, %193 : vector<32x256xf32>
    %cst_133 = arith.constant dense<0.000000e+00> : vector<32xf32>
    %202 = vector.multi_reduction <add>, %201, %cst_133 [1] : vector<32x256xf32> to vector<32xf32>
    %203 = vector.shape_cast %202 : vector<32xf32> to vector<32x1xf32>
    %204 = arith.addf %176, %203 : vector<32x1xf32>
    %c7_i32 = arith.constant 7 : i32
    %205 = arith.addi %0, %c7_i32 : i32
    %c0_134 = arith.constant 0 : index
    %206 = arith.index_cast %205 : i32 to index
    %c0_135 = arith.constant 0 : index
    %c0_136 = arith.constant 0 : index
    %207 = vector.load %arg2[%c0_134, %206, %c0_135, %c0_136] : memref<1x18x36x256xbf16, #tpu.memory_space<vmem>>, vector<1x1x36x256xbf16>
    %208 = vector.shape_cast %207 : vector<1x1x36x256xbf16> to vector<36x256xbf16>
    %cst_137 = arith.constant dense<0.000000e+00> : vector<32x256xf32>
    %209 = tpu.matmul %2, %208, %cst_137 {dimension_numbers = #tpu.dot_dimension_numbers<[1], [0], [0], [1], [0, 0, 1, 1], [], []>} : vector<32x36xbf16>, vector<36x256xbf16>, vector<32x256xf32> -> vector<32x256xf32>
    %c1_i32_138 = arith.constant 1 : i32
    %210 = arith.addi %205, %c1_i32_138 : i32
    %c0_139 = arith.constant 0 : index
    %211 = arith.index_cast %210 : i32 to index
    %c0_140 = arith.constant 0 : index
    %c0_141 = arith.constant 0 : index
    %212 = vector.load %arg2[%c0_139, %211, %c0_140, %c0_141] : memref<1x18x36x256xbf16, #tpu.memory_space<vmem>>, vector<1x1x36x256xbf16>
    %213 = vector.shape_cast %212 : vector<1x1x36x256xbf16> to vector<36x256xbf16>
    %cst_142 = arith.constant dense<0.000000e+00> : vector<32x256xf32>
    %214 = tpu.matmul %4, %213, %cst_142 {dimension_numbers = #tpu.dot_dimension_numbers<[1], [0], [0], [1], [0, 0, 1, 1], [], []>} : vector<32x36xbf16>, vector<36x256xbf16>, vector<32x256xf32> -> vector<32x256xf32>
    %215 = arith.addf %209, %214 : vector<32x256xf32>
    %c2_i32_143 = arith.constant 2 : i32
    %216 = arith.addi %205, %c2_i32_143 : i32
    %c0_144 = arith.constant 0 : index
    %217 = arith.index_cast %216 : i32 to index
    %c0_145 = arith.constant 0 : index
    %c0_146 = arith.constant 0 : index
    %218 = vector.load %arg2[%c0_144, %217, %c0_145, %c0_146] : memref<1x18x36x256xbf16, #tpu.memory_space<vmem>>, vector<1x1x36x256xbf16>
    %219 = vector.shape_cast %218 : vector<1x1x36x256xbf16> to vector<36x256xbf16>
    %cst_147 = arith.constant dense<0.000000e+00> : vector<32x256xf32>
    %220 = tpu.matmul %6, %219, %cst_147 {dimension_numbers = #tpu.dot_dimension_numbers<[1], [0], [0], [1], [0, 0, 1, 1], [], []>} : vector<32x36xbf16>, vector<36x256xbf16>, vector<32x256xf32> -> vector<32x256xf32>
    %221 = arith.addf %215, %220 : vector<32x256xf32>
    %222 = arith.truncf %221 : vector<32x256xf32> to vector<32x256xbf16>
    %c0_148 = arith.constant 0 : index
    %c0_149 = arith.constant 0 : index
    %c1792 = arith.constant 1792 : index
    %223 = vector.load %arg4[%c0_148, %c0_149, %c1792] : memref<1x32x2048xbf16, #tpu.memory_space<vmem>>, vector<1x32x256xbf16>
    %224 = vector.shape_cast %223 : vector<1x32x256xbf16> to vector<32x256xbf16>
    %225 = vector.shape_cast %222 : vector<32x256xbf16> to vector<1x32x256xbf16>
    tpu.vector_store %arg4[%c0_148, %c0_149, %c1792], %225 {strides = array<i32>} : memref<1x32x2048xbf16, #tpu.memory_space<vmem>>, vector<1x32x256xbf16>,
    %cst_150 = arith.constant dense<0.000000e+00> : vector<32xf32>
    %226 = vector.multi_reduction <add>, %221, %cst_150 [1] : vector<32x256xf32> to vector<32xf32>
    %227 = vector.shape_cast %226 : vector<32xf32> to vector<32x1xf32>
    %228 = arith.addf %200, %227 : vector<32x1xf32>
    %229 = arith.mulf %221, %221 : vector<32x256xf32>
    %cst_151 = arith.constant dense<0.000000e+00> : vector<32xf32>
    %230 = vector.multi_reduction <add>, %229, %cst_151 [1] : vector<32x256xf32> to vector<32xf32>
    %231 = vector.shape_cast %230 : vector<32xf32> to vector<32x1xf32>
    %232 = arith.addf %204, %231 : vector<32x1xf32>
    %c0_152 = arith.constant 0 : index
    %c0_153 = arith.constant 0 : index
    %c0_154 = arith.constant 0 : index
    %233 = vector.load %arg5[%c0_152, %c0_153, %c0_154] : memref<1x32x1xf32, #tpu.memory_space<vmem>>, vector<1x32x1xf32>
    %234 = vector.shape_cast %233 : vector<1x32x1xf32> to vector<32x1xf32>
    %235 = vector.shape_cast %228 : vector<32x1xf32> to vector<1x32x1xf32>
    tpu.vector_store %arg5[%c0_152, %c0_153, %c0_154], %235 {strides = array<i32>} : memref<1x32x1xf32, #tpu.memory_space<vmem>>, vector<1x32x1xf32>,
    %c0_155 = arith.constant 0 : index
    %c0_156 = arith.constant 0 : index
    %c0_157 = arith.constant 0 : index
    %236 = vector.load %arg6[%c0_155, %c0_156, %c0_157] : memref<1x32x1xf32, #tpu.memory_space<vmem>>, vector<1x32x1xf32>
    %237 = vector.shape_cast %236 : vector<1x32x1xf32> to vector<32x1xf32>
    %238 = vector.shape_cast %232 : vector<32x1xf32> to vector<1x32x1xf32>
    tpu.vector_store %arg6[%c0_155, %c0_156, %c0_157], %238 {strides = array<i32>} : memref<1x32x1xf32, #tpu.memory_space<vmem>>, vector<1x32x1xf32>,
    return
  }
  func.func @transform_0(%arg0: i32, %arg1: i32) -> (i32, i32, i32, i32) {
    %c0_i32 = arith.constant 0 : i32
    %c0_i32_0 = arith.constant 0 : i32
    %c0_i32_1 = arith.constant 0 : i32
    %c0_i32_2 = arith.constant 0 : i32
    return %arg0, %c0_i32, %c0_i32_0, %c0_i32_1 : i32, i32, i32, i32
  }
  func.func @transform_1(%arg0: i32, %arg1: i32) -> (i32, i32, i32) {
    %c0_i32 = arith.constant 0 : i32
    %c0_i32_0 = arith.constant 0 : i32
    %c0_i32_1 = arith.constant 0 : i32
    %c0_i32_2 = arith.constant 0 : i32
    return %c0_i32, %c0_i32_0, %c0_i32_1 : i32, i32, i32
  }
  func.func @transform_2(%arg0: i32, %arg1: i32) -> (i32, i32, i32) {
    %c0_i32 = arith.constant 0 : i32
    %c0_i32_0 = arith.constant 0 : i32
    return %arg0, %c0_i32, %arg1 : i32, i32, i32
  }
  func.func @transform_3(%arg0: i32, %arg1: i32) -> (i32, i32, i32) {
    %c2_i32 = arith.constant 2 : i32
    %0 = arith.muli %arg0, %c2_i32 : i32
    %1 = arith.addi %0, %arg1 : i32
    %c0_i32 = arith.constant 0 : i32
    %c0_i32_0 = arith.constant 0 : i32
    %c0_i32_1 = arith.constant 0 : i32
    return %1, %c0_i32, %c0_i32_0 : i32, i32, i32
  }
  func.func @transform_4(%arg0: i32, %arg1: i32) -> (i32, i32, i32) {
    %c2_i32 = arith.constant 2 : i32
    %0 = arith.muli %arg0, %c2_i32 : i32
    %1 = arith.addi %0, %arg1 : i32
    %c0_i32 = arith.constant 0 : i32
    %c0_i32_0 = arith.constant 0 : i32
    %c0_i32_1 = arith.constant 0 : i32
    return %1, %c0_i32, %c0_i32_0 : i32, i32, i32
  }
}

module attributes {stable_mosaic.version = 11 : i64} {
  func.func @bn_relu_kernel(%arg0: i32, %arg1: i32, %arg2: memref<1x32x4096xbf16, #tpu.memory_space<vmem>>, %arg3: memref<32x2xf32, #tpu.memory_space<vmem>>, %arg4: memref<1x32x4096xbf16, #tpu.memory_space<vmem>>) attributes {dimension_semantics = [#tpu.dimension_semantics<parallel>, #tpu.dimension_semantics<parallel>], iteration_bounds = array<i64: 2, 1>, scalar_prefetch = 0 : i64, scratch_operands = 0 : i64, tpu.core_type = #tpu.core_type<tc>, window_params = [{transform_indices = @transform_0, window_bounds = array<i64: 1, 32, 4096>}, {pipeline_mode = #tpu.pipeline_mode<synchronous>, transform_indices = @transform_1, window_bounds = array<i64: 32, 2>}, {transform_indices = @transform_2, window_bounds = array<i64: 1, 32, 4096>}]} {
    %c0 = arith.constant 0 : index
    %c0_0 = arith.constant 0 : index
    %0 = vector.load %arg3[%c0, %c0_0] : memref<32x2xf32, #tpu.memory_space<vmem>>, vector<32x2xf32>
    %c0_1 = arith.constant 0 : index
    %c0_2 = arith.constant 0 : index
    %c0_3 = arith.constant 0 : index
    %1 = vector.load %arg2[%c0_1, %c0_2, %c0_3] : memref<1x32x4096xbf16, #tpu.memory_space<vmem>>, vector<1x32x4096xbf16>
    %2 = vector.shape_cast %1 : vector<1x32x4096xbf16> to vector<32x4096xbf16>
    %3 = arith.extf %2 : vector<32x4096xbf16> to vector<32x4096xf32>
    %4 = vector.extract_strided_slice %0 {offsets = [0, 0], sizes = [32, 1], strides = [1, 1]} : vector<32x2xf32> to vector<32x1xf32>
    %5 = vector.broadcast %4 : vector<32x1xf32> to vector<32x4096xf32>
    %6 = arith.mulf %3, %5 : vector<32x4096xf32>
    %7 = vector.extract_strided_slice %0 {offsets = [0, 1], sizes = [32, 1], strides = [1, 1]} : vector<32x2xf32> to vector<32x1xf32>
    %8 = vector.broadcast %7 : vector<32x1xf32> to vector<32x4096xf32>
    %9 = arith.addf %6, %8 : vector<32x4096xf32>
    %cst = arith.constant 0.000000e+00 : f32
    %10 = vector.broadcast %cst : f32 to vector<32x4096xf32>
    %11 = arith.maximumf %9, %10 : vector<32x4096xf32>
    %12 = arith.truncf %11 : vector<32x4096xf32> to vector<32x4096xbf16>
    %c0_4 = arith.constant 0 : index
    %c0_5 = arith.constant 0 : index
    %c0_6 = arith.constant 0 : index
    %13 = vector.load %arg4[%c0_4, %c0_5, %c0_6] : memref<1x32x4096xbf16, #tpu.memory_space<vmem>>, vector<1x32x4096xbf16>
    %14 = vector.shape_cast %13 : vector<1x32x4096xbf16> to vector<32x4096xbf16>
    %15 = vector.shape_cast %12 : vector<32x4096xbf16> to vector<1x32x4096xbf16>
    tpu.vector_store %arg4[%c0_4, %c0_5, %c0_6], %15 {strides = array<i32>} : memref<1x32x4096xbf16, #tpu.memory_space<vmem>>, vector<1x32x4096xbf16>,
    return
  }
  func.func @transform_0(%arg0: i32, %arg1: i32) -> (i32, i32, i32) {
    %c0_i32 = arith.constant 0 : i32
    %c0_i32_0 = arith.constant 0 : i32
    return %arg0, %c0_i32, %arg1 : i32, i32, i32
  }
  func.func @transform_1(%arg0: i32, %arg1: i32) -> (i32, i32) {
    %c0_i32 = arith.constant 0 : i32
    %c0_i32_0 = arith.constant 0 : i32
    %c0_i32_1 = arith.constant 0 : i32
    return %c0_i32, %c0_i32_0 : i32, i32
  }
  func.func @transform_2(%arg0: i32, %arg1: i32) -> (i32, i32, i32) {
    %c0_i32 = arith.constant 0 : i32
    %c0_i32_0 = arith.constant 0 : i32
    return %arg0, %c0_i32, %arg1 : i32, i32, i32
  }
}

</mosaic_0001>

<llo_original>
// kernel: conv3d_block.2
$region0: #{conv3d_block.2}
  #allocation0 [shape = 'u32[]', space=smem, size = 0x4, offset = 0x4, fixed_abs, tag = 'smem constant byte address 0x4 - core index']
  #allocation1 [shape = 'u32[144,128]{1,0:T(1,128)}', space=vmem, size = 0x12000, scoped, tag = 'internal scratch']
  %s0 = inlined_call_operand.vmem [shape: bf16[2,18,36,256], index: 0, kind: input, shape index: {}]
  %s1 = inlined_call_operand.vmem [shape: bf16[3,32,36], index: 1, kind: input, shape index: {}]
  %s2 = inlined_call_operand.vmem [shape: bf16[2,32,4096], index: 2, kind: output, shape index: {0}]
  %s3 = inlined_call_operand.vmem [shape: f32[4,32,1], index: 3, kind: output, shape index: {1}]
  %s4 = inlined_call_operand.vmem [shape: f32[4,32,1], index: 4, kind: output, shape index: {2}]
  %5 = xla_tuple %s2, %s3, %s4
  %s6 = sld [smem:[#allocation0]]
  $region76: #{conv3d_block.2} parent=0
    _
  %s8 = ssub.s32 1, %s6
  %s9 = scalar_select 0, %s8, %s6
  $region1: #{conv3d_block.2} parent=0
    #allocation2 [shape = 'u8[262144]{0}', space=vmem, size = 0x40000, scoped, tag = 'output window, operand 0']
    loop: start=0, step=1, limit=6
    $region2: #{conv3d_block.2} parent=1 // loop_pre_header
      _
    $region3: #{conv3d_block.2} parent=1 // loop_header
      %s11 = sphi 0, %s15
      %p12 = scmp.ge.s32.totalorder %s11, 6
      %s18 = sphi 0, %s30
      %s19 = sphi 0, %s26
      %s20 = sphi 0, %s18
      %s21 = sphi 0, %s19
      %s22 = sphi 0, %s20
      %s23 = sphi 0, %s21
      %s33 = sphi 0, %s35
      %s36 = sphi 0, %s33
      %s37 = sphi 0, %s36
      %s53 = sphi 0, %s37
      %s57 = sphi 0, %s57
      %s59 = sphi 0, %s57
      %s60 = sphi 0, %s59
      %s74 = sphi 0, %s60
      %s82 = sphi 0, %s84
      %s85 = sphi 0, %s82
      %s86 = sphi 0, %s85
      %s102 = sphi 0, %s86
      %s112 = sphi 0, %s114
      %s115 = sphi 0, %s112
      %s116 = sphi 0, %s115
      %s132 = sphi 0, %s116
      %s142 = sphi 0, %s144
      %s145 = sphi 0, %s142
      %s146 = sphi 0, %s145
      %s162 = sphi 0, %s146
    $region4: #{conv3d_block.2} parent=1 // loop_header_branch
      %14 = sbr.rel (%p12) target = $region8
    $region5: #{conv3d_block.2} parent=1 // loop_body
      %s16 = ssub.s32 %s11, 1
      %s17 = ssub.s32 %s11, 2
      %s24 = sadd.s32 1, %s19
      %p25 = scmp.ge.s32.totalorder %s24, 2
      %s26 = scalar_select %p25, 0, %s24
      %s27 = sadd.s32 1, %s18
      %s28 = scalar_select %p25, %s27, %s18
      %p29 = scmp.ge.s32.totalorder %s28, 2
      %s30 = scalar_select %p29, 0, %s28
      %s31 = ssub.s32 %s18, %s30
      %p32 = scmp.eq.s32.totalorder %s31, 0
      %s34 = sadd.s32 %s33, 1
      %s35 = scalar_select %p32, %s33, %s34
      %p38 = pneg %p32
      %p39 = scmp.eq.s32.totalorder %s11, 3
      %p40 = por %p38, %p39
      %p41 = scmp.ne.s32.totalorder %s33, %s36
      %p42 = scmp.eq.s32.totalorder %s11, 0
      %p43 = por %p41, %p42
      %p44 = scmp.ne.s32.totalorder %s33, %s36
      %p45 = scmp.eq.s32.totalorder %s16, 3
      %p46 = por %p44, %p45
      %p47 = scmp.ne.s32.totalorder %s36, %s37
      %p48 = scmp.eq.s32.totalorder %s16, 0
      %p49 = por %p47, %p48
      %p50 = scmp.ne.s32.totalorder %s36, %s37
      %p51 = scmp.eq.s32.totalorder %s17, 3
      %p52 = por %p50, %p51
      %p54 = scmp.ne.s32.totalorder %s37, %s53
      %p55 = scmp.eq.s32.totalorder %s17, 0
      %p56 = por %p54, %p55
      %s58 = sadd.s32 %s57, 1
      %p61 = scmp.eq.s32.totalorder %s11, 3
      %p62 = scmp.ne.s32.totalorder %s57, %s59
      %p63 = scmp.eq.s32.totalorder %s11, 0
      %p64 = por %p62, %p63
      %p65 = scmp.ne.s32.totalorder %s57, %s59
      %p66 = scmp.eq.s32.totalorder %s16, 3
      %p67 = por %p65, %p66
      %p68 = scmp.ne.s32.totalorder %s59, %s60
      %p69 = scmp.eq.s32.totalorder %s16, 0
      %p70 = por %p68, %p69
      %p71 = scmp.ne.s32.totalorder %s59, %s60
      %p72 = scmp.eq.s32.totalorder %s17, 3
      %p73 = por %p71, %p72
      %p75 = scmp.ne.s32.totalorder %s60, %s74
      %p76 = scmp.eq.s32.totalorder %s17, 0
      %p77 = por %p75, %p76
      %s78 = ssub.s32 %s18, %s30
      %s79 = ssub.s32 %s19, %s26
      %s80 = sor.u32 %s78, %s79
      %p81 = scmp.eq.s32.totalorder %s80, 0
      %s83 = sadd.s32 %s82, 1
      %s84 = scalar_select %p81, %s82, %s83
      %p87 = pneg %p81
      %p88 = scmp.eq.s32.totalorder %s11, 3
      %p89 = por %p87, %p88
      %p90 = scmp.ne.s32.totalorder %s82, %s85
      %p91 = scmp.eq.s32.totalorder %s11, 0
      %p92 = por %p90, %p91
      %p93 = scmp.ne.s32.totalorder %s82, %s85
      %p94 = scmp.eq.s32.totalorder %s16, 3
      %p95 = por %p93, %p94
      %p96 = scmp.ne.s32.totalorder %s85, %s86
      %p97 = scmp.eq.s32.totalorder %s16, 0
      %p98 = por %p96, %p97
      %p99 = scmp.ne.s32.totalorder %s85, %s86
      %p100 = scmp.eq.s32.totalorder %s17, 3
      %p101 = por %p99, %p100
      %p103 = scmp.ne.s32.totalorder %s86, %s102
      %p104 = scmp.eq.s32.totalorder %s17, 0
      %p105 = por %p103, %p104
      %s106 = smul.u32 %s18, 2
      %s107 = sadd.s32 %s106, %s19
      %s108 = smul.u32 %s30, 2
      %s109 = sadd.s32 %s108, %s26
      %s110 = ssub.s32 %s107, %s109
      %p111 = scmp.eq.s32.totalorder %s110, 0
      %s113 = sadd.s32 %s112, 1
      %s114 = scalar_select %p111, %s112, %s113
      %p117 = pneg %p111
      %p118 = scmp.eq.s32.totalorder %s11, 3
      %p119 = por %p117, %p118
      %p120 = scmp.ne.s32.totalorder %s112, %s115
      %p121 = scmp.eq.s32.totalorder %s11, 0
      %p122 = por %p120, %p121
      %p123 = scmp.ne.s32.totalorder %s112, %s115
      %p124 = scmp.eq.s32.totalorder %s16, 3
      %p125 = por %p123, %p124
      %p126 = scmp.ne.s32.totalorder %s115, %s116
      %p127 = scmp.eq.s32.totalorder %s16, 0
      %p128 = por %p126, %p127
      %p129 = scmp.ne.s32.totalorder %s115, %s116
      %p130 = scmp.eq.s32.totalorder %s17, 3
      %p131 = por %p129, %p130
      %p133 = scmp.ne.s32.totalorder %s116, %s132
      %p134 = scmp.eq.s32.totalorder %s17, 0
      %p135 = por %p133, %p134
      %s136 = smul.u32 %s18, 2
      %s137 = sadd.s32 %s136, %s19
      %s138 = smul.u32 %s30, 2
      %s139 = sadd.s32 %s138, %s26
      %s140 = ssub.s32 %s137, %s139
      %p141 = scmp.eq.s32.totalorder %s140, 0
      %s143 = sadd.s32 %s142, 1
      %s144 = scalar_select %p141, %s142, %s143
      %p147 = pneg %p141
      %p148 = scmp.eq.s32.totalorder %s11, 3
      %p149 = por %p147, %p148
      %p150 = scmp.ne.s32.totalorder %s142, %s145
      %p151 = scmp.eq.s32.totalorder %s11, 0
      %p152 = por %p150, %p151
      %p153 = scmp.ne.s32.totalorder %s142, %s145
      %p154 = scmp.eq.s32.totalorder %s16, 3
      %p155 = por %p153, %p154
      %p156 = scmp.ne.s32.totalorder %s145, %s146
      %p157 = scmp.eq.s32.totalorder %s16, 0
      %p158 = por %p156, %p157
      %p159 = scmp.ne.s32.totalorder %s145, %s146
      %p160 = scmp.eq.s32.totalorder %s17, 3
      %p161 = por %p159, %p160
      %p163 = scmp.ne.s32.totalorder %s146, %s162
      %p164 = scmp.eq.s32.totalorder %s17, 0
      %p165 = por %p163, %p164
      %p166 = scmp.le.s32.totalorder 1, %s11
      %p167 = scmp.lt.s32.totalorder %s11, 5
      %p168 = pnand %p166, %p167
      %p169 = pneg %p168
      // Predicated region
      $region9: #{conv3d_block.2} parent=5 // pred_check
        _
      $region10: #{conv3d_block.2} parent=5 // pred_check_branch
        %171 = sbr.rel (%p168) target = $region12
      $region11: #{conv3d_block.2} parent=5 // pred_region
        %s172 = ssub.s32 %s11, 1
        // Predicated region
        $region13: #{conv3d_block.2} parent=11 // pred_check
          %p173 = pneg %p70
        $region14: #{conv3d_block.2} parent=11 // pred_check_branch
          %175 = sbr.rel (%p173) target = $region16
        $region15: #{conv3d_block.2} parent=11 // pred_region
          _
        $region16: #{conv3d_block.2} parent=11 // pred_fallthru
          _
      $region12: #{conv3d_block.2} parent=5 // pred_fallthru
        _
      %p176 = scmp.lt.s32.totalorder %s11, 4
      // Predicated region
      $region17: #{conv3d_block.2} parent=5 // pred_check
        %p177 = pneg %p176
      $region18: #{conv3d_block.2} parent=5 // pred_check_branch
        %179 = sbr.rel (%p177) target = $region20
      $region19: #{conv3d_block.2} parent=5 // pred_region
        // Predicated region
        $region21: #{conv3d_block.2} parent=19 // pred_check
          %p180 = pneg %p43
        $region22: #{conv3d_block.2} parent=19 // pred_check_branch
          %182 = sbr.rel (%p180) target = $region24
        $region23: #{conv3d_block.2} parent=19 // pred_region
          %p183 = scmp.lt.s32.totalorder %s18, 1
          %s184 = scalar_select %p183, %s18, 1
          %s185 = smul.addr %s184, 180
          %s186 = smul.addr %s185, 4
          %s187 = scalar_lea.vmem %s0, %s186
        $region24: #{conv3d_block.2} parent=19 // pred_fallthru
          _
      $region20: #{conv3d_block.2} parent=5 // pred_fallthru
        _
      %p188 = scmp.le.s32.totalorder 1, %s11
      %p189 = scmp.lt.s32.totalorder %s11, 5
      %p190 = pnand %p188, %p189
      %p191 = pneg %p190
      // Predicated region
      $region25: #{conv3d_block.2} parent=5 // pred_check
        _
      $region26: #{conv3d_block.2} parent=5 // pred_check_branch
        %193 = sbr.rel (%p190) target = $region28
      $region27: #{conv3d_block.2} parent=5 // pred_region
        %s194 = ssub.s32 %s11, 1
        %p195 = scmp.lt.s32.totalorder %s20, 1
        %s196 = scalar_select %p195, %s20, 1
        %s197 = smul.addr %s196, 180
        %s198 = smul.addr %s197, 4
        %s199 = scalar_lea.vmem %s0, %s198
        %p200 = pneg %p49
        %p201 = pneg %p46
        %p202 = pneg %p70
        %p203 = pneg %p67
        %p204 = pneg %p98
        %p205 = pneg %p95
        %s206 = sand.u32 %s85, 1
        %s207 = sand.u32 %s85, 1
        %s208 = smul.addr %s207, 256
        %s209 = scalar_lea.vmem [#allocation2], %s208
        %p210 = pneg %p128
        %p211 = pneg %p125
        %s212 = smul.u32 %s20, 2
        %s213 = sadd.s32 %s212, %s21
        %p214 = scmp.lt.s32.totalorder %s213, 3
        %s215 = scalar_select %p214, %s213, 3
        %s216 = smul.addr %s215, 4
        %s217 = smul.addr %s216, 8
        %s218 = scalar_lea.vmem %s3, %s217
        %p219 = pneg %p158
        %p220 = pneg %p155
        %s221 = smul.u32 %s20, 2
        %s222 = sadd.s32 %s221, %s21
        %p223 = scmp.lt.s32.totalorder %s222, 3
        %s224 = scalar_select %p223, %s222, 3
        %s225 = smul.addr %s224, 4
        %s226 = smul.addr %s225, 8
        %s227 = scalar_lea.vmem %s4, %s226
        %p228 = scmp.lt.s32.totalorder %s20, 1
        %s229 = scalar_select %p228, %s20, 1
        %s230 = smul.addr %s229, 180
        %s231 = smul.addr %s230, 4
        %s232 = scalar_lea.vmem %s0, %s231
        %s233 = smul.u32 16, %s21
        %s234 = smul.u32 %s20, 2
        %s235 = sadd.s32 %s234, %s21
        %p236 = scmp.lt.s32.totalorder %s235, 3
        %s237 = scalar_select %p236, %s235, 3
        %s238 = smul.addr %s237, 4
        %s239 = smul.addr %s238, 8
        %s240 = scalar_lea.vmem %s3, %s239
        %s241 = smul.u32 %s20, 2
        %s242 = sadd.s32 %s241, %s21
        %s243 = smul.u32 %s20, 2
        %s244 = sadd.s32 %s243, %s21
        %p245 = scmp.lt.s32.totalorder %s244, 3
        %s246 = scalar_select %p245, %s244, 3
        %s247 = smul.addr %s246, 4
        %s248 = smul.addr %s247, 8
        %s249 = scalar_lea.vmem %s4, %s248
        %s250 = smul.u32 %s20, 2
        %s251 = sadd.s32 %s250, %s21
        %s253 = smul.u32 %s21, 8
        %v254 = vld [vmem:[%s1] sm:$0xf]
        %v255 = vld [vmem:[%s1 + $0x4] sm:$0xf]
        %v256 = vld [vmem:[%s1 + $0x8] sm:$0xf]
        %v257 = vld [vmem:[%s1 + $0xc] sm:$0xf]
        %s258 = scalar_lea.vmem %s1, 16
        %v259 = vld [vmem:[%s258] sm:$0xf]
        %v260 = vld [vmem:[%s258 + $0x4] sm:$0xf]
        %v261 = vld [vmem:[%s258 + $0x8] sm:$0xf]
        %v262 = vld [vmem:[%s258 + $0xc] sm:$0xf]
        %s263 = scalar_lea.vmem %s1, 32
        %v264 = vld [vmem:[%s263] sm:$0xf]
        %v265 = vld [vmem:[%s263 + $0x4] sm:$0xf]
        %v266 = vld [vmem:[%s263 + $0x8] sm:$0xf]
        %v267 = vld [vmem:[%s263 + $0xc] sm:$0xf]
        %s268 = smul.u32 %s253, 10
        %s269 = smul.addr %s268, 4
        %s270 = scalar_lea.vmem %s232, %s269
        %v271 = vld [vmem:[%s270] sm:$0xff]
        %v272 = vld [vmem:[%s270 + $0x8] sm:$0xff]
        %v273 = vld [vmem:[%s270 + $0x10] sm:$0xff]
        %v274 = vld [vmem:[%s270 + $0x18] sm:$0xff]
        %v275 = vld [vmem:[%s270 + $0x20] sm:$0x33]
        %s276 = sadd.s32 %s253, 1
        %s277 = smul.u32 %s276, 10
        %s278 = smul.addr %s277, 4
        %s279 = scalar_lea.vmem %s232, %s278
        %v280 = vld [vmem:[%s279] sm:$0xff]
        %v281 = vld [vmem:[%s279 + $0x8] sm:$0xff]
        %v282 = vld [vmem:[%s279 + $0x10] sm:$0xff]
        %v283 = vld [vmem:[%s279 + $0x18] sm:$0xff]
        %v284 = vld [vmem:[%s279 + $0x20] sm:$0x33]
        %v289 = vunpack.c.l.b16 %v259
        %v290 = vunpack.c.l.b16 %v260
        %v291 = vunpack.c.l.b16 %v261
        %v292 = vunpack.c.l.b16 %v262
        %v293 = vpack.c.b16 %v290, %v289
        %v294 = vpack.c.b16 %v292, %v291
        %v300 = vunpack.c.l.b16 %v280
        %v301 = vunpack.c.h.b16 %v280
        %v302 = vunpack.c.l.b16 %v281
        %v303 = vunpack.c.h.b16 %v281
        %v304 = vunpack.c.l.b16 %v282
        %v305 = vunpack.c.h.b16 %v282
        %v306 = vunpack.c.l.b16 %v283
        %v307 = vunpack.c.h.b16 %v283
        %v308 = vunpack.c.l.b16 %v284
        %v309 = vunpack.c.h.b16 %v284
        %v310 = vpack.c.b16 %v302, %v300
        %v311 = vpack.c.b16 %v303, %v301
        %v312 = vpack.c.b16 %v306, %v304
        %v313 = vpack.c.b16 %v307, %v305
        %v314 = vpack.c.b16 %v308, %v308
        %v315 = vpack.c.b16 %v309, %v309
        %vm320 = vcmask 293888
        %v322 = vsel %vm320, %v293, 0
        %v325 = vsel %vm320, %v294, 0
        %vm327 = vcmask 1041408
        %v329 = vsel %vm327, %v314, 0
        %v332 = vsel %vm327, %v315, 0
        %334 = vmatprep.subr.bf16.mxu0 %v311
        %335 = vmatpush1.bf16.msra.mxu0 %v310
        %336 = vmatprep.subr.bf16.mxu0 %v313
        %337 = vmatpush1.bf16.msra.mxu0 %v312
        %338 = vmatprep.subr.bf16.mxu0 %v332
        %339 = vmatpush1.bf16.msra.mxu0 %v329
        %340 = vmatprep.subr.bf16.mxu0 0
        %341 = vmatpush1.bf16.msra.mxu0 0
        %342 = vmatprep.subr.bf16.mxu0 0
        %343 = vmatpush1.bf16.msra.mxu0 0
        %344 = vmatprep.subr.bf16.mxu0 0
        %345 = vmatpush1.bf16.msra.mxu0 0
        %346 = vmatprep.subr.bf16.mxu0 0
        %347 = vmatpush1.bf16.msra.mxu0 0
        %348 = vmatprep.subr.bf16.mxu0 0
        %349 = vmatpush1.bf16.msra.mxu0 0
        %350 = vmatprep.subr.bf16.mxu0 0
        %351 = vmatpush1.bf16.msra.mxu0 0
        %352 = vmatprep.subr.bf16.mxu0 0
        %353 = vmatpush1.bf16.msra.mxu0 0
        %354 = vmatprep.subr.bf16.mxu0 0
        %355 = vmatpush1.bf16.msra.mxu0 0
        %356 = vmatprep.subr.bf16.mxu0 0
        %357 = vmatpush1.bf16.msra.mxu0 0
        %358 = vmatprep.subr.bf16.mxu0 0
        %359 = vmatpush1.bf16.msra.mxu0 0
        %360 = vmatprep.subr.bf16.mxu0 0
        %361 = vmatpush1.bf16.msra.mxu0 0
        %362 = vmatprep.subr.bf16.mxu0 0
        %363 = vmatpush1.bf16.msra.mxu0 0
        %364 = vmatprep.subr.bf16.mxu0 0
        %365 = vmatpush1.bf16.msra.mxu0 0
        %366 = vmatprep.mubr.bf16.mxu0 0
        %367 = vmatmul.mubr.bf16.gmra.mrb[0].mxu0 %v322
        %v368 = vpop.f32.mrb[0].mxu0
        %v369 = vadd.f32 0.0, %v368
        %v370 = vpop.f32.mrb[0].mxu0
        %v371 = vadd.f32 0.0, %v370
        %v372 = vpop.f32.mrb[0].mxu0
        %v373 = vadd.f32 0.0, %v372
        %v374 = vpop.f32.mrb[0].mxu0
        %v375 = vadd.f32 0.0, %v374
        %376 = vmatprep.mubr.bf16.mxu0 0
        %377 = vmatmul.mubr.bf16.gmra.mrb[0].mxu0 %v325
        %v378 = vpop.f32.mrb[0].mxu0
        %v379 = vadd.f32 0.0, %v378
        %v380 = vpop.f32.mrb[0].mxu0
        %v381 = vadd.f32 0.0, %v380
        %v382 = vpop.f32.mrb[0].mxu0
        %v383 = vadd.f32 0.0, %v382
        %v384 = vpop.f32.mrb[0].mxu0
        %v385 = vadd.f32 0.0, %v384
        %386 = vdwg.mxu0
        %v391 = vunpack.c.l.b16 %v254
        %v392 = vunpack.c.l.b16 %v255
        %v393 = vunpack.c.l.b16 %v256
        %v394 = vunpack.c.l.b16 %v257
        %v395 = vpack.c.b16 %v392, %v391
        %v396 = vpack.c.b16 %v394, %v393
        %v402 = vunpack.c.l.b16 %v271
        %v403 = vunpack.c.h.b16 %v271
        %v404 = vunpack.c.l.b16 %v272
        %v405 = vunpack.c.h.b16 %v272
        %v406 = vunpack.c.l.b16 %v273
        %v407 = vunpack.c.h.b16 %v273
        %v408 = vunpack.c.l.b16 %v274
        %v409 = vunpack.c.h.b16 %v274
        %v410 = vunpack.c.l.b16 %v275
        %v411 = vunpack.c.h.b16 %v275
        %v412 = vpack.c.b16 %v404, %v402
        %v413 = vpack.c.b16 %v405, %v403
        %v414 = vpack.c.b16 %v408, %v406
        %v415 = vpack.c.b16 %v409, %v407
        %v416 = vpack.c.b16 %v410, %v410
        %v417 = vpack.c.b16 %v411, %v411
        %v423 = vsel %vm320, %v395, 0
        %v426 = vsel %vm320, %v396, 0
        %v429 = vsel %vm327, %v416, 0
        %v432 = vsel %vm327, %v417, 0
        %434 = vmatprep.subr.bf16.mxu0 %v413
        %435 = vmatpush1.bf16.msra.mxu0 %v412
        %436 = vmatprep.subr.bf16.mxu0 %v415
        %437 = vmatpush1.bf16.msra.mxu0 %v414
        %438 = vmatprep.subr.bf16.mxu0 %v432
        %439 = vmatpush1.bf16.msra.mxu0 %v429
        %440 = vmatprep.subr.bf16.mxu0 0
        %441 = vmatpush1.bf16.msra.mxu0 0
        %442 = vmatprep.subr.bf16.mxu0 0
        %443 = vmatpush1.bf16.msra.mxu0 0
        %444 = vmatprep.subr.bf16.mxu0 0
        %445 = vmatpush1.bf16.msra.mxu0 0
        %446 = vmatprep.subr.bf16.mxu0 0
        %447 = vmatpush1.bf16.msra.mxu0 0
        %448 = vmatprep.subr.bf16.mxu0 0
        %449 = vmatpush1.bf16.msra.mxu0 0
        %450 = vmatprep.subr.bf16.mxu0 0
        %451 = vmatpush1.bf16.msra.mxu0 0
        %452 = vmatprep.subr.bf16.mxu0 0
        %453 = vmatpush1.bf16.msra.mxu0 0
        %454 = vmatprep.subr.bf16.mxu0 0
        %455 = vmatpush1.bf16.msra.mxu0 0
        %456 = vmatprep.subr.bf16.mxu0 0
        %457 = vmatpush1.bf16.msra.mxu0 0
        %458 = vmatprep.subr.bf16.mxu0 0
        %459 = vmatpush1.bf16.msra.mxu0 0
        %460 = vmatprep.subr.bf16.mxu0 0
        %461 = vmatpush1.bf16.msra.mxu0 0
        %462 = vmatprep.subr.bf16.mxu0 0
        %463 = vmatpush1.bf16.msra.mxu0 0
        %464 = vmatprep.subr.bf16.mxu0 0
        %465 = vmatpush1.bf16.msra.mxu0 0
        %466 = vmatprep.mubr.bf16.mxu0 0
        %467 = vmatmul.mubr.bf16.gmra.mrb[0].mxu0 %v423
        %v468 = vpop.f32.mrb[0].mxu0
        %v469 = vadd.f32 %v369, %v468
        %v470 = vpop.f32.mrb[0].mxu0
        %v471 = vadd.f32 %v371, %v470
        %v472 = vpop.f32.mrb[0].mxu0
        %v473 = vadd.f32 %v373, %v472
        %v474 = vpop.f32.mrb[0].mxu0
        %v475 = vadd.f32 %v375, %v474
        %476 = vmatprep.mubr.bf16.mxu0 0
        %477 = vmatmul.mubr.bf16.gmra.mrb[0].mxu0 %v426
        %v478 = vpop.f32.mrb[0].mxu0
        %v479 = vadd.f32 %v379, %v478
        %v480 = vpop.f32.mrb[0].mxu0
        %v481 = vadd.f32 %v381, %v480
        %v482 = vpop.f32.mrb[0].mxu0
        %v483 = vadd.f32 %v383, %v482
        %v484 = vpop.f32.mrb[0].mxu0
        %v485 = vadd.f32 %v385, %v484
        %486 = vdwg.mxu0
        %s487 = sadd.s32 %s253, 2
        %s488 = smul.u32 %s487, 10
        %s489 = smul.addr %s488, 4
        %s490 = scalar_lea.vmem %s232, %s489
        %v491 = vld [vmem:[%s490] sm:$0xff]
        %v492 = vld [vmem:[%s490 + $0x8] sm:$0xff]
        %v493 = vld [vmem:[%s490 + $0x10] sm:$0xff]
        %v494 = vld [vmem:[%s490 + $0x18] sm:$0xff]
        %v495 = vld [vmem:[%s490 + $0x20] sm:$0x33]
        %v500 = vunpack.c.l.b16 %v264
        %v501 = vunpack.c.l.b16 %v265
        %v502 = vunpack.c.l.b16 %v266
        %v503 = vunpack.c.l.b16 %v267
        %v504 = vpack.c.b16 %v501, %v500
        %v505 = vpack.c.b16 %v503, %v502
        %v511 = vunpack.c.l.b16 %v491
        %v512 = vunpack.c.h.b16 %v491
        %v513 = vunpack.c.l.b16 %v492
        %v514 = vunpack.c.h.b16 %v492
        %v515 = vunpack.c.l.b16 %v493
        %v516 = vunpack.c.h.b16 %v493
        %v517 = vunpack.c.l.b16 %v494
        %v518 = vunpack.c.h.b16 %v494
        %v519 = vunpack.c.l.b16 %v495
        %v520 = vunpack.c.h.b16 %v495
        %v521 = vpack.c.b16 %v513, %v511
        %v522 = vpack.c.b16 %v514, %v512
        %v523 = vpack.c.b16 %v517, %v515
        %v524 = vpack.c.b16 %v518, %v516
        %v525 = vpack.c.b16 %v519, %v519
        %v526 = vpack.c.b16 %v520, %v520
        %v532 = vsel %vm320, %v504, 0
        %v535 = vsel %vm320, %v505, 0
        %v538 = vsel %vm327, %v525, 0
        %v541 = vsel %vm327, %v526, 0
        %543 = vmatprep.subr.bf16.mxu0 %v522
        %544 = vmatpush1.bf16.msra.mxu0 %v521
        %545 = vmatprep.subr.bf16.mxu0 %v524
        %546 = vmatpush1.bf16.msra.mxu0 %v523
        %547 = vmatprep.subr.bf16.mxu0 %v541
        %548 = vmatpush1.bf16.msra.mxu0 %v538
        %549 = vmatprep.subr.bf16.mxu0 0
        %550 = vmatpush1.bf16.msra.mxu0 0
        %551 = vmatprep.subr.bf16.mxu0 0
        %552 = vmatpush1.bf16.msra.mxu0 0
        %553 = vmatprep.subr.bf16.mxu0 0
        %554 = vmatpush1.bf16.msra.mxu0 0
        %555 = vmatprep.subr.bf16.mxu0 0
        %556 = vmatpush1.bf16.msra.mxu0 0
        %557 = vmatprep.subr.bf16.mxu0 0
        %558 = vmatpush1.bf16.msra.mxu0 0
        %559 = vmatprep.subr.bf16.mxu0 0
        %560 = vmatpush1.bf16.msra.mxu0 0
        %561 = vmatprep.subr.bf16.mxu0 0
        %562 = vmatpush1.bf16.msra.mxu0 0
        %563 = vmatprep.subr.bf16.mxu0 0
        %564 = vmatpush1.bf16.msra.mxu0 0
        %565 = vmatprep.subr.bf16.mxu0 0
        %566 = vmatpush1.bf16.msra.mxu0 0
        %567 = vmatprep.subr.bf16.mxu0 0
        %568 = vmatpush1.bf16.msra.mxu0 0
        %569 = vmatprep.subr.bf16.mxu0 0
        %570 = vmatpush1.bf16.msra.mxu0 0
        %571 = vmatprep.subr.bf16.mxu0 0
        %572 = vmatpush1.bf16.msra.mxu0 0
        %573 = vmatprep.subr.bf16.mxu0 0
        %574 = vmatpush1.bf16.msra.mxu0 0
        %575 = vmatprep.mubr.bf16.mxu0 0
        %576 = vmatmul.mubr.bf16.gmra.mrb[0].mxu0 %v532
        %v577 = vpop.f32.mrb[0].mxu0
        %v578 = vadd.f32 0.0, %v577
        %v579 = vpop.f32.mrb[0].mxu0
        %v580 = vadd.f32 0.0, %v579
        %v581 = vpop.f32.mrb[0].mxu0
        %v582 = vadd.f32 0.0, %v581
        %v583 = vpop.f32.mrb[0].mxu0
        %v584 = vadd.f32 0.0, %v583
        %585 = vmatprep.mubr.bf16.mxu0 0
        %586 = vmatmul.mubr.bf16.gmra.mrb[0].mxu0 %v535
        %v587 = vpop.f32.mrb[0].mxu0
        %v588 = vadd.f32 0.0, %v587
        %v589 = vpop.f32.mrb[0].mxu0
        %v590 = vadd.f32 0.0, %v589
        %v591 = vpop.f32.mrb[0].mxu0
        %v592 = vadd.f32 0.0, %v591
        %v593 = vpop.f32.mrb[0].mxu0
        %v594 = vadd.f32 0.0, %v593
        %595 = vdwg.mxu0
        %v596 = vadd.f32 %v469, %v578
        %v597 = vadd.f32 %v471, %v580
        %v598 = vadd.f32 %v473, %v582
        %v599 = vadd.f32 %v475, %v584
        %v600 = vadd.f32 %v479, %v588
        %v601 = vadd.f32 %v481, %v590
        %v602 = vadd.f32 %v483, %v592
        %v603 = vadd.f32 %v485, %v594
        %v604 = vpack.c.bf16 %v598, %v596
        %v605 = vpack.c.bf16 %v599, %v597
        %v606 = vpack.c.bf16 %v602, %v600
        %v607 = vpack.c.bf16 %v603, %v601
        %v612 = vunpack.c.l.b16 %v604
        %v613 = vunpack.c.l.b16 %v605
        %v614 = vunpack.c.h.b16 %v604
        %v615 = vunpack.c.h.b16 %v605
        %v616 = vunpack.c.l.b16 %v606
        %v617 = vunpack.c.l.b16 %v607
        %v618 = vunpack.c.h.b16 %v606
        %v619 = vunpack.c.h.b16 %v607
        %v620 = vpack.c.b16 %v613, %v612
        %v621 = vpack.c.b16 %v615, %v614
        %v622 = vpack.c.b16 %v617, %v616
        %v623 = vpack.c.b16 %v619, %v618
        %628 = vst [vmem:[%s209] sm:$0xff] %v620
        %629 = vst [vmem:[%s209 + $0x40] sm:$0xff] %v621
        %630 = vst [vmem:[%s209 + $0x80] sm:$0xff] %v622
        %631 = vst [vmem:[%s209 + $0xc0] sm:$0xff] %v623
        %v632 = vadd.f32 %v596, %v597
        %633 = vadd.xlane.f32.xlu0 %v632
        %v634 = vpop.xlane.xlu0 %633
        %v635 = vadd.f32 %v598, %v599
        %636 = vadd.xlane.f32.xlu0 %v635
        %v637 = vpop.xlane.xlu0 %636
        %v638 = vadd.f32 %v600, %v601
        %639 = vadd.xlane.f32.xlu0 %v638
        %v640 = vpop.xlane.xlu0 %639
        %v641 = vadd.f32 %v602, %v603
        %642 = vadd.xlane.f32.xlu0 %v641
        %v643 = vpop.xlane.xlu0 %642
        %v644 = vadd.f32 %v634, 0.0
        %v645 = vadd.f32 %v637, 0.0
        %v646 = vadd.f32 %v640, 0.0
        %v647 = vadd.f32 %v643, 0.0
        %v648 = vmul.f32 %v596, %v596
        %v649 = vmul.f32 %v597, %v597
        %v650 = vmul.f32 %v598, %v598
        %v651 = vmul.f32 %v599, %v599
        %v652 = vmul.f32 %v600, %v600
        %v653 = vmul.f32 %v601, %v601
        %v654 = vmul.f32 %v602, %v602
        %v655 = vmul.f32 %v603, %v603
        %v656 = vadd.f32 %v648, %v649
        %657 = vadd.xlane.f32.xlu0 %v656
        %v658 = vpop.xlane.xlu0 %657
        %v659 = vadd.f32 %v650, %v651
        %660 = vadd.xlane.f32.xlu0 %v659
        %v661 = vpop.xlane.xlu0 %660
        %v662 = vadd.f32 %v652, %v653
        %663 = vadd.xlane.f32.xlu0 %v662
        %v664 = vpop.xlane.xlu0 %663
        %v665 = vadd.f32 %v654, %v655
        %666 = vadd.xlane.f32.xlu0 %v665
        %v667 = vpop.xlane.xlu0 %666
        %v668 = vadd.f32 %v658, 0.0
        %v669 = vadd.f32 %v661, 0.0
        %v670 = vadd.f32 %v664, 0.0
        %v671 = vadd.f32 %v667, 0.0
        %v672 = vld [vmem:[%s279] sm:$0xff]
        %v673 = vld [vmem:[%s279 + $0x8] sm:$0xff]
        %v674 = vld [vmem:[%s279 + $0x10] sm:$0xff]
        %v675 = vld [vmem:[%s279 + $0x18] sm:$0xff]
        %v676 = vld [vmem:[%s279 + $0x20] sm:$0x33]
        %v677 = vld [vmem:[%s490] sm:$0xff]
        %v678 = vld [vmem:[%s490 + $0x8] sm:$0xff]
        %v679 = vld [vmem:[%s490 + $0x10] sm:$0xff]
        %v680 = vld [vmem:[%s490 + $0x18] sm:$0xff]
        %v681 = vld [vmem:[%s490 + $0x20] sm:$0x33]
        %v687 = vunpack.c.l.b16 %v677
        %v688 = vunpack.c.h.b16 %v677
        %v689 = vunpack.c.l.b16 %v678
        %v690 = vunpack.c.h.b16 %v678
        %v691 = vunpack.c.l.b16 %v679
        %v692 = vunpack.c.h.b16 %v679
        %v693 = vunpack.c.l.b16 %v680
        %v694 = vunpack.c.h.b16 %v680
        %v695 = vunpack.c.l.b16 %v681
        %v696 = vunpack.c.h.b16 %v681
        %v697 = vpack.c.b16 %v689, %v687
        %v698 = vpack.c.b16 %v690, %v688
        %v699 = vpack.c.b16 %v693, %v691
        %v700 = vpack.c.b16 %v694, %v692
        %v701 = vpack.c.b16 %v695, %v695
        %v702 = vpack.c.b16 %v696, %v696
        %v708 = vsel %vm327, %v701, 0
        %v711 = vsel %vm327, %v702, 0
        %713 = vmatprep.subr.bf16.mxu0 %v698
        %714 = vmatpush1.bf16.msra.mxu0 %v697
        %715 = vmatprep.subr.bf16.mxu0 %v700
        %716 = vmatpush1.bf16.msra.mxu0 %v699
        %717 = vmatprep.subr.bf16.mxu0 %v711
        %718 = vmatpush1.bf16.msra.mxu0 %v708
        %719 = vmatprep.subr.bf16.mxu0 0
        %720 = vmatpush1.bf16.msra.mxu0 0
        %721 = vmatprep.subr.bf16.mxu0 0
        %722 = vmatpush1.bf16.msra.mxu0 0
        %723 = vmatprep.subr.bf16.mxu0 0
        %724 = vmatpush1.bf16.msra.mxu0 0
        %725 = vmatprep.subr.bf16.mxu0 0
        %726 = vmatpush1.bf16.msra.mxu0 0
        %727 = vmatprep.subr.bf16.mxu0 0
        %728 = vmatpush1.bf16.msra.mxu0 0
        %729 = vmatprep.subr.bf16.mxu0 0
        %730 = vmatpush1.bf16.msra.mxu0 0
        %731 = vmatprep.subr.bf16.mxu0 0
        %732 = vmatpush1.bf16.msra.mxu0 0
        %733 = vmatprep.subr.bf16.mxu0 0
        %734 = vmatpush1.bf16.msra.mxu0 0
        %735 = vmatprep.subr.bf16.mxu0 0
        %736 = vmatpush1.bf16.msra.mxu0 0
        %737 = vmatprep.subr.bf16.mxu0 0
        %738 = vmatpush1.bf16.msra.mxu0 0
        %739 = vmatprep.subr.bf16.mxu0 0
        %740 = vmatpush1.bf16.msra.mxu0 0
        %741 = vmatprep.subr.bf16.mxu0 0
        %742 = vmatpush1.bf16.msra.mxu0 0
        %743 = vmatprep.subr.bf16.mxu0 0
        %744 = vmatpush1.bf16.msra.mxu0 0
        %745 = vmatprep.mubr.bf16.mxu0 0
        %746 = vmatmul.mubr.bf16.gmra.mrb[0].mxu0 %v322
        %v747 = vpop.f32.mrb[0].mxu0
        %v748 = vadd.f32 0.0, %v747
        %v749 = vpop.f32.mrb[0].mxu0
        %v750 = vadd.f32 0.0, %v749
        %v751 = vpop.f32.mrb[0].mxu0
        %v752 = vadd.f32 0.0, %v751
        %v753 = vpop.f32.mrb[0].mxu0
        %v754 = vadd.f32 0.0, %v753
        %755 = vmatprep.mubr.bf16.mxu0 0
        %756 = vmatmul.mubr.bf16.gmra.mrb[0].mxu0 %v325
        %v757 = vpop.f32.mrb[0].mxu0
        %v758 = vadd.f32 0.0, %v757
        %v759 = vpop.f32.mrb[0].mxu0
        %v760 = vadd.f32 0.0, %v759
        %v761 = vpop.f32.mrb[0].mxu0
        %v762 = vadd.f32 0.0, %v761
        %v763 = vpop.f32.mrb[0].mxu0
        %v764 = vadd.f32 0.0, %v763
        %765 = vdwg.mxu0
        %v771 = vunpack.c.l.b16 %v672
        %v772 = vunpack.c.h.b16 %v672
        %v773 = vunpack.c.l.b16 %v673
        %v774 = vunpack.c.h.b16 %v673
        %v775 = vunpack.c.l.b16 %v674
        %v776 = vunpack.c.h.b16 %v674
        %v777 = vunpack.c.l.b16 %v675
        %v778 = vunpack.c.h.b16 %v675
        %v779 = vunpack.c.l.b16 %v676
        %v780 = vunpack.c.h.b16 %v676
        %v781 = vpack.c.b16 %v773, %v771
        %v782 = vpack.c.b16 %v774, %v772
        %v783 = vpack.c.b16 %v777, %v775
        %v784 = vpack.c.b16 %v778, %v776
        %v785 = vpack.c.b16 %v779, %v779
        %v786 = vpack.c.b16 %v780, %v780
        %v792 = vsel %vm327, %v785, 0
        %v795 = vsel %vm327, %v786, 0
        %797 = vmatprep.subr.bf16.mxu0 %v782
        %798 = vmatpush1.bf16.msra.mxu0 %v781
        %799 = vmatprep.subr.bf16.mxu0 %v784
        %800 = vmatpush1.bf16.msra.mxu0 %v783
        %801 = vmatprep.subr.bf16.mxu0 %v795
        %802 = vmatpush1.bf16.msra.mxu0 %v792
        %803 = vmatprep.subr.bf16.mxu0 0
        %804 = vmatpush1.bf16.msra.mxu0 0
        %805 = vmatprep.subr.bf16.mxu0 0
        %806 = vmatpush1.bf16.msra.mxu0 0
        %807 = vmatprep.subr.bf16.mxu0 0
        %808 = vmatpush1.bf16.msra.mxu0 0
        %809 = vmatprep.subr.bf16.mxu0 0
        %810 = vmatpush1.bf16.msra.mxu0 0
        %811 = vmatprep.subr.bf16.mxu0 0
        %812 = vmatpush1.bf16.msra.mxu0 0
        %813 = vmatprep.subr.bf16.mxu0 0
        %814 = vmatpush1.bf16.msra.mxu0 0
        %815 = vmatprep.subr.bf16.mxu0 0
        %816 = vmatpush1.bf16.msra.mxu0 0
        %817 = vmatprep.subr.bf16.mxu0 0
        %818 = vmatpush1.bf16.msra.mxu0 0
        %819 = vmatprep.subr.bf16.mxu0 0
        %820 = vmatpush1.bf16.msra.mxu0 0
        %821 = vmatprep.subr.bf16.mxu0 0
        %822 = vmatpush1.bf16.msra.mxu0 0
        %823 = vmatprep.subr.bf16.mxu0 0
        %824 = vmatpush1.bf16.msra.mxu0 0
        %825 = vmatprep.subr.bf16.mxu0 0
        %826 = vmatpush1.bf16.msra.mxu0 0
        %827 = vmatprep.subr.bf16.mxu0 0
        %828 = vmatpush1.bf16.msra.mxu0 0
        %829 = vmatprep.mubr.bf16.mxu0 0
        %830 = vmatmul.mubr.bf16.gmra.mrb[0].mxu0 %v423
        %v831 = vpop.f32.mrb[0].mxu0
        %v832 = vadd.f32 %v748, %v831
        %v833 = vpop.f32.mrb[0].mxu0
        %v834 = vadd.f32 %v750, %v833
        %v835 = vpop.f32.mrb[0].mxu0
        %v836 = vadd.f32 %v752, %v835
        %v837 = vpop.f32.mrb[0].mxu0
        %v838 = vadd.f32 %v754, %v837
        %839 = vmatprep.mubr.bf16.mxu0 0
        %840 = vmatmul.mubr.bf16.gmra.mrb[0].mxu0 %v426
        %v841 = vpop.f32.mrb[0].mxu0
        %v842 = vadd.f32 %v758, %v841
        %v843 = vpop.f32.mrb[0].mxu0
        %v844 = vadd.f32 %v760, %v843
        %v845 = vpop.f32.mrb[0].mxu0
        %v846 = vadd.f32 %v762, %v845
        %v847 = vpop.f32.mrb[0].mxu0
        %v848 = vadd.f32 %v764, %v847
        %849 = vdwg.mxu0
        %s850 = sadd.s32 %s253, 3
        %s851 = smul.u32 %s850, 10
        %s852 = smul.addr %s851, 4
        %s853 = scalar_lea.vmem %s232, %s852
        %v854 = vld [vmem:[%s853] sm:$0xff]
        %v855 = vld [vmem:[%s853 + $0x8] sm:$0xff]
        %v856 = vld [vmem:[%s853 + $0x10] sm:$0xff]
        %v857 = vld [vmem:[%s853 + $0x18] sm:$0xff]
        %v858 = vld [vmem:[%s853 + $0x20] sm:$0x33]
        %v864 = vunpack.c.l.b16 %v854
        %v865 = vunpack.c.h.b16 %v854
        %v866 = vunpack.c.l.b16 %v855
        %v867 = vunpack.c.h.b16 %v855
        %v868 = vunpack.c.l.b16 %v856
        %v869 = vunpack.c.h.b16 %v856
        %v870 = vunpack.c.l.b16 %v857
        %v871 = vunpack.c.h.b16 %v857
        %v872 = vunpack.c.l.b16 %v858
        %v873 = vunpack.c.h.b16 %v858
        %v874 = vpack.c.b16 %v866, %v864
        %v875 = vpack.c.b16 %v867, %v865
        %v876 = vpack.c.b16 %v870, %v868
        %v877 = vpack.c.b16 %v871, %v869
        %v878 = vpack.c.b16 %v872, %v872
        %v879 = vpack.c.b16 %v873, %v873
        %v885 = vsel %vm327, %v878, 0
        %v888 = vsel %vm327, %v879, 0
        %890 = vmatprep.subr.bf16.mxu0 %v875
        %891 = vmatpush1.bf16.msra.mxu0 %v874
        %892 = vmatprep.subr.bf16.mxu0 %v877
        %893 = vmatpush1.bf16.msra.mxu0 %v876
        %894 = vmatprep.subr.bf16.mxu0 %v888
        %895 = vmatpush1.bf16.msra.mxu0 %v885
        %896 = vmatprep.subr.bf16.mxu0 0
        %897 = vmatpush1.bf16.msra.mxu0 0
        %898 = vmatprep.subr.bf16.mxu0 0
        %899 = vmatpush1.bf16.msra.mxu0 0
        %900 = vmatprep.subr.bf16.mxu0 0
        %901 = vmatpush1.bf16.msra.mxu0 0
        %902 = vmatprep.subr.bf16.mxu0 0
        %903 = vmatpush1.bf16.msra.mxu0 0
        %904 = vmatprep.subr.bf16.mxu0 0
        %905 = vmatpush1.bf16.msra.mxu0 0
        %906 = vmatprep.subr.bf16.mxu0 0
        %907 = vmatpush1.bf16.msra.mxu0 0
        %908 = vmatprep.subr.bf16.mxu0 0
        %909 = vmatpush1.bf16.msra.mxu0 0
        %910 = vmatprep.subr.bf16.mxu0 0
        %911 = vmatpush1.bf16.msra.mxu0 0
        %912 = vmatprep.subr.bf16.mxu0 0
        %913 = vmatpush1.bf16.msra.mxu0 0
        %914 = vmatprep.subr.bf16.mxu0 0
        %915 = vmatpush1.bf16.msra.mxu0 0
        %916 = vmatprep.subr.bf16.mxu0 0
        %917 = vmatpush1.bf16.msra.mxu0 0
        %918 = vmatprep.subr.bf16.mxu0 0
        %919 = vmatpush1.bf16.msra.mxu0 0
        %920 = vmatprep.subr.bf16.mxu0 0
        %921 = vmatpush1.bf16.msra.mxu0 0
        %922 = vmatprep.mubr.bf16.mxu0 0
        %923 = vmatmul.mubr.bf16.gmra.mrb[0].mxu0 %v532
        %v924 = vpop.f32.mrb[0].mxu0
        %v925 = vadd.f32 0.0, %v924
        %v926 = vpop.f32.mrb[0].mxu0
        %v927 = vadd.f32 0.0, %v926
        %v928 = vpop.f32.mrb[0].mxu0
        %v929 = vadd.f32 0.0, %v928
        %v930 = vpop.f32.mrb[0].mxu0
        %v931 = vadd.f32 0.0, %v930
        %932 = vmatprep.mubr.bf16.mxu0 0
        %933 = vmatmul.mubr.bf16.gmra.mrb[0].mxu0 %v535
        %v934 = vpop.f32.mrb[0].mxu0
        %v935 = vadd.f32 0.0, %v934
        %v936 = vpop.f32.mrb[0].mxu0
        %v937 = vadd.f32 0.0, %v936
        %v938 = vpop.f32.mrb[0].mxu0
        %v939 = vadd.f32 0.0, %v938
        %v940 = vpop.f32.mrb[0].mxu0
        %v941 = vadd.f32 0.0, %v940
        %942 = vdwg.mxu0
        %v943 = vadd.f32 %v832, %v925
        %v944 = vadd.f32 %v834, %v927
        %v945 = vadd.f32 %v836, %v929
        %v946 = vadd.f32 %v838, %v931
        %v947 = vadd.f32 %v842, %v935
        %v948 = vadd.f32 %v844, %v937
        %v949 = vadd.f32 %v846, %v939
        %v950 = vadd.f32 %v848, %v941
        %v951 = vpack.c.bf16 %v945, %v943
        %v952 = vpack.c.bf16 %v946, %v944
        %v953 = vpack.c.bf16 %v949, %v947
        %v954 = vpack.c.bf16 %v950, %v948
        %v959 = vunpack.c.l.b16 %v951
        %v960 = vunpack.c.l.b16 %v952
        %v961 = vunpack.c.h.b16 %v951
        %v962 = vunpack.c.h.b16 %v952
        %v963 = vunpack.c.l.b16 %v953
        %v964 = vunpack.c.l.b16 %v954
        %v965 = vunpack.c.h.b16 %v953
        %v966 = vunpack.c.h.b16 %v954
        %v967 = vpack.c.b16 %v960, %v959
        %v968 = vpack.c.b16 %v962, %v961
        %v969 = vpack.c.b16 %v964, %v963
        %v970 = vpack.c.b16 %v966, %v965
        %975 = vst [vmem:[%s209 + $0x8] sm:$0xff] %v967
        %976 = vst [vmem:[%s209 + $0x48] sm:$0xff] %v968
        %977 = vst [vmem:[%s209 + $0x88] sm:$0xff] %v969
        %978 = vst [vmem:[%s209 + $0xc8] sm:$0xff] %v970
        %v979 = vadd.f32 %v943, %v944
        %980 = vadd.xlane.f32.xlu0 %v979
        %v981 = vpop.xlane.xlu0 %980
        %v982 = vadd.f32 %v945, %v946
        %983 = vadd.xlane.f32.xlu0 %v982
        %v984 = vpop.xlane.xlu0 %983
        %v985 = vadd.f32 %v947, %v948
        %986 = vadd.xlane.f32.xlu0 %v985
        %v987 = vpop.xlane.xlu0 %986
        %v988 = vadd.f32 %v949, %v950
        %989 = vadd.xlane.f32.xlu0 %v988
        %v990 = vpop.xlane.xlu0 %989
        %v991 = vadd.f32 %v644, %v981
        %v992 = vadd.f32 %v645, %v984
        %v993 = vadd.f32 %v646, %v987
        %v994 = vadd.f32 %v647, %v990
        %v995 = vmul.f32 %v943, %v943
        %v996 = vmul.f32 %v944, %v944
        %v997 = vmul.f32 %v945, %v945
        %v998 = vmul.f32 %v946, %v946
        %v999 = vmul.f32 %v947, %v947
        %v1000 = vmul.f32 %v948, %v948
        %v1001 = vmul.f32 %v949, %v949
        %v1002 = vmul.f32 %v950, %v950
        %v1003 = vadd.f32 %v995, %v996
        %1004 = vadd.xlane.f32.xlu0 %v1003
        %v1005 = vpop.xlane.xlu0 %1004
        %v1006 = vadd.f32 %v997, %v998
        %1007 = vadd.xlane.f32.xlu0 %v1006
        %v1008 = vpop.xlane.xlu0 %1007
        %v1009 = vadd.f32 %v999, %v1000
        %1010 = vadd.xlane.f32.xlu0 %v1009
        %v1011 = vpop.xlane.xlu0 %1010
        %v1012 = vadd.f32 %v1001, %v1002
        %1013 = vadd.xlane.f32.xlu0 %v1012
        %v1014 = vpop.xlane.xlu0 %1013
        %v1015 = vadd.f32 %v668, %v1005
        %v1016 = vadd.f32 %v669, %v1008
        %v1017 = vadd.f32 %v670, %v1011
        %v1018 = vadd.f32 %v671, %v1014
        %v1019 = vld [vmem:[%s490] sm:$0xff]
        %v1020 = vld [vmem:[%s490 + $0x8] sm:$0xff]
        %v1021 = vld [vmem:[%s490 + $0x10] sm:$0xff]
        %v1022 = vld [vmem:[%s490 + $0x18] sm:$0xff]
        %v1023 = vld [vmem:[%s490 + $0x20] sm:$0x33]
        %v1024 = vld [vmem:[%s853] sm:$0xff]
        %v1025 = vld [vmem:[%s853 + $0x8] sm:$0xff]
        %v1026 = vld [vmem:[%s853 + $0x10] sm:$0xff]
        %v1027 = vld [vmem:[%s853 + $0x18] sm:$0xff]
        %v1028 = vld [vmem:[%s853 + $0x20] sm:$0x33]
        %v1034 = vunpack.c.l.b16 %v1024
        %v1035 = vunpack.c.h.b16 %v1024
        %v1036 = vunpack.c.l.b16 %v1025
        %v1037 = vunpack.c.h.b16 %v1025
        %v1038 = vunpack.c.l.b16 %v1026
        %v1039 = vunpack.c.h.b16 %v1026
        %v1040 = vunpack.c.l.b16 %v1027
        %v1041 = vunpack.c.h.b16 %v1027
        %v1042 = vunpack.c.l.b16 %v1028
        %v1043 = vunpack.c.h.b16 %v1028
        %v1044 = vpack.c.b16 %v1036, %v1034
        %v1045 = vpack.c.b16 %v1037, %v1035
        %v1046 = vpack.c.b16 %v1040, %v1038
        %v1047 = vpack.c.b16 %v1041, %v1039
        %v1048 = vpack.c.b16 %v1042, %v1042
        %v1049 = vpack.c.b16 %v1043, %v1043
        %v1055 = vsel %vm327, %v1048, 0
        %v1058 = vsel %vm327, %v1049, 0
        %1060 = vmatprep.subr.bf16.mxu0 %v1045
        %1061 = vmatpush1.bf16.msra.mxu0 %v1044
        %1062 = vmatprep.subr.bf16.mxu0 %v1047
        %1063 = vmatpush1.bf16.msra.mxu0 %v1046
        %1064 = vmatprep.subr.bf16.mxu0 %v1058
        %1065 = vmatpush1.bf16.msra.mxu0 %v1055
        %1066 = vmatprep.subr.bf16.mxu0 0
        %1067 = vmatpush1.bf16.msra.mxu0 0
        %1068 = vmatprep.subr.bf16.mxu0 0
        %1069 = vmatpush1.bf16.msra.mxu0 0
        %1070 = vmatprep.subr.bf16.mxu0 0
        %1071 = vmatpush1.bf16.msra.mxu0 0
        %1072 = vmatprep.subr.bf16.mxu0 0
        %1073 = vmatpush1.bf16.msra.mxu0 0
        %1074 = vmatprep.subr.bf16.mxu0 0
        %1075 = vmatpush1.bf16.msra.mxu0 0
        %1076 = vmatprep.subr.bf16.mxu0 0
        %1077 = vmatpush1.bf16.msra.mxu0 0
        %1078 = vmatprep.subr.bf16.mxu0 0
        %1079 = vmatpush1.bf16.msra.mxu0 0
        %1080 = vmatprep.subr.bf16.mxu0 0
        %1081 = vmatpush1.bf16.msra.mxu0 0
        %1082 = vmatprep.subr.bf16.mxu0 0
        %1083 = vmatpush1.bf16.msra.mxu0 0
        %1084 = vmatprep.subr.bf16.mxu0 0
        %1085 = vmatpush1.bf16.msra.mxu0 0
        %1086 = vmatprep.subr.bf16.mxu0 0
        %1087 = vmatpush1.bf16.msra.mxu0 0
        %1088 = vmatprep.subr.bf16.mxu0 0
        %1089 = vmatpush1.bf16.msra.mxu0 0
        %1090 = vmatprep.subr.bf16.mxu0 0
        %1091 = vmatpush1.bf16.msra.mxu0 0
        %1092 = vmatprep.mubr.bf16.mxu0 0
        %1093 = vmatmul.mubr.bf16.gmra.mrb[0].mxu0 %v322
        %v1094 = vpop.f32.mrb[0].mxu0
        %v1095 = vadd.f32 0.0, %v1094
        %v1096 = vpop.f32.mrb[0].mxu0
        %v1097 = vadd.f32 0.0, %v1096
        %v1098 = vpop.f32.mrb[0].mxu0
        %v1099 = vadd.f32 0.0, %v1098
        %v1100 = vpop.f32.mrb[0].mxu0
        %v1101 = vadd.f32 0.0, %v1100
        %1102 = vmatprep.mubr.bf16.mxu0 0
        %1103 = vmatmul.mubr.bf16.gmra.mrb[0].mxu0 %v325
        %v1104 = vpop.f32.mrb[0].mxu0
        %v1105 = vadd.f32 0.0, %v1104
        %v1106 = vpop.f32.mrb[0].mxu0
        %v1107 = vadd.f32 0.0, %v1106
        %v1108 = vpop.f32.mrb[0].mxu0
        %v1109 = vadd.f32 0.0, %v1108
        %v1110 = vpop.f32.mrb[0].mxu0
        %v1111 = vadd.f32 0.0, %v1110
        %1112 = vdwg.mxu0
        %v1118 = vunpack.c.l.b16 %v1019
        %v1119 = vunpack.c.h.b16 %v1019
        %v1120 = vunpack.c.l.b16 %v1020
        %v1121 = vunpack.c.h.b16 %v1020
        %v1122 = vunpack.c.l.b16 %v1021
        %v1123 = vunpack.c.h.b16 %v1021
        %v1124 = vunpack.c.l.b16 %v1022
        %v1125 = vunpack.c.h.b16 %v1022
        %v1126 = vunpack.c.l.b16 %v1023
        %v1127 = vunpack.c.h.b16 %v1023
        %v1128 = vpack.c.b16 %v1120, %v1118
        %v1129 = vpack.c.b16 %v1121, %v1119
        %v1130 = vpack.c.b16 %v1124, %v1122
        %v1131 = vpack.c.b16 %v1125, %v1123
        %v1132 = vpack.c.b16 %v1126, %v1126
        %v1133 = vpack.c.b16 %v1127, %v1127
        %v1139 = vsel %vm327, %v1132, 0
        %v1142 = vsel %vm327, %v1133, 0
        %1144 = vmatprep.subr.bf16.mxu0 %v1129
        %1145 = vmatpush1.bf16.msra.mxu0 %v1128
        %1146 = vmatprep.subr.bf16.mxu0 %v1131
        %1147 = vmatpush1.bf16.msra.mxu0 %v1130
        %1148 = vmatprep.subr.bf16.mxu0 %v1142
        %1149 = vmatpush1.bf16.msra.mxu0 %v1139
        %1150 = vmatprep.subr.bf16.mxu0 0
        %1151 = vmatpush1.bf16.msra.mxu0 0
        %1152 = vmatprep.subr.bf16.mxu0 0
        %1153 = vmatpush1.bf16.msra.mxu0 0
        %1154 = vmatprep.subr.bf16.mxu0 0
        %1155 = vmatpush1.bf16.msra.mxu0 0
        %1156 = vmatprep.subr.bf16.mxu0 0
        %1157 = vmatpush1.bf16.msra.mxu0 0
        %1158 = vmatprep.subr.bf16.mxu0 0
        %1159 = vmatpush1.bf16.msra.mxu0 0
        %1160 = vmatprep.subr.bf16.mxu0 0
        %1161 = vmatpush1.bf16.msra.mxu0 0
        %1162 = vmatprep.subr.bf16.mxu0 0
        %1163 = vmatpush1.bf16.msra.mxu0 0
        %1164 = vmatprep.subr.bf16.mxu0 0
        %1165 = vmatpush1.bf16.msra.mxu0 0
        %1166 = vmatprep.subr.bf16.mxu0 0
        %1167 = vmatpush1.bf16.msra.mxu0 0
        %1168 = vmatprep.subr.bf16.mxu0 0
        %1169 = vmatpush1.bf16.msra.mxu0 0
        %1170 = vmatprep.subr.bf16.mxu0 0
        %1171 = vmatpush1.bf16.msra.mxu0 0
        %1172 = vmatprep.subr.bf16.mxu0 0
        %1173 = vmatpush1.bf16.msra.mxu0 0
        %1174 = vmatprep.subr.bf16.mxu0 0
        %1175 = vmatpush1.bf16.msra.mxu0 0
        %1176 = vmatprep.mubr.bf16.mxu0 0
        %1177 = vmatmul.mubr.bf16.gmra.mrb[0].mxu0 %v423
        %v1178 = vpop.f32.mrb[0].mxu0
        %v1179 = vadd.f32 %v1095, %v1178
        %v1180 = vpop.f32.mrb[0].mxu0
        %v1181 = vadd.f32 %v1097, %v1180
        %v1182 = vpop.f32.mrb[0].mxu0
        %v1183 = vadd.f32 %v1099, %v1182
        %v1184 = vpop.f32.mrb[0].mxu0
        %v1185 = vadd.f32 %v1101, %v1184
        %1186 = vmatprep.mubr.bf16.mxu0 0
        %1187 = vmatmul.mubr.bf16.gmra.mrb[0].mxu0 %v426
        %v1188 = vpop.f32.mrb[0].mxu0
        %v1189 = vadd.f32 %v1105, %v1188
        %v1190 = vpop.f32.mrb[0].mxu0
        %v1191 = vadd.f32 %v1107, %v1190
        %v1192 = vpop.f32.mrb[0].mxu0
        %v1193 = vadd.f32 %v1109, %v1192
        %v1194 = vpop.f32.mrb[0].mxu0
        %v1195 = vadd.f32 %v1111, %v1194
        %1196 = vdwg.mxu0
        %s1197 = sadd.s32 %s253, 4
        %s1198 = smul.u32 %s1197, 10
        %s1199 = smul.addr %s1198, 4
        %s1200 = scalar_lea.vmem %s232, %s1199
        %v1201 = vld [vmem:[%s1200] sm:$0xff]
        %v1202 = vld [vmem:[%s1200 + $0x8] sm:$0xff]
        %v1203 = vld [vmem:[%s1200 + $0x10] sm:$0xff]
        %v1204 = vld [vmem:[%s1200 + $0x18] sm:$0xff]
        %v1205 = vld [vmem:[%s1200 + $0x20] sm:$0x33]
        %v1211 = vunpack.c.l.b16 %v1201
        %v1212 = vunpack.c.h.b16 %v1201
        %v1213 = vunpack.c.l.b16 %v1202
        %v1214 = vunpack.c.h.b16 %v1202
        %v1215 = vunpack.c.l.b16 %v1203
        %v1216 = vunpack.c.h.b16 %v1203
        %v1217 = vunpack.c.l.b16 %v1204
        %v1218 = vunpack.c.h.b16 %v1204
        %v1219 = vunpack.c.l.b16 %v1205
        %v1220 = vunpack.c.h.b16 %v1205
        %v1221 = vpack.c.b16 %v1213, %v1211
        %v1222 = vpack.c.b16 %v1214, %v1212
        %v1223 = vpack.c.b16 %v1217, %v1215
        %v1224 = vpack.c.b16 %v1218, %v1216
        %v1225 = vpack.c.b16 %v1219, %v1219
        %v1226 = vpack.c.b16 %v1220, %v1220
        %v1232 = vsel %vm327, %v1225, 0
        %v1235 = vsel %vm327, %v1226, 0
        %1237 = vmatprep.subr.bf16.mxu0 %v1222
        %1238 = vmatpush1.bf16.msra.mxu0 %v1221
        %1239 = vmatprep.subr.bf16.mxu0 %v1224
        %1240 = vmatpush1.bf16.msra.mxu0 %v1223
        %1241 = vmatprep.subr.bf16.mxu0 %v1235
        %1242 = vmatpush1.bf16.msra.mxu0 %v1232
        %1243 = vmatprep.subr.bf16.mxu0 0
        %1244 = vmatpush1.bf16.msra.mxu0 0
        %1245 = vmatprep.subr.bf16.mxu0 0
        %1246 = vmatpush1.bf16.msra.mxu0 0
        %1247 = vmatprep.subr.bf16.mxu0 0
        %1248 = vmatpush1.bf16.msra.mxu0 0
        %1249 = vmatprep.subr.bf16.mxu0 0
        %1250 = vmatpush1.bf16.msra.mxu0 0
        %1251 = vmatprep.subr.bf16.mxu0 0
        %1252 = vmatpush1.bf16.msra.mxu0 0
        %1253 = vmatprep.subr.bf16.mxu0 0
        %1254 = vmatpush1.bf16.msra.mxu0 0
        %1255 = vmatprep.subr.bf16.mxu0 0
        %1256 = vmatpush1.bf16.msra.mxu0 0
        %1257 = vmatprep.subr.bf16.mxu0 0
        %1258 = vmatpush1.bf16.msra.mxu0 0
        %1259 = vmatprep.subr.bf16.mxu0 0
        %1260 = vmatpush1.bf16.msra.mxu0 0
        %1261 = vmatprep.subr.bf16.mxu0 0
        %1262 = vmatpush1.bf16.msra.mxu0 0
        %1263 = vmatprep.subr.bf16.mxu0 0
        %1264 = vmatpush1.bf16.msra.mxu0 0
        %1265 = vmatprep.subr.bf16.mxu0 0
        %1266 = vmatpush1.bf16.msra.mxu0 0
        %1267 = vmatprep.subr.bf16.mxu0 0
        %1268 = vmatpush1.bf16.msra.mxu0 0
        %1269 = vmatprep.mubr.bf16.mxu0 0
        %1270 = vmatmul.mubr.bf16.gmra.mrb[0].mxu0 %v532
        %v1271 = vpop.f32.mrb[0].mxu0
        %v1272 = vadd.f32 0.0, %v1271
        %v1273 = vpop.f32.mrb[0].mxu0
        %v1274 = vadd.f32 0.0, %v1273
        %v1275 = vpop.f32.mrb[0].mxu0
        %v1276 = vadd.f32 0.0, %v1275
        %v1277 = vpop.f32.mrb[0].mxu0
        %v1278 = vadd.f32 0.0, %v1277
        %1279 = vmatprep.mubr.bf16.mxu0 0
        %1280 = vmatmul.mubr.bf16.gmra.mrb[0].mxu0 %v535
        %v1281 = vpop.f32.mrb[0].mxu0
        %v1282 = vadd.f32 0.0, %v1281
        %v1283 = vpop.f32.mrb[0].mxu0
        %v1284 = vadd.f32 0.0, %v1283
        %v1285 = vpop.f32.mrb[0].mxu0
        %v1286 = vadd.f32 0.0, %v1285
        %v1287 = vpop.f32.mrb[0].mxu0
        %v1288 = vadd.f32 0.0, %v1287
        %1289 = vdwg.mxu0
        %v1290 = vadd.f32 %v1179, %v1272
        %v1291 = vadd.f32 %v1181, %v1274
        %v1292 = vadd.f32 %v1183, %v1276
        %v1293 = vadd.f32 %v1185, %v1278
        %v1294 = vadd.f32 %v1189, %v1282
        %v1295 = vadd.f32 %v1191, %v1284
        %v1296 = vadd.f32 %v1193, %v1286
        %v1297 = vadd.f32 %v1195, %v1288
        %v1298 = vpack.c.bf16 %v1292, %v1290
        %v1299 = vpack.c.bf16 %v1293, %v1291
        %v1300 = vpack.c.bf16 %v1296, %v1294
        %v1301 = vpack.c.bf16 %v1297, %v1295
        %v1306 = vunpack.c.l.b16 %v1298
        %v1307 = vunpack.c.l.b16 %v1299
        %v1308 = vunpack.c.h.b16 %v1298
        %v1309 = vunpack.c.h.b16 %v1299
        %v1310 = vunpack.c.l.b16 %v1300
        %v1311 = vunpack.c.l.b16 %v1301
        %v1312 = vunpack.c.h.b16 %v1300
        %v1313 = vunpack.c.h.b16 %v1301
        %v1314 = vpack.c.b16 %v1307, %v1306
        %v1315 = vpack.c.b16 %v1309, %v1308
        %v1316 = vpack.c.b16 %v1311, %v1310
        %v1317 = vpack.c.b16 %v1313, %v1312
        %1322 = vst [vmem:[%s209 + $0x10] sm:$0xff] %v1314
        %1323 = vst [vmem:[%s209 + $0x50] sm:$0xff] %v1315
        %1324 = vst [vmem:[%s209 + $0x90] sm:$0xff] %v1316
        %1325 = vst [vmem:[%s209 + $0xd0] sm:$0xff] %v1317
        %v1326 = vadd.f32 %v1290, %v1291
        %1327 = vadd.xlane.f32.xlu0 %v1326
        %v1328 = vpop.xlane.xlu0 %1327
        %v1329 = vadd.f32 %v1292, %v1293
        %1330 = vadd.xlane.f32.xlu0 %v1329
        %v1331 = vpop.xlane.xlu0 %1330
        %v1332 = vadd.f32 %v1294, %v1295
        %1333 = vadd.xlane.f32.xlu0 %v1332
        %v1334 = vpop.xlane.xlu0 %1333
        %v1335 = vadd.f32 %v1296, %v1297
        %1336 = vadd.xlane.f32.xlu0 %v1335
        %v1337 = vpop.xlane.xlu0 %1336
        %v1338 = vadd.f32 %v991, %v1328
        %v1339 = vadd.f32 %v992, %v1331
        %v1340 = vadd.f32 %v993, %v1334
        %v1341 = vadd.f32 %v994, %v1337
        %v1342 = vmul.f32 %v1290, %v1290
        %v1343 = vmul.f32 %v1291, %v1291
        %v1344 = vmul.f32 %v1292, %v1292
        %v1345 = vmul.f32 %v1293, %v1293
        %v1346 = vmul.f32 %v1294, %v1294
        %v1347 = vmul.f32 %v1295, %v1295
        %v1348 = vmul.f32 %v1296, %v1296
        %v1349 = vmul.f32 %v1297, %v1297
        %v1350 = vadd.f32 %v1342, %v1343
        %1351 = vadd.xlane.f32.xlu0 %v1350
        %v1352 = vpop.xlane.xlu0 %1351
        %v1353 = vadd.f32 %v1344, %v1345
        %1354 = vadd.xlane.f32.xlu0 %v1353
        %v1355 = vpop.xlane.xlu0 %1354
        %v1356 = vadd.f32 %v1346, %v1347
        %1357 = vadd.xlane.f32.xlu0 %v1356
        %v1358 = vpop.xlane.xlu0 %1357
        %v1359 = vadd.f32 %v1348, %v1349
        %1360 = vadd.xlane.f32.xlu0 %v1359
        %v1361 = vpop.xlane.xlu0 %1360
        %v1362 = vadd.f32 %v1015, %v1352
        %v1363 = vadd.f32 %v1016, %v1355
        %v1364 = vadd.f32 %v1017, %v1358
        %v1365 = vadd.f32 %v1018, %v1361
        %v1366 = vld [vmem:[%s853] sm:$0xff]
        %v1367 = vld [vmem:[%s853 + $0x8] sm:$0xff]
        %v1368 = vld [vmem:[%s853 + $0x10] sm:$0xff]
        %v1369 = vld [vmem:[%s853 + $0x18] sm:$0xff]
        %v1370 = vld [vmem:[%s853 + $0x20] sm:$0x33]
        %v1371 = vld [vmem:[%s1200] sm:$0xff]
        %v1372 = vld [vmem:[%s1200 + $0x8] sm:$0xff]
        %v1373 = vld [vmem:[%s1200 + $0x10] sm:$0xff]
        %v1374 = vld [vmem:[%s1200 + $0x18] sm:$0xff]
        %v1375 = vld [vmem:[%s1200 + $0x20] sm:$0x33]
        %v1381 = vunpack.c.l.b16 %v1371
        %v1382 = vunpack.c.h.b16 %v1371
        %v1383 = vunpack.c.l.b16 %v1372
        %v1384 = vunpack.c.h.b16 %v1372
        %v1385 = vunpack.c.l.b16 %v1373
        %v1386 = vunpack.c.h.b16 %v1373
        %v1387 = vunpack.c.l.b16 %v1374
        %v1388 = vunpack.c.h.b16 %v1374
        %v1389 = vunpack.c.l.b16 %v1375
        %v1390 = vunpack.c.h.b16 %v1375
        %v1391 = vpack.c.b16 %v1383, %v1381
        %v1392 = vpack.c.b16 %v1384, %v1382
        %v1393 = vpack.c.b16 %v1387, %v1385
        %v1394 = vpack.c.b16 %v1388, %v1386
        %v1395 = vpack.c.b16 %v1389, %v1389
        %v1396 = vpack.c.b16 %v1390, %v1390
        %v1402 = vsel %vm327, %v1395, 0
        %v1405 = vsel %vm327, %v1396, 0
        %1407 = vmatprep.subr.bf16.mxu0 %v1392
        %1408 = vmatpush1.bf16.msra.mxu0 %v1391
        %1409 = vmatprep.subr.bf16.mxu0 %v1394
        %1410 = vmatpush1.bf16.msra.mxu0 %v1393
        %1411 = vmatprep.subr.bf16.mxu0 %v1405
        %1412 = vmatpush1.bf16.msra.mxu0 %v1402
        %1413 = vmatprep.subr.bf16.mxu0 0
        %1414 = vmatpush1.bf16.msra.mxu0 0
        %1415 = vmatprep.subr.bf16.mxu0 0
        %1416 = vmatpush1.bf16.msra.mxu0 0
        %1417 = vmatprep.subr.bf16.mxu0 0
        %1418 = vmatpush1.bf16.msra.mxu0 0
        %1419 = vmatprep.subr.bf16.mxu0 0
        %1420 = vmatpush1.bf16.msra.mxu0 0
        %1421 = vmatprep.subr.bf16.mxu0 0
        %1422 = vmatpush1.bf16.msra.mxu0 0
        %1423 = vmatprep.subr.bf16.mxu0 0
        %1424 = vmatpush1.bf16.msra.mxu0 0
        %1425 = vmatprep.subr.bf16.mxu0 0
        %1426 = vmatpush1.bf16.msra.mxu0 0
        %1427 = vmatprep.subr.bf16.mxu0 0
        %1428 = vmatpush1.bf16.msra.mxu0 0
        %1429 = vmatprep.subr.bf16.mxu0 0
        %1430 = vmatpush1.bf16.msra.mxu0 0
        %1431 = vmatprep.subr.bf16.mxu0 0
        %1432 = vmatpush1.bf16.msra.mxu0 0
        %1433 = vmatprep.subr.bf16.mxu0 0
        %1434 = vmatpush1.bf16.msra.mxu0 0
        %1435 = vmatprep.subr.bf16.mxu0 0
        %1436 = vmatpush1.bf16.msra.mxu0 0
        %1437 = vmatprep.subr.bf16.mxu0 0
        %1438 = vmatpush1.bf16.msra.mxu0 0
        %1439 = vmatprep.mubr.bf16.mxu0 0
        %1440 = vmatmul.mubr.bf16.gmra.mrb[0].mxu0 %v322
        %v1441 = vpop.f32.mrb[0].mxu0
        %v1442 = vadd.f32 0.0, %v1441
        %v1443 = vpop.f32.mrb[0].mxu0
        %v1444 = vadd.f32 0.0, %v1443
        %v1445 = vpop.f32.mrb[0].mxu0
        %v1446 = vadd.f32 0.0, %v1445
        %v1447 = vpop.f32.mrb[0].mxu0
        %v1448 = vadd.f32 0.0, %v1447
        %1449 = vmatprep.mubr.bf16.mxu0 0
        %1450 = vmatmul.mubr.bf16.gmra.mrb[0].mxu0 %v325
        %v1451 = vpop.f32.mrb[0].mxu0
        %v1452 = vadd.f32 0.0, %v1451
        %v1453 = vpop.f32.mrb[0].mxu0
        %v1454 = vadd.f32 0.0, %v1453
        %v1455 = vpop.f32.mrb[0].mxu0
        %v1456 = vadd.f32 0.0, %v1455
        %v1457 = vpop.f32.mrb[0].mxu0
        %v1458 = vadd.f32 0.0, %v1457
        %1459 = vdwg.mxu0
        %v1465 = vunpack.c.l.b16 %v1366
        %v1466 = vunpack.c.h.b16 %v1366
        %v1467 = vunpack.c.l.b16 %v1367
        %v1468 = vunpack.c.h.b16 %v1367
        %v1469 = vunpack.c.l.b16 %v1368
        %v1470 = vunpack.c.h.b16 %v1368
        %v1471 = vunpack.c.l.b16 %v1369
        %v1472 = vunpack.c.h.b16 %v1369
        %v1473 = vunpack.c.l.b16 %v1370
        %v1474 = vunpack.c.h.b16 %v1370
        %v1475 = vpack.c.b16 %v1467, %v1465
        %v1476 = vpack.c.b16 %v1468, %v1466
        %v1477 = vpack.c.b16 %v1471, %v1469
        %v1478 = vpack.c.b16 %v1472, %v1470
        %v1479 = vpack.c.b16 %v1473, %v1473
        %v1480 = vpack.c.b16 %v1474, %v1474
        %v1486 = vsel %vm327, %v1479, 0
        %v1489 = vsel %vm327, %v1480, 0
        %1491 = vmatprep.subr.bf16.mxu0 %v1476
        %1492 = vmatpush1.bf16.msra.mxu0 %v1475
        %1493 = vmatprep.subr.bf16.mxu0 %v1478
        %1494 = vmatpush1.bf16.msra.mxu0 %v1477
        %1495 = vmatprep.subr.bf16.mxu0 %v1489
        %1496 = vmatpush1.bf16.msra.mxu0 %v1486
        %1497 = vmatprep.subr.bf16.mxu0 0
        %1498 = vmatpush1.bf16.msra.mxu0 0
        %1499 = vmatprep.subr.bf16.mxu0 0
        %1500 = vmatpush1.bf16.msra.mxu0 0
        %1501 = vmatprep.subr.bf16.mxu0 0
        %1502 = vmatpush1.bf16.msra.mxu0 0
        %1503 = vmatprep.subr.bf16.mxu0 0
        %1504 = vmatpush1.bf16.msra.mxu0 0
        %1505 = vmatprep.subr.bf16.mxu0 0
        %1506 = vmatpush1.bf16.msra.mxu0 0
        %1507 = vmatprep.subr.bf16.mxu0 0
        %1508 = vmatpush1.bf16.msra.mxu0 0
        %1509 = vmatprep.subr.bf16.mxu0 0
        %1510 = vmatpush1.bf16.msra.mxu0 0
        %1511 = vmatprep.subr.bf16.mxu0 0
        %1512 = vmatpush1.bf16.msra.mxu0 0
        %1513 = vmatprep.subr.bf16.mxu0 0
        %1514 = vmatpush1.bf16.msra.mxu0 0
        %1515 = vmatprep.subr.bf16.mxu0 0
        %1516 = vmatpush1.bf16.msra.mxu0 0
        %1517 = vmatprep.subr.bf16.mxu0 0
        %1518 = vmatpush1.bf16.msra.mxu0 0
        %1519 = vmatprep.subr.bf16.mxu0 0
        %1520 = vmatpush1.bf16.msra.mxu0 0
        %1521 = vmatprep.subr.bf16.mxu0 0
        %1522 = vmatpush1.bf16.msra.mxu0 0
        %1523 = vmatprep.mubr.bf16.mxu0 0
        %1524 = vmatmul.mubr.bf16.gmra.mrb[0].mxu0 %v423
        %v1525 = vpop.f32.mrb[0].mxu0
        %v1526 = vadd.f32 %v1442, %v1525
        %v1527 = vpop.f32.mrb[0].mxu0
        %v1528 = vadd.f32 %v1444, %v1527
        %v1529 = vpop.f32.mrb[0].mxu0
        %v1530 = vadd.f32 %v1446, %v1529
        %v1531 = vpop.f32.mrb[0].mxu0
        %v1532 = vadd.f32 %v1448, %v1531
        %1533 = vmatprep.mubr.bf16.mxu0 0
        %1534 = vmatmul.mubr.bf16.gmra.mrb[0].mxu0 %v426
        %v1535 = vpop.f32.mrb[0].mxu0
        %v1536 = vadd.f32 %v1452, %v1535
        %v1537 = vpop.f32.mrb[0].mxu0
        %v1538 = vadd.f32 %v1454, %v1537
        %v1539 = vpop.f32.mrb[0].mxu0
        %v1540 = vadd.f32 %v1456, %v1539
        %v1541 = vpop.f32.mrb[0].mxu0
        %v1542 = vadd.f32 %v1458, %v1541
        %1543 = vdwg.mxu0
        %s1544 = sadd.s32 %s253, 5
        %s1545 = smul.u32 %s1544, 10
        %s1546 = smul.addr %s1545, 4
        %s1547 = scalar_lea.vmem %s232, %s1546
        %v1548 = vld [vmem:[%s1547] sm:$0xff]
        %v1549 = vld [vmem:[%s1547 + $0x8] sm:$0xff]
        %v1550 = vld [vmem:[%s1547 + $0x10] sm:$0xff]
        %v1551 = vld [vmem:[%s1547 + $0x18] sm:$0xff]
        %v1552 = vld [vmem:[%s1547 + $0x20] sm:$0x33]
        %v1558 = vunpack.c.l.b16 %v1548
        %v1559 = vunpack.c.h.b16 %v1548
        %v1560 = vunpack.c.l.b16 %v1549
        %v1561 = vunpack.c.h.b16 %v1549
        %v1562 = vunpack.c.l.b16 %v1550
        %v1563 = vunpack.c.h.b16 %v1550
        %v1564 = vunpack.c.l.b16 %v1551
        %v1565 = vunpack.c.h.b16 %v1551
        %v1566 = vunpack.c.l.b16 %v1552
        %v1567 = vunpack.c.h.b16 %v1552
        %v1568 = vpack.c.b16 %v1560, %v1558
        %v1569 = vpack.c.b16 %v1561, %v1559
        %v1570 = vpack.c.b16 %v1564, %v1562
        %v1571 = vpack.c.b16 %v1565, %v1563
        %v1572 = vpack.c.b16 %v1566, %v1566
        %v1573 = vpack.c.b16 %v1567, %v1567
        %v1579 = vsel %vm327, %v1572, 0
        %v1582 = vsel %vm327, %v1573, 0
        %1584 = vmatprep.subr.bf16.mxu0 %v1569
        %1585 = vmatpush1.bf16.msra.mxu0 %v1568
        %1586 = vmatprep.subr.bf16.mxu0 %v1571
        %1587 = vmatpush1.bf16.msra.mxu0 %v1570
        %1588 = vmatprep.subr.bf16.mxu0 %v1582
        %1589 = vmatpush1.bf16.msra.mxu0 %v1579
        %1590 = vmatprep.subr.bf16.mxu0 0
        %1591 = vmatpush1.bf16.msra.mxu0 0
        %1592 = vmatprep.subr.bf16.mxu0 0
        %1593 = vmatpush1.bf16.msra.mxu0 0
        %1594 = vmatprep.subr.bf16.mxu0 0
        %1595 = vmatpush1.bf16.msra.mxu0 0
        %1596 = vmatprep.subr.bf16.mxu0 0
        %1597 = vmatpush1.bf16.msra.mxu0 0
        %1598 = vmatprep.subr.bf16.mxu0 0
        %1599 = vmatpush1.bf16.msra.mxu0 0
        %1600 = vmatprep.subr.bf16.mxu0 0
        %1601 = vmatpush1.bf16.msra.mxu0 0
        %1602 = vmatprep.subr.bf16.mxu0 0
        %1603 = vmatpush1.bf16.msra.mxu0 0
        %1604 = vmatprep.subr.bf16.mxu0 0
        %1605 = vmatpush1.bf16.msra.mxu0 0
        %1606 = vmatprep.subr.bf16.mxu0 0
        %1607 = vmatpush1.bf16.msra.mxu0 0
        %1608 = vmatprep.subr.bf16.mxu0 0
        %1609 = vmatpush1.bf16.msra.mxu0 0
        %1610 = vmatprep.subr.bf16.mxu0 0
        %1611 = vmatpush1.bf16.msra.mxu0 0
        %1612 = vmatprep.subr.bf16.mxu0 0
        %1613 = vmatpush1.bf16.msra.mxu0 0
        %1614 = vmatprep.subr.bf16.mxu0 0
        %1615 = vmatpush1.bf16.msra.mxu0 0
        %1616 = vmatprep.mubr.bf16.mxu0 0
        %1617 = vmatmul.mubr.bf16.gmra.mrb[0].mxu0 %v532
        %v1618 = vpop.f32.mrb[0].mxu0
        %v1619 = vadd.f32 0.0, %v1618
        %v1620 = vpop.f32.mrb[0].mxu0
        %v1621 = vadd.f32 0.0, %v1620
        %v1622 = vpop.f32.mrb[0].mxu0
        %v1623 = vadd.f32 0.0, %v1622
        %v1624 = vpop.f32.mrb[0].mxu0
        %v1625 = vadd.f32 0.0, %v1624
        %1626 = vmatprep.mubr.bf16.mxu0 0
        %1627 = vmatmul.mubr.bf16.gmra.mrb[0].mxu0 %v535
        %v1628 = vpop.f32.mrb[0].mxu0
        %v1629 = vadd.f32 0.0, %v1628
        %v1630 = vpop.f32.mrb[0].mxu0
        %v1631 = vadd.f32 0.0, %v1630
        %v1632 = vpop.f32.mrb[0].mxu0
        %v1633 = vadd.f32 0.0, %v1632
        %v1634 = vpop.f32.mrb[0].mxu0
        %v1635 = vadd.f32 0.0, %v1634
        %1636 = vdwg.mxu0
        %v1637 = vadd.f32 %v1526, %v1619
        %v1638 = vadd.f32 %v1528, %v1621
        %v1639 = vadd.f32 %v1530, %v1623
        %v1640 = vadd.f32 %v1532, %v1625
        %v1641 = vadd.f32 %v1536, %v1629
        %v1642 = vadd.f32 %v1538, %v1631
        %v1643 = vadd.f32 %v1540, %v1633
        %v1644 = vadd.f32 %v1542, %v1635
        %v1645 = vpack.c.bf16 %v1639, %v1637
        %v1646 = vpack.c.bf16 %v1640, %v1638
        %v1647 = vpack.c.bf16 %v1643, %v1641
        %v1648 = vpack.c.bf16 %v1644, %v1642
        %v1653 = vunpack.c.l.b16 %v1645
        %v1654 = vunpack.c.l.b16 %v1646
        %v1655 = vunpack.c.h.b16 %v1645
        %v1656 = vunpack.c.h.b16 %v1646
        %v1657 = vunpack.c.l.b16 %v1647
        %v1658 = vunpack.c.l.b16 %v1648
        %v1659 = vunpack.c.h.b16 %v1647
        %v1660 = vunpack.c.h.b16 %v1648
        %v1661 = vpack.c.b16 %v1654, %v1653
        %v1662 = vpack.c.b16 %v1656, %v1655
        %v1663 = vpack.c.b16 %v1658, %v1657
        %v1664 = vpack.c.b16 %v1660, %v1659
        %1669 = vst [vmem:[%s209 + $0x18] sm:$0xff] %v1661
        %1670 = vst [vmem:[%s209 + $0x58] sm:$0xff] %v1662
        %1671 = vst [vmem:[%s209 + $0x98] sm:$0xff] %v1663
        %1672 = vst [vmem:[%s209 + $0xd8] sm:$0xff] %v1664
        %v1673 = vadd.f32 %v1637, %v1638
        %1674 = vadd.xlane.f32.xlu0 %v1673
        %v1675 = vpop.xlane.xlu0 %1674
        %v1676 = vadd.f32 %v1639, %v1640
        %1677 = vadd.xlane.f32.xlu0 %v1676
        %v1678 = vpop.xlane.xlu0 %1677
        %v1679 = vadd.f32 %v1641, %v1642
        %1680 = vadd.xlane.f32.xlu0 %v1679
        %v1681 = vpop.xlane.xlu0 %1680
        %v1682 = vadd.f32 %v1643, %v1644
        %1683 = vadd.xlane.f32.xlu0 %v1682
        %v1684 = vpop.xlane.xlu0 %1683
        %v1685 = vadd.f32 %v1338, %v1675
        %v1686 = vadd.f32 %v1339, %v1678
        %v1687 = vadd.f32 %v1340, %v1681
        %v1688 = vadd.f32 %v1341, %v1684
        %v1689 = vmul.f32 %v1637, %v1637
        %v1690 = vmul.f32 %v1638, %v1638
        %v1691 = vmul.f32 %v1639, %v1639
        %v1692 = vmul.f32 %v1640, %v1640
        %v1693 = vmul.f32 %v1641, %v1641
        %v1694 = vmul.f32 %v1642, %v1642
        %v1695 = vmul.f32 %v1643, %v1643
        %v1696 = vmul.f32 %v1644, %v1644
        %v1697 = vadd.f32 %v1689, %v1690
        %1698 = vadd.xlane.f32.xlu0 %v1697
        %v1699 = vpop.xlane.xlu0 %1698
        %v1700 = vadd.f32 %v1691, %v1692
        %1701 = vadd.xlane.f32.xlu0 %v1700
        %v1702 = vpop.xlane.xlu0 %1701
        %v1703 = vadd.f32 %v1693, %v1694
        %1704 = vadd.xlane.f32.xlu0 %v1703
        %v1705 = vpop.xlane.xlu0 %1704
        %v1706 = vadd.f32 %v1695, %v1696
        %1707 = vadd.xlane.f32.xlu0 %v1706
        %v1708 = vpop.xlane.xlu0 %1707
        %v1709 = vadd.f32 %v1362, %v1699
        %v1710 = vadd.f32 %v1363, %v1702
        %v1711 = vadd.f32 %v1364, %v1705
        %v1712 = vadd.f32 %v1365, %v1708
        %v1713 = vld [vmem:[%s1200] sm:$0xff]
        %v1714 = vld [vmem:[%s1200 + $0x8] sm:$0xff]
        %v1715 = vld [vmem:[%s1200 + $0x10] sm:$0xff]
        %v1716 = vld [vmem:[%s1200 + $0x18] sm:$0xff]
        %v1717 = vld [vmem:[%s1200 + $0x20] sm:$0x33]
        %v1718 = vld [vmem:[%s1547] sm:$0xff]
        %v1719 = vld [vmem:[%s1547 + $0x8] sm:$0xff]
        %v1720 = vld [vmem:[%s1547 + $0x10] sm:$0xff]
        %v1721 = vld [vmem:[%s1547 + $0x18] sm:$0xff]
        %v1722 = vld [vmem:[%s1547 + $0x20] sm:$0x33]
        %v1728 = vunpack.c.l.b16 %v1718
        %v1729 = vunpack.c.h.b16 %v1718
        %v1730 = vunpack.c.l.b16 %v1719
        %v1731 = vunpack.c.h.b16 %v1719
        %v1732 = vunpack.c.l.b16 %v1720
        %v1733 = vunpack.c.h.b16 %v1720
        %v1734 = vunpack.c.l.b16 %v1721
        %v1735 = vunpack.c.h.b16 %v1721
        %v1736 = vunpack.c.l.b16 %v1722
        %v1737 = vunpack.c.h.b16 %v1722
        %v1738 = vpack.c.b16 %v1730, %v1728
        %v1739 = vpack.c.b16 %v1731, %v1729
        %v1740 = vpack.c.b16 %v1734, %v1732
        %v1741 = vpack.c.b16 %v1735, %v1733
        %v1742 = vpack.c.b16 %v1736, %v1736
        %v1743 = vpack.c.b16 %v1737, %v1737
        %v1749 = vsel %vm327, %v1742, 0
        %v1752 = vsel %vm327, %v1743, 0
        %1754 = vmatprep.subr.bf16.mxu0 %v1739
        %1755 = vmatpush1.bf16.msra.mxu0 %v1738
        %1756 = vmatprep.subr.bf16.mxu0 %v1741
        %1757 = vmatpush1.bf16.msra.mxu0 %v1740
        %1758 = vmatprep.subr.bf16.mxu0 %v1752
        %1759 = vmatpush1.bf16.msra.mxu0 %v1749
        %1760 = vmatprep.subr.bf16.mxu0 0
        %1761 = vmatpush1.bf16.msra.mxu0 0
        %1762 = vmatprep.subr.bf16.mxu0 0
        %1763 = vmatpush1.bf16.msra.mxu0 0
        %1764 = vmatprep.subr.bf16.mxu0 0
        %1765 = vmatpush1.bf16.msra.mxu0 0
        %1766 = vmatprep.subr.bf16.mxu0 0
        %1767 = vmatpush1.bf16.msra.mxu0 0
        %1768 = vmatprep.subr.bf16.mxu0 0
        %1769 = vmatpush1.bf16.msra.mxu0 0
        %1770 = vmatprep.subr.bf16.mxu0 0
        %1771 = vmatpush1.bf16.msra.mxu0 0
        %1772 = vmatprep.subr.bf16.mxu0 0
        %1773 = vmatpush1.bf16.msra.mxu0 0
        %1774 = vmatprep.subr.bf16.mxu0 0
        %1775 = vmatpush1.bf16.msra.mxu0 0
        %1776 = vmatprep.subr.bf16.mxu0 0
        %1777 = vmatpush1.bf16.msra.mxu0 0
        %1778 = vmatprep.subr.bf16.mxu0 0
        %1779 = vmatpush1.bf16.msra.mxu0 0
        %1780 = vmatprep.subr.bf16.mxu0 0
        %1781 = vmatpush1.bf16.msra.mxu0 0
        %1782 = vmatprep.subr.bf16.mxu0 0
        %1783 = vmatpush1.bf16.msra.mxu0 0
        %1784 = vmatprep.subr.bf16.mxu0 0
        %1785 = vmatpush1.bf16.msra.mxu0 0
        %1786 = vmatprep.mubr.bf16.mxu0 0
        %1787 = vmatmul.mubr.bf16.gmra.mrb[0].mxu0 %v322
        %v1788 = vpop.f32.mrb[0].mxu0
        %v1789 = vadd.f32 0.0, %v1788
        %v1790 = vpop.f32.mrb[0].mxu0
        %v1791 = vadd.f32 0.0, %v1790
        %v1792 = vpop.f32.mrb[0].mxu0
        %v1793 = vadd.f32 0.0, %v1792
        %v1794 = vpop.f32.mrb[0].mxu0
        %v1795 = vadd.f32 0.0, %v1794
        %1796 = vmatprep.mubr.bf16.mxu0 0
        %1797 = vmatmul.mubr.bf16.gmra.mrb[0].mxu0 %v325
        %v1798 = vpop.f32.mrb[0].mxu0
        %v1799 = vadd.f32 0.0, %v1798
        %v1800 = vpop.f32.mrb[0].mxu0
        %v1801 = vadd.f32 0.0, %v1800
        %v1802 = vpop.f32.mrb[0].mxu0
        %v1803 = vadd.f32 0.0, %v1802
        %v1804 = vpop.f32.mrb[0].mxu0
        %v1805 = vadd.f32 0.0, %v1804
        %1806 = vdwg.mxu0
        %v1812 = vunpack.c.l.b16 %v1713
        %v1813 = vunpack.c.h.b16 %v1713
        %v1814 = vunpack.c.l.b16 %v1714
        %v1815 = vunpack.c.h.b16 %v1714
        %v1816 = vunpack.c.l.b16 %v1715
        %v1817 = vunpack.c.h.b16 %v1715
        %v1818 = vunpack.c.l.b16 %v1716
        %v1819 = vunpack.c.h.b16 %v1716
        %v1820 = vunpack.c.l.b16 %v1717
        %v1821 = vunpack.c.h.b16 %v1717
        %v1822 = vpack.c.b16 %v1814, %v1812
        %v1823 = vpack.c.b16 %v1815, %v1813
        %v1824 = vpack.c.b16 %v1818, %v1816
        %v1825 = vpack.c.b16 %v1819, %v1817
        %v1826 = vpack.c.b16 %v1820, %v1820
        %v1827 = vpack.c.b16 %v1821, %v1821
        %v1833 = vsel %vm327, %v1826, 0
        %v1836 = vsel %vm327, %v1827, 0
        %1838 = vmatprep.subr.bf16.mxu0 %v1823
        %1839 = vmatpush1.bf16.msra.mxu0 %v1822
        %1840 = vmatprep.subr.bf16.mxu0 %v1825
        %1841 = vmatpush1.bf16.msra.mxu0 %v1824
        %1842 = vmatprep.subr.bf16.mxu0 %v1836
        %1843 = vmatpush1.bf16.msra.mxu0 %v1833
        %1844 = vmatprep.subr.bf16.mxu0 0
        %1845 = vmatpush1.bf16.msra.mxu0 0
        %1846 = vmatprep.subr.bf16.mxu0 0
        %1847 = vmatpush1.bf16.msra.mxu0 0
        %1848 = vmatprep.subr.bf16.mxu0 0
        %1849 = vmatpush1.bf16.msra.mxu0 0
        %1850 = vmatprep.subr.bf16.mxu0 0
        %1851 = vmatpush1.bf16.msra.mxu0 0
        %1852 = vmatprep.subr.bf16.mxu0 0
        %1853 = vmatpush1.bf16.msra.mxu0 0
        %1854 = vmatprep.subr.bf16.mxu0 0
        %1855 = vmatpush1.bf16.msra.mxu0 0
        %1856 = vmatprep.subr.bf16.mxu0 0
        %1857 = vmatpush1.bf16.msra.mxu0 0
        %1858 = vmatprep.subr.bf16.mxu0 0
        %1859 = vmatpush1.bf16.msra.mxu0 0
        %1860 = vmatprep.subr.bf16.mxu0 0
        %1861 = vmatpush1.bf16.msra.mxu0 0
        %1862 = vmatprep.subr.bf16.mxu0 0
        %1863 = vmatpush1.bf16.msra.mxu0 0
        %1864 = vmatprep.subr.bf16.mxu0 0
        %1865 = vmatpush1.bf16.msra.mxu0 0
        %1866 = vmatprep.subr.bf16.mxu0 0
        %1867 = vmatpush1.bf16.msra.mxu0 0
        %1868 = vmatprep.subr.bf16.mxu0 0
        %1869 = vmatpush1.bf16.msra.mxu0 0
        %1870 = vmatprep.mubr.bf16.mxu0 0
        %1871 = vmatmul.mubr.bf16.gmra.mrb[0].mxu0 %v423
        %v1872 = vpop.f32.mrb[0].mxu0
        %v1873 = vadd.f32 %v1789, %v1872
        %v1874 = vpop.f32.mrb[0].mxu0
        %v1875 = vadd.f32 %v1791, %v1874
        %v1876 = vpop.f32.mrb[0].mxu0
        %v1877 = vadd.f32 %v1793, %v1876
        %v1878 = vpop.f32.mrb[0].mxu0
        %v1879 = vadd.f32 %v1795, %v1878
        %1880 = vmatprep.mubr.bf16.mxu0 0
        %1881 = vmatmul.mubr.bf16.gmra.mrb[0].mxu0 %v426
        %v1882 = vpop.f32.mrb[0].mxu0
        %v1883 = vadd.f32 %v1799, %v1882
        %v1884 = vpop.f32.mrb[0].mxu0
        %v1885 = vadd.f32 %v1801, %v1884
        %v1886 = vpop.f32.mrb[0].mxu0
        %v1887 = vadd.f32 %v1803, %v1886
        %v1888 = vpop.f32.mrb[0].mxu0
        %v1889 = vadd.f32 %v1805, %v1888
        %1890 = vdwg.mxu0
        %s1891 = sadd.s32 %s253, 6
        %s1892 = smul.u32 %s1891, 10
        %s1893 = smul.addr %s1892, 4
        %s1894 = scalar_lea.vmem %s232, %s1893
        %v1895 = vld [vmem:[%s1894] sm:$0xff]
        %v1896 = vld [vmem:[%s1894 + $0x8] sm:$0xff]
        %v1897 = vld [vmem:[%s1894 + $0x10] sm:$0xff]
        %v1898 = vld [vmem:[%s1894 + $0x18] sm:$0xff]
        %v1899 = vld [vmem:[%s1894 + $0x20] sm:$0x33]
        %v1905 = vunpack.c.l.b16 %v1895
        %v1906 = vunpack.c.h.b16 %v1895
        %v1907 = vunpack.c.l.b16 %v1896
        %v1908 = vunpack.c.h.b16 %v1896
        %v1909 = vunpack.c.l.b16 %v1897
        %v1910 = vunpack.c.h.b16 %v1897
        %v1911 = vunpack.c.l.b16 %v1898
        %v1912 = vunpack.c.h.b16 %v1898
        %v1913 = vunpack.c.l.b16 %v1899
        %v1914 = vunpack.c.h.b16 %v1899
        %v1915 = vpack.c.b16 %v1907, %v1905
        %v1916 = vpack.c.b16 %v1908, %v1906
        %v1917 = vpack.c.b16 %v1911, %v1909
        %v1918 = vpack.c.b16 %v1912, %v1910
        %v1919 = vpack.c.b16 %v1913, %v1913
        %v1920 = vpack.c.b16 %v1914, %v1914
        %v1926 = vsel %vm327, %v1919, 0
        %v1929 = vsel %vm327, %v1920, 0
        %1931 = vmatprep.subr.bf16.mxu0 %v1916
        %1932 = vmatpush1.bf16.msra.mxu0 %v1915
        %1933 = vmatprep.subr.bf16.mxu0 %v1918
        %1934 = vmatpush1.bf16.msra.mxu0 %v1917
        %1935 = vmatprep.subr.bf16.mxu0 %v1929
        %1936 = vmatpush1.bf16.msra.mxu0 %v1926
        %1937 = vmatprep.subr.bf16.mxu0 0
        %1938 = vmatpush1.bf16.msra.mxu0 0
        %1939 = vmatprep.subr.bf16.mxu0 0
        %1940 = vmatpush1.bf16.msra.mxu0 0
        %1941 = vmatprep.subr.bf16.mxu0 0
        %1942 = vmatpush1.bf16.msra.mxu0 0
        %1943 = vmatprep.subr.bf16.mxu0 0
        %1944 = vmatpush1.bf16.msra.mxu0 0
        %1945 = vmatprep.subr.bf16.mxu0 0
        %1946 = vmatpush1.bf16.msra.mxu0 0
        %1947 = vmatprep.subr.bf16.mxu0 0
        %1948 = vmatpush1.bf16.msra.mxu0 0
        %1949 = vmatprep.subr.bf16.mxu0 0
        %1950 = vmatpush1.bf16.msra.mxu0 0
        %1951 = vmatprep.subr.bf16.mxu0 0
        %1952 = vmatpush1.bf16.msra.mxu0 0
        %1953 = vmatprep.subr.bf16.mxu0 0
        %1954 = vmatpush1.bf16.msra.mxu0 0
        %1955 = vmatprep.subr.bf16.mxu0 0
        %1956 = vmatpush1.bf16.msra.mxu0 0
        %1957 = vmatprep.subr.bf16.mxu0 0
        %1958 = vmatpush1.bf16.msra.mxu0 0
        %1959 = vmatprep.subr.bf16.mxu0 0
        %1960 = vmatpush1.bf16.msra.mxu0 0
        %1961 = vmatprep.subr.bf16.mxu0 0
        %1962 = vmatpush1.bf16.msra.mxu0 0
        %1963 = vmatprep.mubr.bf16.mxu0 0
        %1964 = vmatmul.mubr.bf16.gmra.mrb[0].mxu0 %v532
        %v1965 = vpop.f32.mrb[0].mxu0
        %v1966 = vadd.f32 0.0, %v1965
        %v1967 = vpop.f32.mrb[0].mxu0
        %v1968 = vadd.f32 0.0, %v1967
        %v1969 = vpop.f32.mrb[0].mxu0
        %v1970 = vadd.f32 0.0, %v1969
        %v1971 = vpop.f32.mrb[0].mxu0
        %v1972 = vadd.f32 0.0, %v1971
        %1973 = vmatprep.mubr.bf16.mxu0 0
        %1974 = vmatmul.mubr.bf16.gmra.mrb[0].mxu0 %v535
        %v1975 = vpop.f32.mrb[0].mxu0
        %v1976 = vadd.f32 0.0, %v1975
        %v1977 = vpop.f32.mrb[0].mxu0
        %v1978 = vadd.f32 0.0, %v1977
        %v1979 = vpop.f32.mrb[0].mxu0
        %v1980 = vadd.f32 0.0, %v1979
        %v1981 = vpop.f32.mrb[0].mxu0
        %v1982 = vadd.f32 0.0, %v1981
        %1983 = vdwg.mxu0
        %v1984 = vadd.f32 %v1873, %v1966
        %v1985 = vadd.f32 %v1875, %v1968
        %v1986 = vadd.f32 %v1877, %v1970
        %v1987 = vadd.f32 %v1879, %v1972
        %v1988 = vadd.f32 %v1883, %v1976
        %v1989 = vadd.f32 %v1885, %v1978
        %v1990 = vadd.f32 %v1887, %v1980
        %v1991 = vadd.f32 %v1889, %v1982
        %v1992 = vpack.c.bf16 %v1986, %v1984
        %v1993 = vpack.c.bf16 %v1987, %v1985
        %v1994 = vpack.c.bf16 %v1990, %v1988
        %v1995 = vpack.c.bf16 %v1991, %v1989
        %v2000 = vunpack.c.l.b16 %v1992
        %v2001 = vunpack.c.l.b16 %v1993
        %v2002 = vunpack.c.h.b16 %v1992
        %v2003 = vunpack.c.h.b16 %v1993
        %v2004 = vunpack.c.l.b16 %v1994
        %v2005 = vunpack.c.l.b16 %v1995
        %v2006 = vunpack.c.h.b16 %v1994
        %v2007 = vunpack.c.h.b16 %v1995
        %v2008 = vpack.c.b16 %v2001, %v2000
        %v2009 = vpack.c.b16 %v2003, %v2002
        %v2010 = vpack.c.b16 %v2005, %v2004
        %v2011 = vpack.c.b16 %v2007, %v2006
        %2016 = vst [vmem:[%s209 + $0x20] sm:$0xff] %v2008
        %2017 = vst [vmem:[%s209 + $0x60] sm:$0xff] %v2009
        %2018 = vst [vmem:[%s209 + $0xa0] sm:$0xff] %v2010
        %2019 = vst [vmem:[%s209 + $0xe0] sm:$0xff] %v2011
        %v2020 = vadd.f32 %v1984, %v1985
        %2021 = vadd.xlane.f32.xlu0 %v2020
        %v2022 = vpop.xlane.xlu0 %2021
        %v2023 = vadd.f32 %v1986, %v1987
        %2024 = vadd.xlane.f32.xlu0 %v2023
        %v2025 = vpop.xlane.xlu0 %2024
        %v2026 = vadd.f32 %v1988, %v1989
        %2027 = vadd.xlane.f32.xlu0 %v2026
        %v2028 = vpop.xlane.xlu0 %2027
        %v2029 = vadd.f32 %v1990, %v1991
        %2030 = vadd.xlane.f32.xlu0 %v2029
        %v2031 = vpop.xlane.xlu0 %2030
        %v2032 = vadd.f32 %v1685, %v2022
        %v2033 = vadd.f32 %v1686, %v2025
        %v2034 = vadd.f32 %v1687, %v2028
        %v2035 = vadd.f32 %v1688, %v2031
        %v2036 = vmul.f32 %v1984, %v1984
        %v2037 = vmul.f32 %v1985, %v1985
        %v2038 = vmul.f32 %v1986, %v1986
        %v2039 = vmul.f32 %v1987, %v1987
        %v2040 = vmul.f32 %v1988, %v1988
        %v2041 = vmul.f32 %v1989, %v1989
        %v2042 = vmul.f32 %v1990, %v1990
        %v2043 = vmul.f32 %v1991, %v1991
        %v2044 = vadd.f32 %v2036, %v2037
        %2045 = vadd.xlane.f32.xlu0 %v2044
        %v2046 = vpop.xlane.xlu0 %2045
        %v2047 = vadd.f32 %v2038, %v2039
        %2048 = vadd.xlane.f32.xlu0 %v2047
        %v2049 = vpop.xlane.xlu0 %2048
        %v2050 = vadd.f32 %v2040, %v2041
        %2051 = vadd.xlane.f32.xlu0 %v2050
        %v2052 = vpop.xlane.xlu0 %2051
        %v2053 = vadd.f32 %v2042, %v2043
        %2054 = vadd.xlane.f32.xlu0 %v2053
        %v2055 = vpop.xlane.xlu0 %2054
        %v2056 = vadd.f32 %v1709, %v2046
        %v2057 = vadd.f32 %v1710, %v2049
        %v2058 = vadd.f32 %v1711, %v2052
        %v2059 = vadd.f32 %v1712, %v2055
        %v2060 = vld [vmem:[%s1547] sm:$0xff]
        %v2061 = vld [vmem:[%s1547 + $0x8] sm:$0xff]
        %v2062 = vld [vmem:[%s1547 + $0x10] sm:$0xff]
        %v2063 = vld [vmem:[%s1547 + $0x18] sm:$0xff]
        %v2064 = vld [vmem:[%s1547 + $0x20] sm:$0x33]
        %v2065 = vld [vmem:[%s1894] sm:$0xff]
        %v2066 = vld [vmem:[%s1894 + $0x8] sm:$0xff]
        %v2067 = vld [vmem:[%s1894 + $0x10] sm:$0xff]
        %v2068 = vld [vmem:[%s1894 + $0x18] sm:$0xff]
        %v2069 = vld [vmem:[%s1894 + $0x20] sm:$0x33]
        %v2075 = vunpack.c.l.b16 %v2065
        %v2076 = vunpack.c.h.b16 %v2065
        %v2077 = vunpack.c.l.b16 %v2066
        %v2078 = vunpack.c.h.b16 %v2066
        %v2079 = vunpack.c.l.b16 %v2067
        %v2080 = vunpack.c.h.b16 %v2067
        %v2081 = vunpack.c.l.b16 %v2068
        %v2082 = vunpack.c.h.b16 %v2068
        %v2083 = vunpack.c.l.b16 %v2069
        %v2084 = vunpack.c.h.b16 %v2069
        %v2085 = vpack.c.b16 %v2077, %v2075
        %v2086 = vpack.c.b16 %v2078, %v2076
        %v2087 = vpack.c.b16 %v2081, %v2079
        %v2088 = vpack.c.b16 %v2082, %v2080
        %v2089 = vpack.c.b16 %v2083, %v2083
        %v2090 = vpack.c.b16 %v2084, %v2084
        %v2096 = vsel %vm327, %v2089, 0
        %v2099 = vsel %vm327, %v2090, 0
        %2101 = vmatprep.subr.bf16.mxu0 %v2086
        %2102 = vmatpush1.bf16.msra.mxu0 %v2085
        %2103 = vmatprep.subr.bf16.mxu0 %v2088
        %2104 = vmatpush1.bf16.msra.mxu0 %v2087
        %2105 = vmatprep.subr.bf16.mxu0 %v2099
        %2106 = vmatpush1.bf16.msra.mxu0 %v2096
        %2107 = vmatprep.subr.bf16.mxu0 0
        %2108 = vmatpush1.bf16.msra.mxu0 0
        %2109 = vmatprep.subr.bf16.mxu0 0
        %2110 = vmatpush1.bf16.msra.mxu0 0
        %2111 = vmatprep.subr.bf16.mxu0 0
        %2112 = vmatpush1.bf16.msra.mxu0 0
        %2113 = vmatprep.subr.bf16.mxu0 0
        %2114 = vmatpush1.bf16.msra.mxu0 0
        %2115 = vmatprep.subr.bf16.mxu0 0
        %2116 = vmatpush1.bf16.msra.mxu0 0
        %2117 = vmatprep.subr.bf16.mxu0 0
        %2118 = vmatpush1.bf16.msra.mxu0 0
        %2119 = vmatprep.subr.bf16.mxu0 0
        %2120 = vmatpush1.bf16.msra.mxu0 0
        %2121 = vmatprep.subr.bf16.mxu0 0
        %2122 = vmatpush1.bf16.msra.mxu0 0
        %2123 = vmatprep.subr.bf16.mxu0 0
        %2124 = vmatpush1.bf16.msra.mxu0 0
        %2125 = vmatprep.subr.bf16.mxu0 0
        %2126 = vmatpush1.bf16.msra.mxu0 0
        %2127 = vmatprep.subr.bf16.mxu0 0
        %2128 = vmatpush1.bf16.msra.mxu0 0
        %2129 = vmatprep.subr.bf16.mxu0 0
        %2130 = vmatpush1.bf16.msra.mxu0 0
        %2131 = vmatprep.subr.bf16.mxu0 0
        %2132 = vmatpush1.bf16.msra.mxu0 0
        %2133 = vmatprep.mubr.bf16.mxu0 0
        %2134 = vmatmul.mubr.bf16.gmra.mrb[0].mxu0 %v322
        %v2135 = vpop.f32.mrb[0].mxu0
        %v2136 = vadd.f32 0.0, %v2135
        %v2137 = vpop.f32.mrb[0].mxu0
        %v2138 = vadd.f32 0.0, %v2137
        %v2139 = vpop.f32.mrb[0].mxu0
        %v2140 = vadd.f32 0.0, %v2139
        %v2141 = vpop.f32.mrb[0].mxu0
        %v2142 = vadd.f32 0.0, %v2141
        %2143 = vmatprep.mubr.bf16.mxu0 0
        %2144 = vmatmul.mubr.bf16.gmra.mrb[0].mxu0 %v325
        %v2145 = vpop.f32.mrb[0].mxu0
        %v2146 = vadd.f32 0.0, %v2145
        %v2147 = vpop.f32.mrb[0].mxu0
        %v2148 = vadd.f32 0.0, %v2147
        %v2149 = vpop.f32.mrb[0].mxu0
        %v2150 = vadd.f32 0.0, %v2149
        %v2151 = vpop.f32.mrb[0].mxu0
        %v2152 = vadd.f32 0.0, %v2151
        %2153 = vdwg.mxu0
        %v2159 = vunpack.c.l.b16 %v2060
        %v2160 = vunpack.c.h.b16 %v2060
        %v2161 = vunpack.c.l.b16 %v2061
        %v2162 = vunpack.c.h.b16 %v2061
        %v2163 = vunpack.c.l.b16 %v2062
        %v2164 = vunpack.c.h.b16 %v2062
        %v2165 = vunpack.c.l.b16 %v2063
        %v2166 = vunpack.c.h.b16 %v2063
        %v2167 = vunpack.c.l.b16 %v2064
        %v2168 = vunpack.c.h.b16 %v2064
        %v2169 = vpack.c.b16 %v2161, %v2159
        %v2170 = vpack.c.b16 %v2162, %v2160
        %v2171 = vpack.c.b16 %v2165, %v2163
        %v2172 = vpack.c.b16 %v2166, %v2164
        %v2173 = vpack.c.b16 %v2167, %v2167
        %v2174 = vpack.c.b16 %v2168, %v2168
        %v2180 = vsel %vm327, %v2173, 0
        %v2183 = vsel %vm327, %v2174, 0
        %2185 = vmatprep.subr.bf16.mxu0 %v2170
        %2186 = vmatpush1.bf16.msra.mxu0 %v2169
        %2187 = vmatprep.subr.bf16.mxu0 %v2172
        %2188 = vmatpush1.bf16.msra.mxu0 %v2171
        %2189 = vmatprep.subr.bf16.mxu0 %v2183
        %2190 = vmatpush1.bf16.msra.mxu0 %v2180
        %2191 = vmatprep.subr.bf16.mxu0 0
        %2192 = vmatpush1.bf16.msra.mxu0 0
        %2193 = vmatprep.subr.bf16.mxu0 0
        %2194 = vmatpush1.bf16.msra.mxu0 0
        %2195 = vmatprep.subr.bf16.mxu0 0
        %2196 = vmatpush1.bf16.msra.mxu0 0
        %2197 = vmatprep.subr.bf16.mxu0 0
        %2198 = vmatpush1.bf16.msra.mxu0 0
        %2199 = vmatprep.subr.bf16.mxu0 0
        %2200 = vmatpush1.bf16.msra.mxu0 0
        %2201 = vmatprep.subr.bf16.mxu0 0
        %2202 = vmatpush1.bf16.msra.mxu0 0
        %2203 = vmatprep.subr.bf16.mxu0 0
        %2204 = vmatpush1.bf16.msra.mxu0 0
        %2205 = vmatprep.subr.bf16.mxu0 0
        %2206 = vmatpush1.bf16.msra.mxu0 0
        %2207 = vmatprep.subr.bf16.mxu0 0
        %2208 = vmatpush1.bf16.msra.mxu0 0
        %2209 = vmatprep.subr.bf16.mxu0 0
        %2210 = vmatpush1.bf16.msra.mxu0 0
        %2211 = vmatprep.subr.bf16.mxu0 0
        %2212 = vmatpush1.bf16.msra.mxu0 0
        %2213 = vmatprep.subr.bf16.mxu0 0
        %2214 = vmatpush1.bf16.msra.mxu0 0
        %2215 = vmatprep.subr.bf16.mxu0 0
        %2216 = vmatpush1.bf16.msra.mxu0 0
        %2217 = vmatprep.mubr.bf16.mxu0 0
        %2218 = vmatmul.mubr.bf16.gmra.mrb[0].mxu0 %v423
        %v2219 = vpop.f32.mrb[0].mxu0
        %v2220 = vadd.f32 %v2136, %v2219
        %v2221 = vpop.f32.mrb[0].mxu0
        %v2222 = vadd.f32 %v2138, %v2221
        %v2223 = vpop.f32.mrb[0].mxu0
        %v2224 = vadd.f32 %v2140, %v2223
        %v2225 = vpop.f32.mrb[0].mxu0
        %v2226 = vadd.f32 %v2142, %v2225
        %2227 = vmatprep.mubr.bf16.mxu0 0
        %2228 = vmatmul.mubr.bf16.gmra.mrb[0].mxu0 %v426
        %v2229 = vpop.f32.mrb[0].mxu0
        %v2230 = vadd.f32 %v2146, %v2229
        %v2231 = vpop.f32.mrb[0].mxu0
        %v2232 = vadd.f32 %v2148, %v2231
        %v2233 = vpop.f32.mrb[0].mxu0
        %v2234 = vadd.f32 %v2150, %v2233
        %v2235 = vpop.f32.mrb[0].mxu0
        %v2236 = vadd.f32 %v2152, %v2235
        %2237 = vdwg.mxu0
        %s2238 = sadd.s32 %s253, 7
        %s2239 = smul.u32 %s2238, 10
        %s2240 = smul.addr %s2239, 4
        %s2241 = scalar_lea.vmem %s232, %s2240
        %v2242 = vld [vmem:[%s2241] sm:$0xff]
        %v2243 = vld [vmem:[%s2241 + $0x8] sm:$0xff]
        %v2244 = vld [vmem:[%s2241 + $0x10] sm:$0xff]
        %v2245 = vld [vmem:[%s2241 + $0x18] sm:$0xff]
        %v2246 = vld [vmem:[%s2241 + $0x20] sm:$0x33]
        %v2252 = vunpack.c.l.b16 %v2242
        %v2253 = vunpack.c.h.b16 %v2242
        %v2254 = vunpack.c.l.b16 %v2243
        %v2255 = vunpack.c.h.b16 %v2243
        %v2256 = vunpack.c.l.b16 %v2244
        %v2257 = vunpack.c.h.b16 %v2244
        %v2258 = vunpack.c.l.b16 %v2245
        %v2259 = vunpack.c.h.b16 %v2245
        %v2260 = vunpack.c.l.b16 %v2246
        %v2261 = vunpack.c.h.b16 %v2246
        %v2262 = vpack.c.b16 %v2254, %v2252
        %v2263 = vpack.c.b16 %v2255, %v2253
        %v2264 = vpack.c.b16 %v2258, %v2256
        %v2265 = vpack.c.b16 %v2259, %v2257
        %v2266 = vpack.c.b16 %v2260, %v2260
        %v2267 = vpack.c.b16 %v2261, %v2261
        %v2273 = vsel %vm327, %v2266, 0
        %v2276 = vsel %vm327, %v2267, 0
        %2278 = vmatprep.subr.bf16.mxu0 %v2263
        %2279 = vmatpush1.bf16.msra.mxu0 %v2262
        %2280 = vmatprep.subr.bf16.mxu0 %v2265
        %2281 = vmatpush1.bf16.msra.mxu0 %v2264
        %2282 = vmatprep.subr.bf16.mxu0 %v2276
        %2283 = vmatpush1.bf16.msra.mxu0 %v2273
        %2284 = vmatprep.subr.bf16.mxu0 0
        %2285 = vmatpush1.bf16.msra.mxu0 0
        %2286 = vmatprep.subr.bf16.mxu0 0
        %2287 = vmatpush1.bf16.msra.mxu0 0
        %2288 = vmatprep.subr.bf16.mxu0 0
        %2289 = vmatpush1.bf16.msra.mxu0 0
        %2290 = vmatprep.subr.bf16.mxu0 0
        %2291 = vmatpush1.bf16.msra.mxu0 0
        %2292 = vmatprep.subr.bf16.mxu0 0
        %2293 = vmatpush1.bf16.msra.mxu0 0
        %2294 = vmatprep.subr.bf16.mxu0 0
        %2295 = vmatpush1.bf16.msra.mxu0 0
        %2296 = vmatprep.subr.bf16.mxu0 0
        %2297 = vmatpush1.bf16.msra.mxu0 0
        %2298 = vmatprep.subr.bf16.mxu0 0
        %2299 = vmatpush1.bf16.msra.mxu0 0
        %2300 = vmatprep.subr.bf16.mxu0 0
        %2301 = vmatpush1.bf16.msra.mxu0 0
        %2302 = vmatprep.subr.bf16.mxu0 0
        %2303 = vmatpush1.bf16.msra.mxu0 0
        %2304 = vmatprep.subr.bf16.mxu0 0
        %2305 = vmatpush1.bf16.msra.mxu0 0
        %2306 = vmatprep.subr.bf16.mxu0 0
        %2307 = vmatpush1.bf16.msra.mxu0 0
        %2308 = vmatprep.subr.bf16.mxu0 0
        %2309 = vmatpush1.bf16.msra.mxu0 0
        %2310 = vmatprep.mubr.bf16.mxu0 0
        %2311 = vmatmul.mubr.bf16.gmra.mrb[0].mxu0 %v532
        %v2312 = vpop.f32.mrb[0].mxu0
        %v2313 = vadd.f32 0.0, %v2312
        %v2314 = vpop.f32.mrb[0].mxu0
        %v2315 = vadd.f32 0.0, %v2314
        %v2316 = vpop.f32.mrb[0].mxu0
        %v2317 = vadd.f32 0.0, %v2316
        %v2318 = vpop.f32.mrb[0].mxu0
        %v2319 = vadd.f32 0.0, %v2318
        %2320 = vmatprep.mubr.bf16.mxu0 0
        %2321 = vmatmul.mubr.bf16.gmra.mrb[0].mxu0 %v535
        %v2322 = vpop.f32.mrb[0].mxu0
        %v2323 = vadd.f32 0.0, %v2322
        %v2324 = vpop.f32.mrb[0].mxu0
        %v2325 = vadd.f32 0.0, %v2324
        %v2326 = vpop.f32.mrb[0].mxu0
        %v2327 = vadd.f32 0.0, %v2326
        %v2328 = vpop.f32.mrb[0].mxu0
        %v2329 = vadd.f32 0.0, %v2328
        %2330 = vdwg.mxu0
        %v2331 = vadd.f32 %v2220, %v2313
        %v2332 = vadd.f32 %v2222, %v2315
        %v2333 = vadd.f32 %v2224, %v2317
        %v2334 = vadd.f32 %v2226, %v2319
        %v2335 = vadd.f32 %v2230, %v2323
        %v2336 = vadd.f32 %v2232, %v2325
        %v2337 = vadd.f32 %v2234, %v2327
        %v2338 = vadd.f32 %v2236, %v2329
        %v2339 = vpack.c.bf16 %v2333, %v2331
        %v2340 = vpack.c.bf16 %v2334, %v2332
        %v2341 = vpack.c.bf16 %v2337, %v2335
        %v2342 = vpack.c.bf16 %v2338, %v2336
        %v2347 = vunpack.c.l.b16 %v2339
        %v2348 = vunpack.c.l.b16 %v2340
        %v2349 = vunpack.c.h.b16 %v2339
        %v2350 = vunpack.c.h.b16 %v2340
        %v2351 = vunpack.c.l.b16 %v2341
        %v2352 = vunpack.c.l.b16 %v2342
        %v2353 = vunpack.c.h.b16 %v2341
        %v2354 = vunpack.c.h.b16 %v2342
        %v2355 = vpack.c.b16 %v2348, %v2347
        %v2356 = vpack.c.b16 %v2350, %v2349
        %v2357 = vpack.c.b16 %v2352, %v2351
        %v2358 = vpack.c.b16 %v2354, %v2353
        %2363 = vst [vmem:[%s209 + $0x28] sm:$0xff] %v2355
        %2364 = vst [vmem:[%s209 + $0x68] sm:$0xff] %v2356
        %2365 = vst [vmem:[%s209 + $0xa8] sm:$0xff] %v2357
        %2366 = vst [vmem:[%s209 + $0xe8] sm:$0xff] %v2358
        %v2367 = vadd.f32 %v2331, %v2332
        %2368 = vadd.xlane.f32.xlu0 %v2367
        %v2369 = vpop.xlane.xlu0 %2368
        %v2370 = vadd.f32 %v2333, %v2334
        %2371 = vadd.xlane.f32.xlu0 %v2370
        %v2372 = vpop.xlane.xlu0 %2371
        %v2373 = vadd.f32 %v2335, %v2336
        %2374 = vadd.xlane.f32.xlu0 %v2373
        %v2375 = vpop.xlane.xlu0 %2374
        %v2376 = vadd.f32 %v2337, %v2338
        %2377 = vadd.xlane.f32.xlu0 %v2376
        %v2378 = vpop.xlane.xlu0 %2377
        %v2379 = vadd.f32 %v2032, %v2369
        %v2380 = vadd.f32 %v2033, %v2372
        %v2381 = vadd.f32 %v2034, %v2375
        %v2382 = vadd.f32 %v2035, %v2378
        %v2383 = vmul.f32 %v2331, %v2331
        %v2384 = vmul.f32 %v2332, %v2332
        %v2385 = vmul.f32 %v2333, %v2333
        %v2386 = vmul.f32 %v2334, %v2334
        %v2387 = vmul.f32 %v2335, %v2335
        %v2388 = vmul.f32 %v2336, %v2336
        %v2389 = vmul.f32 %v2337, %v2337
        %v2390 = vmul.f32 %v2338, %v2338
        %v2391 = vadd.f32 %v2383, %v2384
        %2392 = vadd.xlane.f32.xlu0 %v2391
        %v2393 = vpop.xlane.xlu0 %2392
        %v2394 = vadd.f32 %v2385, %v2386
        %2395 = vadd.xlane.f32.xlu0 %v2394
        %v2396 = vpop.xlane.xlu0 %2395
        %v2397 = vadd.f32 %v2387, %v2388
        %2398 = vadd.xlane.f32.xlu0 %v2397
        %v2399 = vpop.xlane.xlu0 %2398
        %v2400 = vadd.f32 %v2389, %v2390
        %2401 = vadd.xlane.f32.xlu0 %v2400
        %v2402 = vpop.xlane.xlu0 %2401
        %v2403 = vadd.f32 %v2056, %v2393
        %v2404 = vadd.f32 %v2057, %v2396
        %v2405 = vadd.f32 %v2058, %v2399
        %v2406 = vadd.f32 %v2059, %v2402
        %v2407 = vld [vmem:[%s1894] sm:$0xff]
        %v2408 = vld [vmem:[%s1894 + $0x8] sm:$0xff]
        %v2409 = vld [vmem:[%s1894 + $0x10] sm:$0xff]
        %v2410 = vld [vmem:[%s1894 + $0x18] sm:$0xff]
        %v2411 = vld [vmem:[%s1894 + $0x20] sm:$0x33]
        %v2412 = vld [vmem:[%s2241] sm:$0xff]
        %v2413 = vld [vmem:[%s2241 + $0x8] sm:$0xff]
        %v2414 = vld [vmem:[%s2241 + $0x10] sm:$0xff]
        %v2415 = vld [vmem:[%s2241 + $0x18] sm:$0xff]
        %v2416 = vld [vmem:[%s2241 + $0x20] sm:$0x33]
        %v2422 = vunpack.c.l.b16 %v2412
        %v2423 = vunpack.c.h.b16 %v2412
        %v2424 = vunpack.c.l.b16 %v2413
        %v2425 = vunpack.c.h.b16 %v2413
        %v2426 = vunpack.c.l.b16 %v2414
        %v2427 = vunpack.c.h.b16 %v2414
        %v2428 = vunpack.c.l.b16 %v2415
        %v2429 = vunpack.c.h.b16 %v2415
        %v2430 = vunpack.c.l.b16 %v2416
        %v2431 = vunpack.c.h.b16 %v2416
        %v2432 = vpack.c.b16 %v2424, %v2422
        %v2433 = vpack.c.b16 %v2425, %v2423
        %v2434 = vpack.c.b16 %v2428, %v2426
        %v2435 = vpack.c.b16 %v2429, %v2427
        %v2436 = vpack.c.b16 %v2430, %v2430
        %v2437 = vpack.c.b16 %v2431, %v2431
        %v2443 = vsel %vm327, %v2436, 0
        %v2446 = vsel %vm327, %v2437, 0
        %2448 = vmatprep.subr.bf16.mxu0 %v2433
        %2449 = vmatpush1.bf16.msra.mxu0 %v2432
        %2450 = vmatprep.subr.bf16.mxu0 %v2435
        %2451 = vmatpush1.bf16.msra.mxu0 %v2434
        %2452 = vmatprep.subr.bf16.mxu0 %v2446
        %2453 = vmatpush1.bf16.msra.mxu0 %v2443
        %2454 = vmatprep.subr.bf16.mxu0 0
        %2455 = vmatpush1.bf16.msra.mxu0 0
        %2456 = vmatprep.subr.bf16.mxu0 0
        %2457 = vmatpush1.bf16.msra.mxu0 0
        %2458 = vmatprep.subr.bf16.mxu0 0
        %2459 = vmatpush1.bf16.msra.mxu0 0
        %2460 = vmatprep.subr.bf16.mxu0 0
        %2461 = vmatpush1.bf16.msra.mxu0 0
        %2462 = vmatprep.subr.bf16.mxu0 0
        %2463 = vmatpush1.bf16.msra.mxu0 0
        %2464 = vmatprep.subr.bf16.mxu0 0
        %2465 = vmatpush1.bf16.msra.mxu0 0
        %2466 = vmatprep.subr.bf16.mxu0 0
        %2467 = vmatpush1.bf16.msra.mxu0 0
        %2468 = vmatprep.subr.bf16.mxu0 0
        %2469 = vmatpush1.bf16.msra.mxu0 0
        %2470 = vmatprep.subr.bf16.mxu0 0
        %2471 = vmatpush1.bf16.msra.mxu0 0
        %2472 = vmatprep.subr.bf16.mxu0 0
        %2473 = vmatpush1.bf16.msra.mxu0 0
        %2474 = vmatprep.subr.bf16.mxu0 0
        %2475 = vmatpush1.bf16.msra.mxu0 0
        %2476 = vmatprep.subr.bf16.mxu0 0
        %2477 = vmatpush1.bf16.msra.mxu0 0
        %2478 = vmatprep.subr.bf16.mxu0 0
        %2479 = vmatpush1.bf16.msra.mxu0 0
        %2480 = vmatprep.mubr.bf16.mxu0 0
        %2481 = vmatmul.mubr.bf16.gmra.mrb[0].mxu0 %v322
        %v2482 = vpop.f32.mrb[0].mxu0
        %v2483 = vadd.f32 0.0, %v2482
        %v2484 = vpop.f32.mrb[0].mxu0
        %v2485 = vadd.f32 0.0, %v2484
        %v2486 = vpop.f32.mrb[0].mxu0
        %v2487 = vadd.f32 0.0, %v2486
        %v2488 = vpop.f32.mrb[0].mxu0
        %v2489 = vadd.f32 0.0, %v2488
        %2490 = vmatprep.mubr.bf16.mxu0 0
        %2491 = vmatmul.mubr.bf16.gmra.mrb[0].mxu0 %v325
        %v2492 = vpop.f32.mrb[0].mxu0
        %v2493 = vadd.f32 0.0, %v2492
        %v2494 = vpop.f32.mrb[0].mxu0
        %v2495 = vadd.f32 0.0, %v2494
        %v2496 = vpop.f32.mrb[0].mxu0
        %v2497 = vadd.f32 0.0, %v2496
        %v2498 = vpop.f32.mrb[0].mxu0
        %v2499 = vadd.f32 0.0, %v2498
        %2500 = vdwg.mxu0
        %v2506 = vunpack.c.l.b16 %v2407
        %v2507 = vunpack.c.h.b16 %v2407
        %v2508 = vunpack.c.l.b16 %v2408
        %v2509 = vunpack.c.h.b16 %v2408
        %v2510 = vunpack.c.l.b16 %v2409
        %v2511 = vunpack.c.h.b16 %v2409
        %v2512 = vunpack.c.l.b16 %v2410
        %v2513 = vunpack.c.h.b16 %v2410
        %v2514 = vunpack.c.l.b16 %v2411
        %v2515 = vunpack.c.h.b16 %v2411
        %v2516 = vpack.c.b16 %v2508, %v2506
        %v2517 = vpack.c.b16 %v2509, %v2507
        %v2518 = vpack.c.b16 %v2512, %v2510
        %v2519 = vpack.c.b16 %v2513, %v2511
        %v2520 = vpack.c.b16 %v2514, %v2514
        %v2521 = vpack.c.b16 %v2515, %v2515
        %v2527 = vsel %vm327, %v2520, 0
        %v2530 = vsel %vm327, %v2521, 0
        %2532 = vmatprep.subr.bf16.mxu0 %v2517
        %2533 = vmatpush1.bf16.msra.mxu0 %v2516
        %2534 = vmatprep.subr.bf16.mxu0 %v2519
        %2535 = vmatpush1.bf16.msra.mxu0 %v2518
        %2536 = vmatprep.subr.bf16.mxu0 %v2530
        %2537 = vmatpush1.bf16.msra.mxu0 %v2527
        %2538 = vmatprep.subr.bf16.mxu0 0
        %2539 = vmatpush1.bf16.msra.mxu0 0
        %2540 = vmatprep.subr.bf16.mxu0 0
        %2541 = vmatpush1.bf16.msra.mxu0 0
        %2542 = vmatprep.subr.bf16.mxu0 0
        %2543 = vmatpush1.bf16.msra.mxu0 0
        %2544 = vmatprep.subr.bf16.mxu0 0
        %2545 = vmatpush1.bf16.msra.mxu0 0
        %2546 = vmatprep.subr.bf16.mxu0 0
        %2547 = vmatpush1.bf16.msra.mxu0 0
        %2548 = vmatprep.subr.bf16.mxu0 0
        %2549 = vmatpush1.bf16.msra.mxu0 0
        %2550 = vmatprep.subr.bf16.mxu0 0
        %2551 = vmatpush1.bf16.msra.mxu0 0
        %2552 = vmatprep.subr.bf16.mxu0 0
        %2553 = vmatpush1.bf16.msra.mxu0 0
        %2554 = vmatprep.subr.bf16.mxu0 0
        %2555 = vmatpush1.bf16.msra.mxu0 0
        %2556 = vmatprep.subr.bf16.mxu0 0
        %2557 = vmatpush1.bf16.msra.mxu0 0
        %2558 = vmatprep.subr.bf16.mxu0 0
        %2559 = vmatpush1.bf16.msra.mxu0 0
        %2560 = vmatprep.subr.bf16.mxu0 0
        %2561 = vmatpush1.bf16.msra.mxu0 0
        %2562 = vmatprep.subr.bf16.mxu0 0
        %2563 = vmatpush1.bf16.msra.mxu0 0
        %2564 = vmatprep.mubr.bf16.mxu0 0
        %2565 = vmatmul.mubr.bf16.gmra.mrb[0].mxu0 %v423
        %v2566 = vpop.f32.mrb[0].mxu0
        %v2567 = vadd.f32 %v2483, %v2566
        %v2568 = vpop.f32.mrb[0].mxu0
        %v2569 = vadd.f32 %v2485, %v2568
        %v2570 = vpop.f32.mrb[0].mxu0
        %v2571 = vadd.f32 %v2487, %v2570
        %v2572 = vpop.f32.mrb[0].mxu0
        %v2573 = vadd.f32 %v2489, %v2572
        %2574 = vmatprep.mubr.bf16.mxu0 0
        %2575 = vmatmul.mubr.bf16.gmra.mrb[0].mxu0 %v426
        %v2576 = vpop.f32.mrb[0].mxu0
        %v2577 = vadd.f32 %v2493, %v2576
        %v2578 = vpop.f32.mrb[0].mxu0
        %v2579 = vadd.f32 %v2495, %v2578
        %v2580 = vpop.f32.mrb[0].mxu0
        %v2581 = vadd.f32 %v2497, %v2580
        %v2582 = vpop.f32.mrb[0].mxu0
        %v2583 = vadd.f32 %v2499, %v2582
        %2584 = vdwg.mxu0
        %s2585 = sadd.s32 %s253, 8
        %s2586 = smul.u32 %s2585, 10
        %s2587 = smul.addr %s2586, 4
        %s2588 = scalar_lea.vmem %s232, %s2587
        %v2589 = vld [vmem:[%s2588] sm:$0xff]
        %v2590 = vld [vmem:[%s2588 + $0x8] sm:$0xff]
        %v2591 = vld [vmem:[%s2588 + $0x10] sm:$0xff]
        %v2592 = vld [vmem:[%s2588 + $0x18] sm:$0xff]
        %v2593 = vld [vmem:[%s2588 + $0x20] sm:$0x33]
        %v2599 = vunpack.c.l.b16 %v2589
        %v2600 = vunpack.c.h.b16 %v2589
        %v2601 = vunpack.c.l.b16 %v2590
        %v2602 = vunpack.c.h.b16 %v2590
        %v2603 = vunpack.c.l.b16 %v2591
        %v2604 = vunpack.c.h.b16 %v2591
        %v2605 = vunpack.c.l.b16 %v2592
        %v2606 = vunpack.c.h.b16 %v2592
        %v2607 = vunpack.c.l.b16 %v2593
        %v2608 = vunpack.c.h.b16 %v2593
        %v2609 = vpack.c.b16 %v2601, %v2599
        %v2610 = vpack.c.b16 %v2602, %v2600
        %v2611 = vpack.c.b16 %v2605, %v2603
        %v2612 = vpack.c.b16 %v2606, %v2604
        %v2613 = vpack.c.b16 %v2607, %v2607
        %v2614 = vpack.c.b16 %v2608, %v2608
        %v2620 = vsel %vm327, %v2613, 0
        %v2623 = vsel %vm327, %v2614, 0
        %2625 = vmatprep.subr.bf16.mxu0 %v2610
        %2626 = vmatpush1.bf16.msra.mxu0 %v2609
        %2627 = vmatprep.subr.bf16.mxu0 %v2612
        %2628 = vmatpush1.bf16.msra.mxu0 %v2611
        %2629 = vmatprep.subr.bf16.mxu0 %v2623
        %2630 = vmatpush1.bf16.msra.mxu0 %v2620
        %2631 = vmatprep.subr.bf16.mxu0 0
        %2632 = vmatpush1.bf16.msra.mxu0 0
        %2633 = vmatprep.subr.bf16.mxu0 0
        %2634 = vmatpush1.bf16.msra.mxu0 0
        %2635 = vmatprep.subr.bf16.mxu0 0
        %2636 = vmatpush1.bf16.msra.mxu0 0
        %2637 = vmatprep.subr.bf16.mxu0 0
        %2638 = vmatpush1.bf16.msra.mxu0 0
        %2639 = vmatprep.subr.bf16.mxu0 0
        %2640 = vmatpush1.bf16.msra.mxu0 0
        %2641 = vmatprep.subr.bf16.mxu0 0
        %2642 = vmatpush1.bf16.msra.mxu0 0
        %2643 = vmatprep.subr.bf16.mxu0 0
        %2644 = vmatpush1.bf16.msra.mxu0 0
        %2645 = vmatprep.subr.bf16.mxu0 0
        %2646 = vmatpush1.bf16.msra.mxu0 0
        %2647 = vmatprep.subr.bf16.mxu0 0
        %2648 = vmatpush1.bf16.msra.mxu0 0
        %2649 = vmatprep.subr.bf16.mxu0 0
        %2650 = vmatpush1.bf16.msra.mxu0 0
        %2651 = vmatprep.subr.bf16.mxu0 0
        %2652 = vmatpush1.bf16.msra.mxu0 0
        %2653 = vmatprep.subr.bf16.mxu0 0
        %2654 = vmatpush1.bf16.msra.mxu0 0
        %2655 = vmatprep.subr.bf16.mxu0 0
        %2656 = vmatpush1.bf16.msra.mxu0 0
        %2657 = vmatprep.mubr.bf16.mxu0 0
        %2658 = vmatmul.mubr.bf16.gmra.mrb[0].mxu0 %v532
        %v2659 = vpop.f32.mrb[0].mxu0
        %v2660 = vadd.f32 0.0, %v2659
        %v2661 = vpop.f32.mrb[0].mxu0
        %v2662 = vadd.f32 0.0, %v2661
        %v2663 = vpop.f32.mrb[0].mxu0
        %v2664 = vadd.f32 0.0, %v2663
        %v2665 = vpop.f32.mrb[0].mxu0
        %v2666 = vadd.f32 0.0, %v2665
        %2667 = vmatprep.mubr.bf16.mxu0 0
        %2668 = vmatmul.mubr.bf16.gmra.mrb[0].mxu0 %v535
        %v2669 = vpop.f32.mrb[0].mxu0
        %v2670 = vadd.f32 0.0, %v2669
        %v2671 = vpop.f32.mrb[0].mxu0
        %v2672 = vadd.f32 0.0, %v2671
        %v2673 = vpop.f32.mrb[0].mxu0
        %v2674 = vadd.f32 0.0, %v2673
        %v2675 = vpop.f32.mrb[0].mxu0
        %v2676 = vadd.f32 0.0, %v2675
        %2677 = vdwg.mxu0
        %v2678 = vadd.f32 %v2567, %v2660
        %v2679 = vadd.f32 %v2569, %v2662
        %v2680 = vadd.f32 %v2571, %v2664
        %v2681 = vadd.f32 %v2573, %v2666
        %v2682 = vadd.f32 %v2577, %v2670
        %v2683 = vadd.f32 %v2579, %v2672
        %v2684 = vadd.f32 %v2581, %v2674
        %v2685 = vadd.f32 %v2583, %v2676
        %v2686 = vpack.c.bf16 %v2680, %v2678
        %v2687 = vpack.c.bf16 %v2681, %v2679
        %v2688 = vpack.c.bf16 %v2684, %v2682
        %v2689 = vpack.c.bf16 %v2685, %v2683
        %v2694 = vunpack.c.l.b16 %v2686
        %v2695 = vunpack.c.l.b16 %v2687
        %v2696 = vunpack.c.h.b16 %v2686
        %v2697 = vunpack.c.h.b16 %v2687
        %v2698 = vunpack.c.l.b16 %v2688
        %v2699 = vunpack.c.l.b16 %v2689
        %v2700 = vunpack.c.h.b16 %v2688
        %v2701 = vunpack.c.h.b16 %v2689
        %v2702 = vpack.c.b16 %v2695, %v2694
        %v2703 = vpack.c.b16 %v2697, %v2696
        %v2704 = vpack.c.b16 %v2699, %v2698
        %v2705 = vpack.c.b16 %v2701, %v2700
        %2710 = vst [vmem:[%s209 + $0x30] sm:$0xff] %v2702
        %2711 = vst [vmem:[%s209 + $0x70] sm:$0xff] %v2703
        %2712 = vst [vmem:[%s209 + $0xb0] sm:$0xff] %v2704
        %2713 = vst [vmem:[%s209 + $0xf0] sm:$0xff] %v2705
        %v2714 = vadd.f32 %v2678, %v2679
        %2715 = vadd.xlane.f32.xlu0 %v2714
        %v2716 = vpop.xlane.xlu0 %2715
        %v2717 = vadd.f32 %v2680, %v2681
        %2718 = vadd.xlane.f32.xlu0 %v2717
        %v2719 = vpop.xlane.xlu0 %2718
        %v2720 = vadd.f32 %v2682, %v2683
        %2721 = vadd.xlane.f32.xlu0 %v2720
        %v2722 = vpop.xlane.xlu0 %2721
        %v2723 = vadd.f32 %v2684, %v2685
        %2724 = vadd.xlane.f32.xlu0 %v2723
        %v2725 = vpop.xlane.xlu0 %2724
        %v2726 = vadd.f32 %v2379, %v2716
        %v2727 = vadd.f32 %v2380, %v2719
        %v2728 = vadd.f32 %v2381, %v2722
        %v2729 = vadd.f32 %v2382, %v2725
        %v2730 = vmul.f32 %v2678, %v2678
        %v2731 = vmul.f32 %v2679, %v2679
        %v2732 = vmul.f32 %v2680, %v2680
        %v2733 = vmul.f32 %v2681, %v2681
        %v2734 = vmul.f32 %v2682, %v2682
        %v2735 = vmul.f32 %v2683, %v2683
        %v2736 = vmul.f32 %v2684, %v2684
        %v2737 = vmul.f32 %v2685, %v2685
        %v2738 = vadd.f32 %v2730, %v2731
        %2739 = vadd.xlane.f32.xlu0 %v2738
        %v2740 = vpop.xlane.xlu0 %2739
        %v2741 = vadd.f32 %v2732, %v2733
        %2742 = vadd.xlane.f32.xlu0 %v2741
        %v2743 = vpop.xlane.xlu0 %2742
        %v2744 = vadd.f32 %v2734, %v2735
        %2745 = vadd.xlane.f32.xlu0 %v2744
        %v2746 = vpop.xlane.xlu0 %2745
        %v2747 = vadd.f32 %v2736, %v2737
        %2748 = vadd.xlane.f32.xlu0 %v2747
        %v2749 = vpop.xlane.xlu0 %2748
        %v2750 = vadd.f32 %v2403, %v2740
        %v2751 = vadd.f32 %v2404, %v2743
        %v2752 = vadd.f32 %v2405, %v2746
        %v2753 = vadd.f32 %v2406, %v2749
        %v2754 = vld [vmem:[%s2241] sm:$0xff]
        %v2755 = vld [vmem:[%s2241 + $0x8] sm:$0xff]
        %v2756 = vld [vmem:[%s2241 + $0x10] sm:$0xff]
        %v2757 = vld [vmem:[%s2241 + $0x18] sm:$0xff]
        %v2758 = vld [vmem:[%s2241 + $0x20] sm:$0x33]
        %v2759 = vld [vmem:[%s2588] sm:$0xff]
        %v2760 = vld [vmem:[%s2588 + $0x8] sm:$0xff]
        %v2761 = vld [vmem:[%s2588 + $0x10] sm:$0xff]
        %v2762 = vld [vmem:[%s2588 + $0x18] sm:$0xff]
        %v2763 = vld [vmem:[%s2588 + $0x20] sm:$0x33]
        %v2769 = vunpack.c.l.b16 %v2759
        %v2770 = vunpack.c.h.b16 %v2759
        %v2771 = vunpack.c.l.b16 %v2760
        %v2772 = vunpack.c.h.b16 %v2760
        %v2773 = vunpack.c.l.b16 %v2761
        %v2774 = vunpack.c.h.b16 %v2761
        %v2775 = vunpack.c.l.b16 %v2762
        %v2776 = vunpack.c.h.b16 %v2762
        %v2777 = vunpack.c.l.b16 %v2763
        %v2778 = vunpack.c.h.b16 %v2763
        %v2779 = vpack.c.b16 %v2771, %v2769
        %v2780 = vpack.c.b16 %v2772, %v2770
        %v2781 = vpack.c.b16 %v2775, %v2773
        %v2782 = vpack.c.b16 %v2776, %v2774
        %v2783 = vpack.c.b16 %v2777, %v2777
        %v2784 = vpack.c.b16 %v2778, %v2778
        %v2790 = vsel %vm327, %v2783, 0
        %v2793 = vsel %vm327, %v2784, 0
        %2795 = vmatprep.subr.bf16.mxu0 %v2780
        %2796 = vmatpush1.bf16.msra.mxu0 %v2779
        %2797 = vmatprep.subr.bf16.mxu0 %v2782
        %2798 = vmatpush1.bf16.msra.mxu0 %v2781
        %2799 = vmatprep.subr.bf16.mxu0 %v2793
        %2800 = vmatpush1.bf16.msra.mxu0 %v2790
        %2801 = vmatprep.subr.bf16.mxu0 0
        %2802 = vmatpush1.bf16.msra.mxu0 0
        %2803 = vmatprep.subr.bf16.mxu0 0
        %2804 = vmatpush1.bf16.msra.mxu0 0
        %2805 = vmatprep.subr.bf16.mxu0 0
        %2806 = vmatpush1.bf16.msra.mxu0 0
        %2807 = vmatprep.subr.bf16.mxu0 0
        %2808 = vmatpush1.bf16.msra.mxu0 0
        %2809 = vmatprep.subr.bf16.mxu0 0
        %2810 = vmatpush1.bf16.msra.mxu0 0
        %2811 = vmatprep.subr.bf16.mxu0 0
        %2812 = vmatpush1.bf16.msra.mxu0 0
        %2813 = vmatprep.subr.bf16.mxu0 0
        %2814 = vmatpush1.bf16.msra.mxu0 0
        %2815 = vmatprep.subr.bf16.mxu0 0
        %2816 = vmatpush1.bf16.msra.mxu0 0
        %2817 = vmatprep.subr.bf16.mxu0 0
        %2818 = vmatpush1.bf16.msra.mxu0 0
        %2819 = vmatprep.subr.bf16.mxu0 0
        %2820 = vmatpush1.bf16.msra.mxu0 0
        %2821 = vmatprep.subr.bf16.mxu0 0
        %2822 = vmatpush1.bf16.msra.mxu0 0
        %2823 = vmatprep.subr.bf16.mxu0 0
        %2824 = vmatpush1.bf16.msra.mxu0 0
        %2825 = vmatprep.subr.bf16.mxu0 0
        %2826 = vmatpush1.bf16.msra.mxu0 0
        %2827 = vmatprep.mubr.bf16.mxu0 0
        %2828 = vmatmul.mubr.bf16.gmra.mrb[0].mxu0 %v322
        %v2829 = vpop.f32.mrb[0].mxu0
        %v2830 = vadd.f32 0.0, %v2829
        %v2831 = vpop.f32.mrb[0].mxu0
        %v2832 = vadd.f32 0.0, %v2831
        %v2833 = vpop.f32.mrb[0].mxu0
        %v2834 = vadd.f32 0.0, %v2833
        %v2835 = vpop.f32.mrb[0].mxu0
        %v2836 = vadd.f32 0.0, %v2835
        %2837 = vmatprep.mubr.bf16.mxu0 0
        %2838 = vmatmul.mubr.bf16.gmra.mrb[0].mxu0 %v325
        %v2839 = vpop.f32.mrb[0].mxu0
        %v2840 = vadd.f32 0.0, %v2839
        %v2841 = vpop.f32.mrb[0].mxu0
        %v2842 = vadd.f32 0.0, %v2841
        %v2843 = vpop.f32.mrb[0].mxu0
        %v2844 = vadd.f32 0.0, %v2843
        %v2845 = vpop.f32.mrb[0].mxu0
        %v2846 = vadd.f32 0.0, %v2845
        %2847 = vdwg.mxu0
        %v2853 = vunpack.c.l.b16 %v2754
        %v2854 = vunpack.c.h.b16 %v2754
        %v2855 = vunpack.c.l.b16 %v2755
        %v2856 = vunpack.c.h.b16 %v2755
        %v2857 = vunpack.c.l.b16 %v2756
        %v2858 = vunpack.c.h.b16 %v2756
        %v2859 = vunpack.c.l.b16 %v2757
        %v2860 = vunpack.c.h.b16 %v2757
        %v2861 = vunpack.c.l.b16 %v2758
        %v2862 = vunpack.c.h.b16 %v2758
        %v2863 = vpack.c.b16 %v2855, %v2853
        %v2864 = vpack.c.b16 %v2856, %v2854
        %v2865 = vpack.c.b16 %v2859, %v2857
        %v2866 = vpack.c.b16 %v2860, %v2858
        %v2867 = vpack.c.b16 %v2861, %v2861
        %v2868 = vpack.c.b16 %v2862, %v2862
        %v2874 = vsel %vm327, %v2867, 0
        %v2877 = vsel %vm327, %v2868, 0
        %2879 = vmatprep.subr.bf16.mxu0 %v2864
        %2880 = vmatpush1.bf16.msra.mxu0 %v2863
        %2881 = vmatprep.subr.bf16.mxu0 %v2866
        %2882 = vmatpush1.bf16.msra.mxu0 %v2865
        %2883 = vmatprep.subr.bf16.mxu0 %v2877
        %2884 = vmatpush1.bf16.msra.mxu0 %v2874
        %2885 = vmatprep.subr.bf16.mxu0 0
        %2886 = vmatpush1.bf16.msra.mxu0 0
        %2887 = vmatprep.subr.bf16.mxu0 0
        %2888 = vmatpush1.bf16.msra.mxu0 0
        %2889 = vmatprep.subr.bf16.mxu0 0
        %2890 = vmatpush1.bf16.msra.mxu0 0
        %2891 = vmatprep.subr.bf16.mxu0 0
        %2892 = vmatpush1.bf16.msra.mxu0 0
        %2893 = vmatprep.subr.bf16.mxu0 0
        %2894 = vmatpush1.bf16.msra.mxu0 0
        %2895 = vmatprep.subr.bf16.mxu0 0
        %2896 = vmatpush1.bf16.msra.mxu0 0
        %2897 = vmatprep.subr.bf16.mxu0 0
        %2898 = vmatpush1.bf16.msra.mxu0 0
        %2899 = vmatprep.subr.bf16.mxu0 0
        %2900 = vmatpush1.bf16.msra.mxu0 0
        %2901 = vmatprep.subr.bf16.mxu0 0
        %2902 = vmatpush1.bf16.msra.mxu0 0
        %2903 = vmatprep.subr.bf16.mxu0 0
        %2904 = vmatpush1.bf16.msra.mxu0 0
        %2905 = vmatprep.subr.bf16.mxu0 0
        %2906 = vmatpush1.bf16.msra.mxu0 0
        %2907 = vmatprep.subr.bf16.mxu0 0
        %2908 = vmatpush1.bf16.msra.mxu0 0
        %2909 = vmatprep.subr.bf16.mxu0 0
        %2910 = vmatpush1.bf16.msra.mxu0 0
        %2911 = vmatprep.mubr.bf16.mxu0 0
        %2912 = vmatmul.mubr.bf16.gmra.mrb[0].mxu0 %v423
        %v2913 = vpop.f32.mrb[0].mxu0
        %v2914 = vadd.f32 %v2830, %v2913
        %v2915 = vpop.f32.mrb[0].mxu0
        %v2916 = vadd.f32 %v2832, %v2915
        %v2917 = vpop.f32.mrb[0].mxu0
        %v2918 = vadd.f32 %v2834, %v2917
        %v2919 = vpop.f32.mrb[0].mxu0
        %v2920 = vadd.f32 %v2836, %v2919
        %2921 = vmatprep.mubr.bf16.mxu0 0
        %2922 = vmatmul.mubr.bf16.gmra.mrb[0].mxu0 %v426
        %v2923 = vpop.f32.mrb[0].mxu0
        %v2924 = vadd.f32 %v2840, %v2923
        %v2925 = vpop.f32.mrb[0].mxu0
        %v2926 = vadd.f32 %v2842, %v2925
        %v2927 = vpop.f32.mrb[0].mxu0
        %v2928 = vadd.f32 %v2844, %v2927
        %v2929 = vpop.f32.mrb[0].mxu0
        %v2930 = vadd.f32 %v2846, %v2929
        %2931 = vdwg.mxu0
        %s2932 = sadd.s32 %s253, 9
        %s2933 = smul.u32 %s2932, 10
        %s2934 = smul.addr %s2933, 4
        %s2935 = scalar_lea.vmem %s232, %s2934
        %v2936 = vld [vmem:[%s2935] sm:$0xff]
        %v2937 = vld [vmem:[%s2935 + $0x8] sm:$0xff]
        %v2938 = vld [vmem:[%s2935 + $0x10] sm:$0xff]
        %v2939 = vld [vmem:[%s2935 + $0x18] sm:$0xff]
        %v2940 = vld [vmem:[%s2935 + $0x20] sm:$0x33]
        %v2946 = vunpack.c.l.b16 %v2936
        %v2947 = vunpack.c.h.b16 %v2936
        %v2948 = vunpack.c.l.b16 %v2937
        %v2949 = vunpack.c.h.b16 %v2937
        %v2950 = vunpack.c.l.b16 %v2938
        %v2951 = vunpack.c.h.b16 %v2938
        %v2952 = vunpack.c.l.b16 %v2939
        %v2953 = vunpack.c.h.b16 %v2939
        %v2954 = vunpack.c.l.b16 %v2940
        %v2955 = vunpack.c.h.b16 %v2940
        %v2956 = vpack.c.b16 %v2948, %v2946
        %v2957 = vpack.c.b16 %v2949, %v2947
        %v2958 = vpack.c.b16 %v2952, %v2950
        %v2959 = vpack.c.b16 %v2953, %v2951
        %v2960 = vpack.c.b16 %v2954, %v2954
        %v2961 = vpack.c.b16 %v2955, %v2955
        %v2967 = vsel %vm327, %v2960, 0
        %v2970 = vsel %vm327, %v2961, 0
        %2972 = vmatprep.subr.bf16.mxu0 %v2957
        %2973 = vmatpush1.bf16.msra.mxu0 %v2956
        %2974 = vmatprep.subr.bf16.mxu0 %v2959
        %2975 = vmatpush1.bf16.msra.mxu0 %v2958
        %2976 = vmatprep.subr.bf16.mxu0 %v2970
        %2977 = vmatpush1.bf16.msra.mxu0 %v2967
        %2978 = vmatprep.subr.bf16.mxu0 0
        %2979 = vmatpush1.bf16.msra.mxu0 0
        %2980 = vmatprep.subr.bf16.mxu0 0
        %2981 = vmatpush1.bf16.msra.mxu0 0
        %2982 = vmatprep.subr.bf16.mxu0 0
        %2983 = vmatpush1.bf16.msra.mxu0 0
        %2984 = vmatprep.subr.bf16.mxu0 0
        %2985 = vmatpush1.bf16.msra.mxu0 0
        %2986 = vmatprep.subr.bf16.mxu0 0
        %2987 = vmatpush1.bf16.msra.mxu0 0
        %2988 = vmatprep.subr.bf16.mxu0 0
        %2989 = vmatpush1.bf16.msra.mxu0 0
        %2990 = vmatprep.subr.bf16.mxu0 0
        %2991 = vmatpush1.bf16.msra.mxu0 0
        %2992 = vmatprep.subr.bf16.mxu0 0
        %2993 = vmatpush1.bf16.msra.mxu0 0
        %2994 = vmatprep.subr.bf16.mxu0 0
        %2995 = vmatpush1.bf16.msra.mxu0 0
        %2996 = vmatprep.subr.bf16.mxu0 0
        %2997 = vmatpush1.bf16.msra.mxu0 0
        %2998 = vmatprep.subr.bf16.mxu0 0
        %2999 = vmatpush1.bf16.msra.mxu0 0
        %3000 = vmatprep.subr.bf16.mxu0 0
        %3001 = vmatpush1.bf16.msra.mxu0 0
        %3002 = vmatprep.subr.bf16.mxu0 0
        %3003 = vmatpush1.bf16.msra.mxu0 0
        %3004 = vmatprep.mubr.bf16.mxu0 0
        %3005 = vmatmul.mubr.bf16.gmra.mrb[0].mxu0 %v532
        %v3006 = vpop.f32.mrb[0].mxu0
        %v3007 = vadd.f32 0.0, %v3006
        %v3008 = vpop.f32.mrb[0].mxu0
        %v3009 = vadd.f32 0.0, %v3008
        %v3010 = vpop.f32.mrb[0].mxu0
        %v3011 = vadd.f32 0.0, %v3010
        %v3012 = vpop.f32.mrb[0].mxu0
        %v3013 = vadd.f32 0.0, %v3012
        %3014 = vmatprep.mubr.bf16.mxu0 0
        %3015 = vmatmul.mubr.bf16.gmra.mrb[0].mxu0 %v535
        %v3016 = vpop.f32.mrb[0].mxu0
        %v3017 = vadd.f32 0.0, %v3016
        %v3018 = vpop.f32.mrb[0].mxu0
        %v3019 = vadd.f32 0.0, %v3018
        %v3020 = vpop.f32.mrb[0].mxu0
        %v3021 = vadd.f32 0.0, %v3020
        %v3022 = vpop.f32.mrb[0].mxu0
        %v3023 = vadd.f32 0.0, %v3022
        %3024 = vdwg.mxu0
        %v3025 = vadd.f32 %v2914, %v3007
        %v3026 = vadd.f32 %v2916, %v3009
        %v3027 = vadd.f32 %v2918, %v3011
        %v3028 = vadd.f32 %v2920, %v3013
        %v3029 = vadd.f32 %v2924, %v3017
        %v3030 = vadd.f32 %v2926, %v3019
        %v3031 = vadd.f32 %v2928, %v3021
        %v3032 = vadd.f32 %v2930, %v3023
        %v3033 = vpack.c.bf16 %v3027, %v3025
        %v3034 = vpack.c.bf16 %v3028, %v3026
        %v3035 = vpack.c.bf16 %v3031, %v3029
        %v3036 = vpack.c.bf16 %v3032, %v3030
        %v3041 = vunpack.c.l.b16 %v3033
        %v3042 = vunpack.c.l.b16 %v3034
        %v3043 = vunpack.c.h.b16 %v3033
        %v3044 = vunpack.c.h.b16 %v3034
        %v3045 = vunpack.c.l.b16 %v3035
        %v3046 = vunpack.c.l.b16 %v3036
        %v3047 = vunpack.c.h.b16 %v3035
        %v3048 = vunpack.c.h.b16 %v3036
        %v3049 = vpack.c.b16 %v3042, %v3041
        %v3050 = vpack.c.b16 %v3044, %v3043
        %v3051 = vpack.c.b16 %v3046, %v3045
        %v3052 = vpack.c.b16 %v3048, %v3047
        %3057 = vst [vmem:[%s209 + $0x38] sm:$0xff] %v3049
        %3058 = vst [vmem:[%s209 + $0x78] sm:$0xff] %v3050
        %3059 = vst [vmem:[%s209 + $0xb8] sm:$0xff] %v3051
        %3060 = vst [vmem:[%s209 + $0xf8] sm:$0xff] %v3052
        %v3061 = vadd.f32 %v3025, %v3026
        %3062 = vadd.xlane.f32.xlu0 %v3061
        %v3063 = vpop.xlane.xlu0 %3062
        %v3064 = vadd.f32 %v3027, %v3028
        %3065 = vadd.xlane.f32.xlu0 %v3064
        %v3066 = vpop.xlane.xlu0 %3065
        %v3067 = vadd.f32 %v3029, %v3030
        %3068 = vadd.xlane.f32.xlu0 %v3067
        %v3069 = vpop.xlane.xlu0 %3068
        %v3070 = vadd.f32 %v3031, %v3032
        %3071 = vadd.xlane.f32.xlu0 %v3070
        %v3072 = vpop.xlane.xlu0 %3071
        %v3073 = vadd.f32 %v2726, %v3063
        %v3074 = vadd.f32 %v2727, %v3066
        %v3075 = vadd.f32 %v2728, %v3069
        %v3076 = vadd.f32 %v2729, %v3072
        %v3077 = vmul.f32 %v3025, %v3025
        %v3078 = vmul.f32 %v3026, %v3026
        %v3079 = vmul.f32 %v3027, %v3027
        %v3080 = vmul.f32 %v3028, %v3028
        %v3081 = vmul.f32 %v3029, %v3029
        %v3082 = vmul.f32 %v3030, %v3030
        %v3083 = vmul.f32 %v3031, %v3031
        %v3084 = vmul.f32 %v3032, %v3032
        %v3085 = vadd.f32 %v3077, %v3078
        %3086 = vadd.xlane.f32.xlu0 %v3085
        %v3087 = vpop.xlane.xlu0 %3086
        %v3088 = vadd.f32 %v3079, %v3080
        %3089 = vadd.xlane.f32.xlu0 %v3088
        %v3090 = vpop.xlane.xlu0 %3089
        %v3091 = vadd.f32 %v3081, %v3082
        %3092 = vadd.xlane.f32.xlu0 %v3091
        %v3093 = vpop.xlane.xlu0 %3092
        %v3094 = vadd.f32 %v3083, %v3084
        %3095 = vadd.xlane.f32.xlu0 %v3094
        %v3096 = vpop.xlane.xlu0 %3095
        %v3097 = vadd.f32 %v2750, %v3087
        %v3098 = vadd.f32 %v2751, %v3090
        %v3099 = vadd.f32 %v2752, %v3093
        %v3100 = vadd.f32 %v2753, %v3096
        %vm3101 = vcmask 7168
        %3102 = vst.msk [vmem:[%s240] sm:$0xff] %vm3101, %v3073
        %3103 = vst.msk [vmem:[%s240 + $0x8] sm:$0xff] %vm3101, %v3074
        %3104 = vst.msk [vmem:[%s240 + $0x10] sm:$0xff] %vm3101, %v3075
        %3105 = vst.msk [vmem:[%s240 + $0x18] sm:$0xff] %vm3101, %v3076
        %3106 = vst.msk [vmem:[%s249] sm:$0xff] %vm3101, %v3097
        %3107 = vst.msk [vmem:[%s249 + $0x8] sm:$0xff] %vm3101, %v3098
        %3108 = vst.msk [vmem:[%s249 + $0x10] sm:$0xff] %vm3101, %v3099
        %3109 = vst.msk [vmem:[%s249 + $0x18] sm:$0xff] %vm3101, %v3100
        %s3110 = sand.u32 %s85, 1
        %s3111 = sand.u32 %s85, 1
        %s3112 = smul.addr %s3111, 256
        %s3113 = scalar_lea.vmem [#allocation2], %s3112
        %s3114 = smul.u32 %s20, 2
        %s3115 = sadd.s32 %s3114, %s21
        %p3116 = scmp.lt.s32.totalorder %s3115, 3
        %s3117 = scalar_select %p3116, %s3115, 3
        %s3118 = smul.addr %s3117, 4
        %s3119 = smul.addr %s3118, 8
        %s3120 = scalar_lea.vmem %s3, %s3119
        %s3121 = smul.u32 %s20, 2
        %s3122 = sadd.s32 %s3121, %s21
        %p3123 = scmp.lt.s32.totalorder %s3122, 3
        %s3124 = scalar_select %p3123, %s3122, 3
        %s3125 = smul.addr %s3124, 4
        %s3126 = smul.addr %s3125, 8
        %s3127 = scalar_lea.vmem %s4, %s3126
        // Predicated region
        $region29: #{conv3d_block.2} parent=27 // pred_check
          %p3128 = pneg %p95
        $region30: #{conv3d_block.2} parent=27 // pred_check_branch
          %3130 = sbr.rel (%p3128) target = $region32
        $region31: #{conv3d_block.2} parent=27 // pred_region
          %s3131 = smul.u32 16, %s21
          %s3132 = smul.addr %s20, 128
          %s3133 = sadd.s32 %s3131, %s3132
          %s3134 = smul.addr %s3133, 4
          %s3135 = scalar_lea.vmem %s2, %s3134
          // Predicated region
          $region33: #{conv3d_block.2} parent=31 // pred_check
            _
          $region34: #{conv3d_block.2} parent=31 // pred_check_branch
            %3137 = sbr.rel (0) target = $region36
          $region35: #{conv3d_block.2} parent=31 // pred_region
            // Predicated region
            $region37: #{conv3d_block.2} parent=35 // pred_check
              _
            $region38: #{conv3d_block.2} parent=35 // pred_check_branch
              %3139 = sbr.rel (0) target = $region40
            $region39: #{conv3d_block.2} parent=35 // pred_region
              loop: start=0, step=1, limit=1
              $region41: #{conv3d_block.2} parent=39 // loop_pre_header
                _
              $region42: #{conv3d_block.2} parent=39 // loop_header
                %s3141 = sphi 0, %s3145
                %p3142 = scmp.ge.s32.totalorder %s3141, 1
                %s3146 = sphi %s3113, %s3113
                %s3147 = sphi %s3135, %s3135
              $region43: #{conv3d_block.2} parent=39 // loop_header_branch
                %3144 = sbr.rel (%p3142) target = $region47
              $region44: #{conv3d_block.2} parent=39 // loop_body
                %v3148 = vld [vmem:[%s3146] sm:$0xff]
                %3149 = vst [vmem:[%s3147] sm:$0xff] %v3148
                %v3150 = vld [vmem:[%s3146 + $0x8] sm:$0xff]
                %3151 = vst [vmem:[%s3147 + $0x8] sm:$0xff] %v3150
                %v3152 = vld [vmem:[%s3146 + $0x10] sm:$0xff]
                %3153 = vst [vmem:[%s3147 + $0x10] sm:$0xff] %v3152
                %v3154 = vld [vmem:[%s3146 + $0x18] sm:$0xff]
                %3155 = vst [vmem:[%s3147 + $0x18] sm:$0xff] %v3154
                %v3156 = vld [vmem:[%s3146 + $0x20] sm:$0xff]
                %3157 = vst [vmem:[%s3147 + $0x20] sm:$0xff] %v3156
                %v3158 = vld [vmem:[%s3146 + $0x28] sm:$0xff]
                %3159 = vst [vmem:[%s3147 + $0x28] sm:$0xff] %v3158
                %v3160 = vld [vmem:[%s3146 + $0x30] sm:$0xff]
                %3161 = vst [vmem:[%s3147 + $0x30] sm:$0xff] %v3160
                %v3162 = vld [vmem:[%s3146 + $0x38] sm:$0xff]
                %3163 = vst [vmem:[%s3147 + $0x38] sm:$0xff] %v3162
                %v3164 = vld [vmem:[%s3146 + $0x40] sm:$0xff]
                %3165 = vst [vmem:[%s3147 + $0x80] sm:$0xff] %v3164
                %v3166 = vld [vmem:[%s3146 + $0x48] sm:$0xff]
                %3167 = vst [vmem:[%s3147 + $0x88] sm:$0xff] %v3166
                %v3168 = vld [vmem:[%s3146 + $0x50] sm:$0xff]
                %3169 = vst [vmem:[%s3147 + $0x90] sm:$0xff] %v3168
                %v3170 = vld [vmem:[%s3146 + $0x58] sm:$0xff]
                %3171 = vst [vmem:[%s3147 + $0x98] sm:$0xff] %v3170
                %v3172 = vld [vmem:[%s3146 + $0x60] sm:$0xff]
                %3173 = vst [vmem:[%s3147 + $0xa0] sm:$0xff] %v3172
                %v3174 = vld [vmem:[%s3146 + $0x68] sm:$0xff]
                %3175 = vst [vmem:[%s3147 + $0xa8] sm:$0xff] %v3174
                %v3176 = vld [vmem:[%s3146 + $0x70] sm:$0xff]
                %3177 = vst [vmem:[%s3147 + $0xb0] sm:$0xff] %v3176
                %v3178 = vld [vmem:[%s3146 + $0x78] sm:$0xff]
                %3179 = vst [vmem:[%s3147 + $0xb8] sm:$0xff] %v3178
                %v3180 = vld [vmem:[%s3146 + $0x80] sm:$0xff]
                %3181 = vst [vmem:[%s3147 + $0x100] sm:$0xff] %v3180
                %v3182 = vld [vmem:[%s3146 + $0x88] sm:$0xff]
                %3183 = vst [vmem:[%s3147 + $0x108] sm:$0xff] %v3182
                %v3184 = vld [vmem:[%s3146 + $0x90] sm:$0xff]
                %3185 = vst [vmem:[%s3147 + $0x110] sm:$0xff] %v3184
                %v3186 = vld [vmem:[%s3146 + $0x98] sm:$0xff]
                %3187 = vst [vmem:[%s3147 + $0x118] sm:$0xff] %v3186
                %v3188 = vld [vmem:[%s3146 + $0xa0] sm:$0xff]
                %3189 = vst [vmem:[%s3147 + $0x120] sm:$0xff] %v3188
                %v3190 = vld [vmem:[%s3146 + $0xa8] sm:$0xff]
                %3191 = vst [vmem:[%s3147 + $0x128] sm:$0xff] %v3190
                %v3192 = vld [vmem:[%s3146 + $0xb0] sm:$0xff]
                %3193 = vst [vmem:[%s3147 + $0x130] sm:$0xff] %v3192
                %v3194 = vld [vmem:[%s3146 + $0xb8] sm:$0xff]
                %3195 = vst [vmem:[%s3147 + $0x138] sm:$0xff] %v3194
                %v3196 = vld [vmem:[%s3146 + $0xc0] sm:$0xff]
                %3197 = vst [vmem:[%s3147 + $0x180] sm:$0xff] %v3196
                %v3198 = vld [vmem:[%s3146 + $0xc8] sm:$0xff]
                %3199 = vst [vmem:[%s3147 + $0x188] sm:$0xff] %v3198
                %v3200 = vld [vmem:[%s3146 + $0xd0] sm:$0xff]
                %3201 = vst [vmem:[%s3147 + $0x190] sm:$0xff] %v3200
                %v3202 = vld [vmem:[%s3146 + $0xd8] sm:$0xff]
                %3203 = vst [vmem:[%s3147 + $0x198] sm:$0xff] %v3202
                %v3204 = vld [vmem:[%s3146 + $0xe0] sm:$0xff]
                %3205 = vst [vmem:[%s3147 + $0x1a0] sm:$0xff] %v3204
                %v3206 = vld [vmem:[%s3146 + $0xe8] sm:$0xff]
                %3207 = vst [vmem:[%s3147 + $0x1a8] sm:$0xff] %v3206
                %v3208 = vld [vmem:[%s3146 + $0xf0] sm:$0xff]
                %3209 = vst [vmem:[%s3147 + $0x1b0] sm:$0xff] %v3208
                %v3210 = vld [vmem:[%s3146 + $0xf8] sm:$0xff]
                %3211 = vst [vmem:[%s3147 + $0x1b8] sm:$0xff] %v3210
              $region45: #{conv3d_block.2} parent=39 // loop_footer
                %s3145 = sadd.s32 1, %s3141
              $region46: #{conv3d_block.2} parent=39 // loop_footer_branch
                %3140 = sbr.rel target = $region42
              $region47: #{conv3d_block.2} parent=39 // loop_exit
                _
            $region40: #{conv3d_block.2} parent=35 // pred_fallthru
              _
            // Predicated region
            $region48: #{conv3d_block.2} parent=35 // pred_check
              _
            $region49: #{conv3d_block.2} parent=35 // pred_check_branch
              %3213 = sbr.rel target = $region51
            $region50: #{conv3d_block.2} parent=35 // pred_region
              _
            $region51: #{conv3d_block.2} parent=35 // pred_fallthru
              _
          $region36: #{conv3d_block.2} parent=31 // pred_fallthru
            _
          %3214 = vnop
        $region32: #{conv3d_block.2} parent=27 // pred_fallthru
          _
        // Predicated region
        $region52: #{conv3d_block.2} parent=27 // pred_check
          %p3215 = pneg %p125
        $region53: #{conv3d_block.2} parent=27 // pred_check_branch
          %3217 = sbr.rel (%p3215) target = $region55
        $region54: #{conv3d_block.2} parent=27 // pred_region
          %s3218 = smul.u32 %s20, 2
          %s3219 = sadd.s32 %s3218, %s21
        $region55: #{conv3d_block.2} parent=27 // pred_fallthru
          _
        // Predicated region
        $region56: #{conv3d_block.2} parent=27 // pred_check
          %p3220 = pneg %p155
        $region57: #{conv3d_block.2} parent=27 // pred_check_branch
          %3222 = sbr.rel (%p3220) target = $region59
        $region58: #{conv3d_block.2} parent=27 // pred_region
          %s3223 = smul.u32 %s20, 2
          %s3224 = sadd.s32 %s3223, %s21
        $region59: #{conv3d_block.2} parent=27 // pred_fallthru
          _
      $region28: #{conv3d_block.2} parent=5 // pred_fallthru
        _
      %p3225 = scmp.le.s32.totalorder 2, %s11
      // Predicated region
      $region60: #{conv3d_block.2} parent=5 // pred_check
        %p3226 = pneg %p3225
      $region61: #{conv3d_block.2} parent=5 // pred_check_branch
        %3228 = sbr.rel (%p3226) target = $region63
      $region62: #{conv3d_block.2} parent=5 // pred_region
        %s3229 = ssub.s32 %s11, 2
        // Predicated region
        $region64: #{conv3d_block.2} parent=62 // pred_check
          %p3230 = pneg %p101
        $region65: #{conv3d_block.2} parent=62 // pred_check_branch
          %3232 = sbr.rel (%p3230) target = $region67
        $region66: #{conv3d_block.2} parent=62 // pred_region
          %s3233 = sand.u32 %s86, 1
          %s3234 = sand.u32 %s86, 1
          %s3235 = smul.addr %s3234, 256
          %s3236 = scalar_lea.vmem [#allocation2], %s3235
        $region67: #{conv3d_block.2} parent=62 // pred_fallthru
          _
        // Predicated region
        $region68: #{conv3d_block.2} parent=62 // pred_check
          %p3237 = pneg %p131
        $region69: #{conv3d_block.2} parent=62 // pred_check_branch
          %3239 = sbr.rel (%p3237) target = $region71
        $region70: #{conv3d_block.2} parent=62 // pred_region
          %s3240 = smul.u32 %s22, 2
          %s3241 = sadd.s32 %s3240, %s23
          %p3242 = scmp.lt.s32.totalorder %s3241, 3
          %s3243 = scalar_select %p3242, %s3241, 3
          %s3244 = smul.addr %s3243, 4
          %s3245 = smul.addr %s3244, 8
          %s3246 = scalar_lea.vmem %s3, %s3245
        $region71: #{conv3d_block.2} parent=62 // pred_fallthru
          _
        // Predicated region
        $region72: #{conv3d_block.2} parent=62 // pred_check
          %p3247 = pneg %p161
        $region73: #{conv3d_block.2} parent=62 // pred_check_branch
          %3249 = sbr.rel (%p3247) target = $region75
        $region74: #{conv3d_block.2} parent=62 // pred_region
          %s3250 = smul.u32 %s22, 2
          %s3251 = sadd.s32 %s3250, %s23
          %p3252 = scmp.lt.s32.totalorder %s3251, 3
          %s3253 = scalar_select %p3252, %s3251, 3
          %s3254 = smul.addr %s3253, 4
          %s3255 = smul.addr %s3254, 8
          %s3256 = scalar_lea.vmem %s4, %s3255
        $region75: #{conv3d_block.2} parent=62 // pred_fallthru
          _
      $region63: #{conv3d_block.2} parent=5 // pred_fallthru
        _
    $region6: #{conv3d_block.2} parent=1 // loop_footer
      %s15 = sadd.s32 1, %s11
    $region7: #{conv3d_block.2} parent=1 // loop_footer_branch
      %10 = sbr.rel target = $region3
    $region8: #{conv3d_block.2} parent=1 // loop_exit
      _

// kernel: conv3d_block.3
$region0: #{conv3d_block.3}
  #allocation0 [shape = 'u32[]', space=smem, size = 0x4, offset = 0x4, fixed_abs, tag = 'smem constant byte address 0x4 - core index']
  #allocation1 [shape = 'u32[144,128]{1,0:T(1,128)}', space=vmem, size = 0x12000, scoped, tag = 'internal scratch']
  %s0 = inlined_call_operand.vmem [shape: bf16[2,32,4096], index: 0, kind: input, shape index: {}, may-alias: {0,2}]
  %s1 = inlined_call_operand.vmem [shape: f32[32,2], index: 1, kind: input, shape index: {}]
  %s2 = inlined_call_operand.vmem [shape: bf16[2,32,4096], index: 2, kind: output, shape index: {}, may-alias: {0,2}]
  %s3 = sld [smem:[#allocation0]]
  $region41: #{conv3d_block.3} parent=0
    _
  %s5 = ssub.s32 1, %s3
  %s6 = scalar_select 0, %s5, %s3
  loop: start=0, step=1, limit=4
  $region2: #{conv3d_block.3} parent=0 // loop_pre_header
    _
  $region3: #{conv3d_block.3} parent=0 // loop_header
    %s8 = sphi 0, %s12
    %p9 = scmp.ge.s32.totalorder %s8, 4
    %s15 = sphi 0, %s27
    %s16 = sphi 0, %s23
    %s17 = sphi 0, %s15
    %s18 = sphi 0, %s16
    %s19 = sphi 0, %s17
    %s20 = sphi 0, %s18
    %s32 = sphi 0, %s34
    %s35 = sphi 0, %s32
    %s36 = sphi 0, %s35
    %s52 = sphi 0, %s36
    %s56 = sphi 0, %s56
    %s58 = sphi 0, %s56
    %s59 = sphi 0, %s58
    %s73 = sphi 0, %s59
    %s81 = sphi 0, %s83
    %s84 = sphi 0, %s81
    %s85 = sphi 0, %s84
    %s101 = sphi 0, %s85
  $region4: #{conv3d_block.3} parent=0 // loop_header_branch
    %11 = sbr.rel (%p9) target = $region8
  $region5: #{conv3d_block.3} parent=0 // loop_body
    %s13 = ssub.s32 %s8, 1
    %s14 = ssub.s32 %s8, 2
    %s21 = sadd.s32 1, %s16
    %p22 = scmp.ge.s32.totalorder %s21, 1
    %s23 = scalar_select %p22, 0, %s21
    %s24 = sadd.s32 1, %s15
    %s25 = scalar_select %p22, %s24, %s15
    %p26 = scmp.ge.s32.totalorder %s25, 2
    %s27 = scalar_select %p26, 0, %s25
    %s28 = ssub.s32 %s15, %s27
    %s29 = ssub.s32 %s16, %s23
    %s30 = sor.u32 %s28, %s29
    %p31 = scmp.eq.s32.totalorder %s30, 0
    %s33 = sadd.s32 %s32, 1
    %s34 = scalar_select %p31, %s32, %s33
    %p37 = pneg %p31
    %p38 = scmp.eq.s32.totalorder %s8, 1
    %p39 = por %p37, %p38
    %p40 = scmp.ne.s32.totalorder %s32, %s35
    %p41 = scmp.eq.s32.totalorder %s8, 0
    %p42 = por %p40, %p41
    %p43 = scmp.ne.s32.totalorder %s32, %s35
    %p44 = scmp.eq.s32.totalorder %s13, 1
    %p45 = por %p43, %p44
    %p46 = scmp.ne.s32.totalorder %s35, %s36
    %p47 = scmp.eq.s32.totalorder %s13, 0
    %p48 = por %p46, %p47
    %p49 = scmp.ne.s32.totalorder %s35, %s36
    %p50 = scmp.eq.s32.totalorder %s14, 1
    %p51 = por %p49, %p50
    %p53 = scmp.ne.s32.totalorder %s36, %s52
    %p54 = scmp.eq.s32.totalorder %s14, 0
    %p55 = por %p53, %p54
    %s57 = sadd.s32 %s56, 1
    %p60 = scmp.eq.s32.totalorder %s8, 1
    %p61 = scmp.ne.s32.totalorder %s56, %s58
    %p62 = scmp.eq.s32.totalorder %s8, 0
    %p63 = por %p61, %p62
    %p64 = scmp.ne.s32.totalorder %s56, %s58
    %p65 = scmp.eq.s32.totalorder %s13, 1
    %p66 = por %p64, %p65
    %p67 = scmp.ne.s32.totalorder %s58, %s59
    %p68 = scmp.eq.s32.totalorder %s13, 0
    %p69 = por %p67, %p68
    %p70 = scmp.ne.s32.totalorder %s58, %s59
    %p71 = scmp.eq.s32.totalorder %s14, 1
    %p72 = por %p70, %p71
    %p74 = scmp.ne.s32.totalorder %s59, %s73
    %p75 = scmp.eq.s32.totalorder %s14, 0
    %p76 = por %p74, %p75
    %s77 = ssub.s32 %s15, %s27
    %s78 = ssub.s32 %s16, %s23
    %s79 = sor.u32 %s77, %s78
    %p80 = scmp.eq.s32.totalorder %s79, 0
    %s82 = sadd.s32 %s81, 1
    %s83 = scalar_select %p80, %s81, %s82
    %p86 = pneg %p80
    %p87 = scmp.eq.s32.totalorder %s8, 1
    %p88 = por %p86, %p87
    %p89 = scmp.ne.s32.totalorder %s81, %s84
    %p90 = scmp.eq.s32.totalorder %s8, 0
    %p91 = por %p89, %p90
    %p92 = scmp.ne.s32.totalorder %s81, %s84
    %p93 = scmp.eq.s32.totalorder %s13, 1
    %p94 = por %p92, %p93
    %p95 = scmp.ne.s32.totalorder %s84, %s85
    %p96 = scmp.eq.s32.totalorder %s13, 0
    %p97 = por %p95, %p96
    %p98 = scmp.ne.s32.totalorder %s84, %s85
    %p99 = scmp.eq.s32.totalorder %s14, 1
    %p100 = por %p98, %p99
    %p102 = scmp.ne.s32.totalorder %s85, %s101
    %p103 = scmp.eq.s32.totalorder %s14, 0
    %p104 = por %p102, %p103
    %p105 = scmp.le.s32.totalorder 1, %s8
    %p106 = scmp.lt.s32.totalorder %s8, 3
    %p107 = pnand %p105, %p106
    %p108 = pneg %p107
    // Predicated region
    $region9: #{conv3d_block.3} parent=5 // pred_check
      _
    $region10: #{conv3d_block.3} parent=5 // pred_check_branch
      %110 = sbr.rel (%p107) target = $region12
    $region11: #{conv3d_block.3} parent=5 // pred_region
      %s111 = ssub.s32 %s8, 1
      // Predicated region
      $region13: #{conv3d_block.3} parent=11 // pred_check
        %p112 = pneg %p69
      $region14: #{conv3d_block.3} parent=11 // pred_check_branch
        %114 = sbr.rel (%p112) target = $region16
      $region15: #{conv3d_block.3} parent=11 // pred_region
        _
      $region16: #{conv3d_block.3} parent=11 // pred_fallthru
        _
    $region12: #{conv3d_block.3} parent=5 // pred_fallthru
      _
    %p115 = scmp.lt.s32.totalorder %s8, 2
    // Predicated region
    $region17: #{conv3d_block.3} parent=5 // pred_check
      %p116 = pneg %p115
    $region18: #{conv3d_block.3} parent=5 // pred_check_branch
      %118 = sbr.rel (%p116) target = $region20
    $region19: #{conv3d_block.3} parent=5 // pred_region
      // Predicated region
      $region21: #{conv3d_block.3} parent=19 // pred_check
        %p119 = pneg %p42
      $region22: #{conv3d_block.3} parent=19 // pred_check_branch
        %121 = sbr.rel (%p119) target = $region24
      $region23: #{conv3d_block.3} parent=19 // pred_region
        %s122 = smul.u32 32, %s16
        %p123 = scmp.lt.s32.totalorder %s15, 1
        %s124 = scalar_select %p123, %s15, 1
        %p125 = scmp.lt.s32.totalorder %s122, 31
        %s126 = scalar_select %p125, %s122, 31
        %s127 = smul.addr %s124, 128
        %s128 = sadd.s32 %s126, %s127
        %s129 = smul.addr %s128, 4
        %s130 = scalar_lea.vmem %s0, %s129
        %s131 = smul.u32 32, %s16
      $region24: #{conv3d_block.3} parent=19 // pred_fallthru
        _
    $region20: #{conv3d_block.3} parent=5 // pred_fallthru
      _
    %p132 = scmp.le.s32.totalorder 1, %s8
    %p133 = scmp.lt.s32.totalorder %s8, 3
    %p134 = pnand %p132, %p133
    %p135 = pneg %p134
    // Predicated region
    $region25: #{conv3d_block.3} parent=5 // pred_check
      _
    $region26: #{conv3d_block.3} parent=5 // pred_check_branch
      %137 = sbr.rel (%p134) target = $region28
    $region27: #{conv3d_block.3} parent=5 // pred_region
      %s138 = ssub.s32 %s8, 1
      %s139 = smul.u32 32, %s18
      %p140 = scmp.lt.s32.totalorder %s17, 1
      %s141 = scalar_select %p140, %s17, 1
      %p142 = scmp.lt.s32.totalorder %s139, 31
      %s143 = scalar_select %p142, %s139, 31
      %s144 = smul.addr %s141, 128
      %s145 = sadd.s32 %s143, %s144
      %s146 = smul.addr %s145, 4
      %s147 = scalar_lea.vmem %s0, %s146
      %p148 = pneg %p48
      %p149 = pneg %p45
      %p150 = pneg %p69
      %p151 = pneg %p66
      %p152 = pneg %p97
      %p153 = pneg %p94
      %s154 = smul.u32 32, %s18
      %p155 = scmp.lt.s32.totalorder %s17, 1
      %s156 = scalar_select %p155, %s17, 1
      %p157 = scmp.lt.s32.totalorder %s154, 31
      %s158 = scalar_select %p157, %s154, 31
      %s159 = smul.addr %s156, 128
      %s160 = sadd.s32 %s158, %s159
      %s161 = smul.addr %s160, 4
      %s162 = scalar_lea.vmem %s2, %s161
      %s163 = smul.u32 32, %s18
      %p164 = scmp.lt.s32.totalorder %s17, 1
      %s165 = scalar_select %p164, %s17, 1
      %p166 = scmp.lt.s32.totalorder %s163, 31
      %s167 = scalar_select %p166, %s163, 31
      %s168 = smul.addr %s165, 128
      %s169 = sadd.s32 %s167, %s168
      %s170 = smul.addr %s169, 4
      %s171 = scalar_lea.vmem %s0, %s170
      %s172 = smul.u32 32, %s18
      %s173 = smul.u32 32, %s18
      %p174 = scmp.lt.s32.totalorder %s17, 1
      %s175 = scalar_select %p174, %s17, 1
      %p176 = scmp.lt.s32.totalorder %s173, 31
      %s177 = scalar_select %p176, %s173, 31
      %s178 = smul.addr %s175, 128
      %s179 = sadd.s32 %s177, %s178
      %s180 = smul.addr %s179, 4
      %s181 = scalar_lea.vmem %s2, %s180
      %s182 = smul.u32 32, %s18
      %v183 = vld [vmem:[%s1] sm:$0xff]
      %v184 = vld [vmem:[%s1 + $0x8] sm:$0xff]
      %v185 = vld [vmem:[%s1 + $0x10] sm:$0xff]
      %v186 = vld [vmem:[%s1 + $0x18] sm:$0xff]
      %v187 = vld [vmem:[%s171] sm:$0xff]
      %v188 = vld [vmem:[%s171 + $0x8] sm:$0xff]
      %v189 = vld [vmem:[%s171 + $0x10] sm:$0xff]
      %v190 = vld [vmem:[%s171 + $0x18] sm:$0xff]
      %v191 = vld [vmem:[%s171 + $0x20] sm:$0xff]
      %v192 = vld [vmem:[%s171 + $0x28] sm:$0xff]
      %v193 = vld [vmem:[%s171 + $0x30] sm:$0xff]
      %v194 = vld [vmem:[%s171 + $0x38] sm:$0xff]
      %v195 = vld [vmem:[%s171 + $0x40] sm:$0xff]
      %v196 = vld [vmem:[%s171 + $0x48] sm:$0xff]
      %v197 = vld [vmem:[%s171 + $0x50] sm:$0xff]
      %v198 = vld [vmem:[%s171 + $0x58] sm:$0xff]
      %v199 = vld [vmem:[%s171 + $0x60] sm:$0xff]
      %v200 = vld [vmem:[%s171 + $0x68] sm:$0xff]
      %v201 = vld [vmem:[%s171 + $0x70] sm:$0xff]
      %v202 = vld [vmem:[%s171 + $0x78] sm:$0xff]
      %v203 = vld [vmem:[%s171 + $0x80] sm:$0xff]
      %v204 = vld [vmem:[%s171 + $0x88] sm:$0xff]
      %v205 = vld [vmem:[%s171 + $0x90] sm:$0xff]
      %v206 = vld [vmem:[%s171 + $0x98] sm:$0xff]
      %v207 = vld [vmem:[%s171 + $0xa0] sm:$0xff]
      %v208 = vld [vmem:[%s171 + $0xa8] sm:$0xff]
      %v209 = vld [vmem:[%s171 + $0xb0] sm:$0xff]
      %v210 = vld [vmem:[%s171 + $0xb8] sm:$0xff]
      %v211 = vld [vmem:[%s171 + $0xc0] sm:$0xff]
      %v212 = vld [vmem:[%s171 + $0xc8] sm:$0xff]
      %v213 = vld [vmem:[%s171 + $0xd0] sm:$0xff]
      %v214 = vld [vmem:[%s171 + $0xd8] sm:$0xff]
      %v215 = vld [vmem:[%s171 + $0xe0] sm:$0xff]
      %v216 = vld [vmem:[%s171 + $0xe8] sm:$0xff]
      %v217 = vld [vmem:[%s171 + $0xf0] sm:$0xff]
      %v218 = vld [vmem:[%s171 + $0xf8] sm:$0xff]
      %v219 = vld [vmem:[%s171 + $0x100] sm:$0xff]
      %v220 = vld [vmem:[%s171 + $0x108] sm:$0xff]
      %v221 = vld [vmem:[%s171 + $0x110] sm:$0xff]
      %v222 = vld [vmem:[%s171 + $0x118] sm:$0xff]
      %v223 = vld [vmem:[%s171 + $0x120] sm:$0xff]
      %v224 = vld [vmem:[%s171 + $0x128] sm:$0xff]
      %v225 = vld [vmem:[%s171 + $0x130] sm:$0xff]
      %v226 = vld [vmem:[%s171 + $0x138] sm:$0xff]
      %v227 = vld [vmem:[%s171 + $0x140] sm:$0xff]
      %v228 = vld [vmem:[%s171 + $0x148] sm:$0xff]
      %v229 = vld [vmem:[%s171 + $0x150] sm:$0xff]
      %v230 = vld [vmem:[%s171 + $0x158] sm:$0xff]
      %v231 = vld [vmem:[%s171 + $0x160] sm:$0xff]
      %v232 = vld [vmem:[%s171 + $0x168] sm:$0xff]
      %v233 = vld [vmem:[%s171 + $0x170] sm:$0xff]
      %v234 = vld [vmem:[%s171 + $0x178] sm:$0xff]
      %v235 = vld [vmem:[%s171 + $0x180] sm:$0xff]
      %v236 = vld [vmem:[%s171 + $0x188] sm:$0xff]
      %v237 = vld [vmem:[%s171 + $0x190] sm:$0xff]
      %v238 = vld [vmem:[%s171 + $0x198] sm:$0xff]
      %v239 = vld [vmem:[%s171 + $0x1a0] sm:$0xff]
      %v240 = vld [vmem:[%s171 + $0x1a8] sm:$0xff]
      %v241 = vld [vmem:[%s171 + $0x1b0] sm:$0xff]
      %v242 = vld [vmem:[%s171 + $0x1b8] sm:$0xff]
      %v243 = vld [vmem:[%s171 + $0x1c0] sm:$0xff]
      %v244 = vld [vmem:[%s171 + $0x1c8] sm:$0xff]
      %v245 = vld [vmem:[%s171 + $0x1d0] sm:$0xff]
      %v246 = vld [vmem:[%s171 + $0x1d8] sm:$0xff]
      %v247 = vld [vmem:[%s171 + $0x1e0] sm:$0xff]
      %v248 = vld [vmem:[%s171 + $0x1e8] sm:$0xff]
      %v249 = vld [vmem:[%s171 + $0x1f0] sm:$0xff]
      %v250 = vld [vmem:[%s171 + $0x1f8] sm:$0xff]
      %v251 = vunpack.c.l.bf16 %v187
      %v252 = vunpack.c.h.bf16 %v187
      %v253 = vunpack.c.l.bf16 %v188
      %v254 = vunpack.c.h.bf16 %v188
      %v255 = vunpack.c.l.bf16 %v189
      %v256 = vunpack.c.h.bf16 %v189
      %v257 = vunpack.c.l.bf16 %v190
      %v258 = vunpack.c.h.bf16 %v190
      %v259 = vunpack.c.l.bf16 %v191
      %v260 = vunpack.c.h.bf16 %v191
      %v261 = vunpack.c.l.bf16 %v192
      %v262 = vunpack.c.h.bf16 %v192
      %v263 = vunpack.c.l.bf16 %v193
      %v264 = vunpack.c.h.bf16 %v193
      %v265 = vunpack.c.l.bf16 %v194
      %v266 = vunpack.c.h.bf16 %v194
      %v267 = vunpack.c.l.bf16 %v195
      %v268 = vunpack.c.h.bf16 %v195
      %v269 = vunpack.c.l.bf16 %v196
      %v270 = vunpack.c.h.bf16 %v196
      %v271 = vunpack.c.l.bf16 %v197
      %v272 = vunpack.c.h.bf16 %v197
      %v273 = vunpack.c.l.bf16 %v198
      %v274 = vunpack.c.h.bf16 %v198
      %v275 = vunpack.c.l.bf16 %v199
      %v276 = vunpack.c.h.bf16 %v199
      %v277 = vunpack.c.l.bf16 %v200
      %v278 = vunpack.c.h.bf16 %v200
      %v279 = vunpack.c.l.bf16 %v201
      %v280 = vunpack.c.h.bf16 %v201
      %v281 = vunpack.c.l.bf16 %v202
      %v282 = vunpack.c.h.bf16 %v202
      %v283 = vunpack.c.l.bf16 %v203
      %v284 = vunpack.c.h.bf16 %v203
      %v285 = vunpack.c.l.bf16 %v204
      %v286 = vunpack.c.h.bf16 %v204
      %v287 = vunpack.c.l.bf16 %v205
      %v288 = vunpack.c.h.bf16 %v205
      %v289 = vunpack.c.l.bf16 %v206
      %v290 = vunpack.c.h.bf16 %v206
      %v291 = vunpack.c.l.bf16 %v207
      %v292 = vunpack.c.h.bf16 %v207
      %v293 = vunpack.c.l.bf16 %v208
      %v294 = vunpack.c.h.bf16 %v208
      %v295 = vunpack.c.l.bf16 %v209
      %v296 = vunpack.c.h.bf16 %v209
      %v297 = vunpack.c.l.bf16 %v210
      %v298 = vunpack.c.h.bf16 %v210
      %v299 = vunpack.c.l.bf16 %v211
      %v300 = vunpack.c.h.bf16 %v211
      %v301 = vunpack.c.l.bf16 %v212
      %v302 = vunpack.c.h.bf16 %v212
      %v303 = vunpack.c.l.bf16 %v213
      %v304 = vunpack.c.h.bf16 %v213
      %v305 = vunpack.c.l.bf16 %v214
      %v306 = vunpack.c.h.bf16 %v214
      %v307 = vunpack.c.l.bf16 %v215
      %v308 = vunpack.c.h.bf16 %v215
      %v309 = vunpack.c.l.bf16 %v216
      %v310 = vunpack.c.h.bf16 %v216
      %v311 = vunpack.c.l.bf16 %v217
      %v312 = vunpack.c.h.bf16 %v217
      %v313 = vunpack.c.l.bf16 %v218
      %v314 = vunpack.c.h.bf16 %v218
      %v315 = vunpack.c.l.bf16 %v219
      %v316 = vunpack.c.h.bf16 %v219
      %v317 = vunpack.c.l.bf16 %v220
      %v318 = vunpack.c.h.bf16 %v220
      %v319 = vunpack.c.l.bf16 %v221
      %v320 = vunpack.c.h.bf16 %v221
      %v321 = vunpack.c.l.bf16 %v222
      %v322 = vunpack.c.h.bf16 %v222
      %v323 = vunpack.c.l.bf16 %v223
      %v324 = vunpack.c.h.bf16 %v223
      %v325 = vunpack.c.l.bf16 %v224
      %v326 = vunpack.c.h.bf16 %v224
      %v327 = vunpack.c.l.bf16 %v225
      %v328 = vunpack.c.h.bf16 %v225
      %v329 = vunpack.c.l.bf16 %v226
      %v330 = vunpack.c.h.bf16 %v226
      %v331 = vunpack.c.l.bf16 %v227
      %v332 = vunpack.c.h.bf16 %v227
      %v333 = vunpack.c.l.bf16 %v228
      %v334 = vunpack.c.h.bf16 %v228
      %v335 = vunpack.c.l.bf16 %v229
      %v336 = vunpack.c.h.bf16 %v229
      %v337 = vunpack.c.l.bf16 %v230
      %v338 = vunpack.c.h.bf16 %v230
      %v339 = vunpack.c.l.bf16 %v231
      %v340 = vunpack.c.h.bf16 %v231
      %v341 = vunpack.c.l.bf16 %v232
      %v342 = vunpack.c.h.bf16 %v232
      %v343 = vunpack.c.l.bf16 %v233
      %v344 = vunpack.c.h.bf16 %v233
      %v345 = vunpack.c.l.bf16 %v234
      %v346 = vunpack.c.h.bf16 %v234
      %v347 = vunpack.c.l.bf16 %v235
      %v348 = vunpack.c.h.bf16 %v235
      %v349 = vunpack.c.l.bf16 %v236
      %v350 = vunpack.c.h.bf16 %v236
      %v351 = vunpack.c.l.bf16 %v237
      %v352 = vunpack.c.h.bf16 %v237
      %v353 = vunpack.c.l.bf16 %v238
      %v354 = vunpack.c.h.bf16 %v238
      %v355 = vunpack.c.l.bf16 %v239
      %v356 = vunpack.c.h.bf16 %v239
      %v357 = vunpack.c.l.bf16 %v240
      %v358 = vunpack.c.h.bf16 %v240
      %v359 = vunpack.c.l.bf16 %v241
      %v360 = vunpack.c.h.bf16 %v241
      %v361 = vunpack.c.l.bf16 %v242
      %v362 = vunpack.c.h.bf16 %v242
      %v363 = vunpack.c.l.bf16 %v243
      %v364 = vunpack.c.h.bf16 %v243
      %v365 = vunpack.c.l.bf16 %v244
      %v366 = vunpack.c.h.bf16 %v244
      %v367 = vunpack.c.l.bf16 %v245
      %v368 = vunpack.c.h.bf16 %v245
      %v369 = vunpack.c.l.bf16 %v246
      %v370 = vunpack.c.h.bf16 %v246
      %v371 = vunpack.c.l.bf16 %v247
      %v372 = vunpack.c.h.bf16 %v247
      %v373 = vunpack.c.l.bf16 %v248
      %v374 = vunpack.c.h.bf16 %v248
      %v375 = vunpack.c.l.bf16 %v249
      %v376 = vunpack.c.h.bf16 %v249
      %v377 = vunpack.c.l.bf16 %v250
      %v378 = vunpack.c.h.bf16 %v250
      %380 = vset.pattern.permute.xlu0 0
      %381 = vperm.xlu0 %380, %v183
      %v382 = vpop.permute.xlu0 %381
      %385 = vset.pattern.permute.xlu0 0
      %386 = vperm.xlu0 %385, %v184
      %v387 = vpop.permute.xlu0 %386
      %390 = vset.pattern.permute.xlu0 0
      %391 = vperm.xlu0 %390, %v185
      %v392 = vpop.permute.xlu0 %391
      %395 = vset.pattern.permute.xlu0 0
      %396 = vperm.xlu0 %395, %v186
      %v397 = vpop.permute.xlu0 %396
      %v399 = vmul.f32 %v251, %v382
      %v400 = vmul.f32 %v252, %v382
      %v401 = vmul.f32 %v253, %v382
      %v402 = vmul.f32 %v254, %v382
      %v403 = vmul.f32 %v255, %v382
      %v404 = vmul.f32 %v256, %v382
      %v405 = vmul.f32 %v257, %v382
      %v406 = vmul.f32 %v258, %v382
      %v407 = vmul.f32 %v259, %v382
      %v408 = vmul.f32 %v260, %v382
      %v409 = vmul.f32 %v261, %v382
      %v410 = vmul.f32 %v262, %v382
      %v411 = vmul.f32 %v263, %v382
      %v412 = vmul.f32 %v264, %v382
      %v413 = vmul.f32 %v265, %v382
      %v414 = vmul.f32 %v266, %v382
      %v415 = vmul.f32 %v267, %v382
      %v416 = vmul.f32 %v268, %v382
      %v417 = vmul.f32 %v269, %v382
      %v418 = vmul.f32 %v270, %v382
      %v419 = vmul.f32 %v271, %v382
      %v420 = vmul.f32 %v272, %v382
      %v421 = vmul.f32 %v273, %v382
      %v422 = vmul.f32 %v274, %v382
      %v423 = vmul.f32 %v275, %v382
      %v424 = vmul.f32 %v276, %v382
      %v425 = vmul.f32 %v277, %v382
      %v426 = vmul.f32 %v278, %v382
      %v427 = vmul.f32 %v279, %v382
      %v428 = vmul.f32 %v280, %v382
      %v429 = vmul.f32 %v281, %v382
      %v430 = vmul.f32 %v282, %v382
      %v431 = vmul.f32 %v283, %v387
      %v432 = vmul.f32 %v284, %v387
      %v433 = vmul.f32 %v285, %v387
      %v434 = vmul.f32 %v286, %v387
      %v435 = vmul.f32 %v287, %v387
      %v436 = vmul.f32 %v288, %v387
      %v437 = vmul.f32 %v289, %v387
      %v438 = vmul.f32 %v290, %v387
      %v439 = vmul.f32 %v291, %v387
      %v440 = vmul.f32 %v292, %v387
      %v441 = vmul.f32 %v293, %v387
      %v442 = vmul.f32 %v294, %v387
      %v443 = vmul.f32 %v295, %v387
      %v444 = vmul.f32 %v296, %v387
      %v445 = vmul.f32 %v297, %v387
      %v446 = vmul.f32 %v298, %v387
      %v447 = vmul.f32 %v299, %v387
      %v448 = vmul.f32 %v300, %v387
      %v449 = vmul.f32 %v301, %v387
      %v450 = vmul.f32 %v302, %v387
      %v451 = vmul.f32 %v303, %v387
      %v452 = vmul.f32 %v304, %v387
      %v453 = vmul.f32 %v305, %v387
      %v454 = vmul.f32 %v306, %v387
      %v455 = vmul.f32 %v307, %v387
      %v456 = vmul.f32 %v308, %v387
      %v457 = vmul.f32 %v309, %v387
      %v458 = vmul.f32 %v310, %v387
      %v459 = vmul.f32 %v311, %v387
      %v460 = vmul.f32 %v312, %v387
      %v461 = vmul.f32 %v313, %v387
      %v462 = vmul.f32 %v314, %v387
      %v463 = vmul.f32 %v315, %v392
      %v464 = vmul.f32 %v316, %v392
      %v465 = vmul.f32 %v317, %v392
      %v466 = vmul.f32 %v318, %v392
      %v467 = vmul.f32 %v319, %v392
      %v468 = vmul.f32 %v320, %v392
      %v469 = vmul.f32 %v321, %v392
      %v470 = vmul.f32 %v322, %v392
      %v471 = vmul.f32 %v323, %v392
      %v472 = vmul.f32 %v324, %v392
      %v473 = vmul.f32 %v325, %v392
      %v474 = vmul.f32 %v326, %v392
      %v475 = vmul.f32 %v327, %v392
      %v476 = vmul.f32 %v328, %v392
      %v477 = vmul.f32 %v329, %v392
      %v478 = vmul.f32 %v330, %v392
      %v479 = vmul.f32 %v331, %v392
      %v480 = vmul.f32 %v332, %v392
      %v481 = vmul.f32 %v333, %v392
      %v482 = vmul.f32 %v334, %v392
      %v483 = vmul.f32 %v335, %v392
      %v484 = vmul.f32 %v336, %v392
      %v485 = vmul.f32 %v337, %v392
      %v486 = vmul.f32 %v338, %v392
      %v487 = vmul.f32 %v339, %v392
      %v488 = vmul.f32 %v340, %v392
      %v489 = vmul.f32 %v341, %v392
      %v490 = vmul.f32 %v342, %v392
      %v491 = vmul.f32 %v343, %v392
      %v492 = vmul.f32 %v344, %v392
      %v493 = vmul.f32 %v345, %v392
      %v494 = vmul.f32 %v346, %v392
      %v495 = vmul.f32 %v347, %v397
      %v496 = vmul.f32 %v348, %v397
      %v497 = vmul.f32 %v349, %v397
      %v498 = vmul.f32 %v350, %v397
      %v499 = vmul.f32 %v351, %v397
      %v500 = vmul.f32 %v352, %v397
      %v501 = vmul.f32 %v353, %v397
      %v502 = vmul.f32 %v354, %v397
      %v503 = vmul.f32 %v355, %v397
      %v504 = vmul.f32 %v356, %v397
      %v505 = vmul.f32 %v357, %v397
      %v506 = vmul.f32 %v358, %v397
      %v507 = vmul.f32 %v359, %v397
      %v508 = vmul.f32 %v360, %v397
      %v509 = vmul.f32 %v361, %v397
      %v510 = vmul.f32 %v362, %v397
      %v511 = vmul.f32 %v363, %v397
      %v512 = vmul.f32 %v364, %v397
      %v513 = vmul.f32 %v365, %v397
      %v514 = vmul.f32 %v366, %v397
      %v515 = vmul.f32 %v367, %v397
      %v516 = vmul.f32 %v368, %v397
      %v517 = vmul.f32 %v369, %v397
      %v518 = vmul.f32 %v370, %v397
      %v519 = vmul.f32 %v371, %v397
      %v520 = vmul.f32 %v372, %v397
      %v521 = vmul.f32 %v373, %v397
      %v522 = vmul.f32 %v374, %v397
      %v523 = vmul.f32 %v375, %v397
      %v524 = vmul.f32 %v376, %v397
      %v525 = vmul.f32 %v377, %v397
      %v526 = vmul.f32 %v378, %v397
      %527 = vset.pattern.permute.xlu0 1
      %528 = vperm.xlu0 %527, %v183
      %v529 = vpop.permute.xlu0 %528
      %531 = vset.pattern.permute.xlu0 1
      %532 = vperm.xlu0 %531, %v184
      %v533 = vpop.permute.xlu0 %532
      %535 = vset.pattern.permute.xlu0 1
      %536 = vperm.xlu0 %535, %v185
      %v537 = vpop.permute.xlu0 %536
      %539 = vset.pattern.permute.xlu0 1
      %540 = vperm.xlu0 %539, %v186
      %v541 = vpop.permute.xlu0 %540
      %v543 = vadd.f32 %v399, %v529
      %v544 = vadd.f32 %v400, %v529
      %v545 = vadd.f32 %v401, %v529
      %v546 = vadd.f32 %v402, %v529
      %v547 = vadd.f32 %v403, %v529
      %v548 = vadd.f32 %v404, %v529
      %v549 = vadd.f32 %v405, %v529
      %v550 = vadd.f32 %v406, %v529
      %v551 = vadd.f32 %v407, %v529
      %v552 = vadd.f32 %v408, %v529
      %v553 = vadd.f32 %v409, %v529
      %v554 = vadd.f32 %v410, %v529
      %v555 = vadd.f32 %v411, %v529
      %v556 = vadd.f32 %v412, %v529
      %v557 = vadd.f32 %v413, %v529
      %v558 = vadd.f32 %v414, %v529
      %v559 = vadd.f32 %v415, %v529
      %v560 = vadd.f32 %v416, %v529
      %v561 = vadd.f32 %v417, %v529
      %v562 = vadd.f32 %v418, %v529
      %v563 = vadd.f32 %v419, %v529
      %v564 = vadd.f32 %v420, %v529
      %v565 = vadd.f32 %v421, %v529
      %v566 = vadd.f32 %v422, %v529
      %v567 = vadd.f32 %v423, %v529
      %v568 = vadd.f32 %v424, %v529
      %v569 = vadd.f32 %v425, %v529
      %v570 = vadd.f32 %v426, %v529
      %v571 = vadd.f32 %v427, %v529
      %v572 = vadd.f32 %v428, %v529
      %v573 = vadd.f32 %v429, %v529
      %v574 = vadd.f32 %v430, %v529
      %v575 = vadd.f32 %v431, %v533
      %v576 = vadd.f32 %v432, %v533
      %v577 = vadd.f32 %v433, %v533
      %v578 = vadd.f32 %v434, %v533
      %v579 = vadd.f32 %v435, %v533
      %v580 = vadd.f32 %v436, %v533
      %v581 = vadd.f32 %v437, %v533
      %v582 = vadd.f32 %v438, %v533
      %v583 = vadd.f32 %v439, %v533
      %v584 = vadd.f32 %v440, %v533
      %v585 = vadd.f32 %v441, %v533
      %v586 = vadd.f32 %v442, %v533
      %v587 = vadd.f32 %v443, %v533
      %v588 = vadd.f32 %v444, %v533
      %v589 = vadd.f32 %v445, %v533
      %v590 = vadd.f32 %v446, %v533
      %v591 = vadd.f32 %v447, %v533
      %v592 = vadd.f32 %v448, %v533
      %v593 = vadd.f32 %v449, %v533
      %v594 = vadd.f32 %v450, %v533
      %v595 = vadd.f32 %v451, %v533
      %v596 = vadd.f32 %v452, %v533
      %v597 = vadd.f32 %v453, %v533
      %v598 = vadd.f32 %v454, %v533
      %v599 = vadd.f32 %v455, %v533
      %v600 = vadd.f32 %v456, %v533
      %v601 = vadd.f32 %v457, %v533
      %v602 = vadd.f32 %v458, %v533
      %v603 = vadd.f32 %v459, %v533
      %v604 = vadd.f32 %v460, %v533
      %v605 = vadd.f32 %v461, %v533
      %v606 = vadd.f32 %v462, %v533
      %v607 = vadd.f32 %v463, %v537
      %v608 = vadd.f32 %v464, %v537
      %v609 = vadd.f32 %v465, %v537
      %v610 = vadd.f32 %v466, %v537
      %v611 = vadd.f32 %v467, %v537
      %v612 = vadd.f32 %v468, %v537
      %v613 = vadd.f32 %v469, %v537
      %v614 = vadd.f32 %v470, %v537
      %v615 = vadd.f32 %v471, %v537
      %v616 = vadd.f32 %v472, %v537
      %v617 = vadd.f32 %v473, %v537
      %v618 = vadd.f32 %v474, %v537
      %v619 = vadd.f32 %v475, %v537
      %v620 = vadd.f32 %v476, %v537
      %v621 = vadd.f32 %v477, %v537
      %v622 = vadd.f32 %v478, %v537
      %v623 = vadd.f32 %v479, %v537
      %v624 = vadd.f32 %v480, %v537
      %v625 = vadd.f32 %v481, %v537
      %v626 = vadd.f32 %v482, %v537
      %v627 = vadd.f32 %v483, %v537
      %v628 = vadd.f32 %v484, %v537
      %v629 = vadd.f32 %v485, %v537
      %v630 = vadd.f32 %v486, %v537
      %v631 = vadd.f32 %v487, %v537
      %v632 = vadd.f32 %v488, %v537
      %v633 = vadd.f32 %v489, %v537
      %v634 = vadd.f32 %v490, %v537
      %v635 = vadd.f32 %v491, %v537
      %v636 = vadd.f32 %v492, %v537
      %v637 = vadd.f32 %v493, %v537
      %v638 = vadd.f32 %v494, %v537
      %v639 = vadd.f32 %v495, %v541
      %v640 = vadd.f32 %v496, %v541
      %v641 = vadd.f32 %v497, %v541
      %v642 = vadd.f32 %v498, %v541
      %v643 = vadd.f32 %v499, %v541
      %v644 = vadd.f32 %v500, %v541
      %v645 = vadd.f32 %v501, %v541
      %v646 = vadd.f32 %v502, %v541
      %v647 = vadd.f32 %v503, %v541
      %v648 = vadd.f32 %v504, %v541
      %v649 = vadd.f32 %v505, %v541
      %v650 = vadd.f32 %v506, %v541
      %v651 = vadd.f32 %v507, %v541
      %v652 = vadd.f32 %v508, %v541
      %v653 = vadd.f32 %v509, %v541
      %v654 = vadd.f32 %v510, %v541
      %v655 = vadd.f32 %v511, %v541
      %v656 = vadd.f32 %v512, %v541
      %v657 = vadd.f32 %v513, %v541
      %v658 = vadd.f32 %v514, %v541
      %v659 = vadd.f32 %v515, %v541
      %v660 = vadd.f32 %v516, %v541
      %v661 = vadd.f32 %v517, %v541
      %v662 = vadd.f32 %v518, %v541
      %v663 = vadd.f32 %v519, %v541
      %v664 = vadd.f32 %v520, %v541
      %v665 = vadd.f32 %v521, %v541
      %v666 = vadd.f32 %v522, %v541
      %v667 = vadd.f32 %v523, %v541
      %v668 = vadd.f32 %v524, %v541
      %v669 = vadd.f32 %v525, %v541
      %v670 = vadd.f32 %v526, %v541
      %v671 = vmax.f32 %v543, 0.0
      %v672 = vmax.f32 %v544, 0.0
      %v673 = vmax.f32 %v545, 0.0
      %v674 = vmax.f32 %v546, 0.0
      %v675 = vmax.f32 %v547, 0.0
      %v676 = vmax.f32 %v548, 0.0
      %v677 = vmax.f32 %v549, 0.0
      %v678 = vmax.f32 %v550, 0.0
      %v679 = vmax.f32 %v551, 0.0
      %v680 = vmax.f32 %v552, 0.0
      %v681 = vmax.f32 %v553, 0.0
      %v682 = vmax.f32 %v554, 0.0
      %v683 = vmax.f32 %v555, 0.0
      %v684 = vmax.f32 %v556, 0.0
      %v685 = vmax.f32 %v557, 0.0
      %v686 = vmax.f32 %v558, 0.0
      %v687 = vmax.f32 %v559, 0.0
      %v688 = vmax.f32 %v560, 0.0
      %v689 = vmax.f32 %v561, 0.0
      %v690 = vmax.f32 %v562, 0.0
      %v691 = vmax.f32 %v563, 0.0
      %v692 = vmax.f32 %v564, 0.0
      %v693 = vmax.f32 %v565, 0.0
      %v694 = vmax.f32 %v566, 0.0
      %v695 = vmax.f32 %v567, 0.0
      %v696 = vmax.f32 %v568, 0.0
      %v697 = vmax.f32 %v569, 0.0
      %v698 = vmax.f32 %v570, 0.0
      %v699 = vmax.f32 %v571, 0.0
      %v700 = vmax.f32 %v572, 0.0
      %v701 = vmax.f32 %v573, 0.0
      %v702 = vmax.f32 %v574, 0.0
      %v703 = vmax.f32 %v575, 0.0
      %v704 = vmax.f32 %v576, 0.0
      %v705 = vmax.f32 %v577, 0.0
      %v706 = vmax.f32 %v578, 0.0
      %v707 = vmax.f32 %v579, 0.0
      %v708 = vmax.f32 %v580, 0.0
      %v709 = vmax.f32 %v581, 0.0
      %v710 = vmax.f32 %v582, 0.0
      %v711 = vmax.f32 %v583, 0.0
      %v712 = vmax.f32 %v584, 0.0
      %v713 = vmax.f32 %v585, 0.0
      %v714 = vmax.f32 %v586, 0.0
      %v715 = vmax.f32 %v587, 0.0
      %v716 = vmax.f32 %v588, 0.0
      %v717 = vmax.f32 %v589, 0.0
      %v718 = vmax.f32 %v590, 0.0
      %v719 = vmax.f32 %v591, 0.0
      %v720 = vmax.f32 %v592, 0.0
      %v721 = vmax.f32 %v593, 0.0
      %v722 = vmax.f32 %v594, 0.0
      %v723 = vmax.f32 %v595, 0.0
      %v724 = vmax.f32 %v596, 0.0
      %v725 = vmax.f32 %v597, 0.0
      %v726 = vmax.f32 %v598, 0.0
      %v727 = vmax.f32 %v599, 0.0
      %v728 = vmax.f32 %v600, 0.0
      %v729 = vmax.f32 %v601, 0.0
      %v730 = vmax.f32 %v602, 0.0
      %v731 = vmax.f32 %v603, 0.0
      %v732 = vmax.f32 %v604, 0.0
      %v733 = vmax.f32 %v605, 0.0
      %v734 = vmax.f32 %v606, 0.0
      %v735 = vmax.f32 %v607, 0.0
      %v736 = vmax.f32 %v608, 0.0
      %v737 = vmax.f32 %v609, 0.0
      %v738 = vmax.f32 %v610, 0.0
      %v739 = vmax.f32 %v611, 0.0
      %v740 = vmax.f32 %v612, 0.0
      %v741 = vmax.f32 %v613, 0.0
      %v742 = vmax.f32 %v614, 0.0
      %v743 = vmax.f32 %v615, 0.0
      %v744 = vmax.f32 %v616, 0.0
      %v745 = vmax.f32 %v617, 0.0
      %v746 = vmax.f32 %v618, 0.0
      %v747 = vmax.f32 %v619, 0.0
      %v748 = vmax.f32 %v620, 0.0
      %v749 = vmax.f32 %v621, 0.0
      %v750 = vmax.f32 %v622, 0.0
      %v751 = vmax.f32 %v623, 0.0
      %v752 = vmax.f32 %v624, 0.0
      %v753 = vmax.f32 %v625, 0.0
      %v754 = vmax.f32 %v626, 0.0
      %v755 = vmax.f32 %v627, 0.0
      %v756 = vmax.f32 %v628, 0.0
      %v757 = vmax.f32 %v629, 0.0
      %v758 = vmax.f32 %v630, 0.0
      %v759 = vmax.f32 %v631, 0.0
      %v760 = vmax.f32 %v632, 0.0
      %v761 = vmax.f32 %v633, 0.0
      %v762 = vmax.f32 %v634, 0.0
      %v763 = vmax.f32 %v635, 0.0
      %v764 = vmax.f32 %v636, 0.0
      %v765 = vmax.f32 %v637, 0.0
      %v766 = vmax.f32 %v638, 0.0
      %v767 = vmax.f32 %v639, 0.0
      %v768 = vmax.f32 %v640, 0.0
      %v769 = vmax.f32 %v641, 0.0
      %v770 = vmax.f32 %v642, 0.0
      %v771 = vmax.f32 %v643, 0.0
      %v772 = vmax.f32 %v644, 0.0
      %v773 = vmax.f32 %v645, 0.0
      %v774 = vmax.f32 %v646, 0.0
      %v775 = vmax.f32 %v647, 0.0
      %v776 = vmax.f32 %v648, 0.0
      %v777 = vmax.f32 %v649, 0.0
      %v778 = vmax.f32 %v650, 0.0
      %v779 = vmax.f32 %v651, 0.0
      %v780 = vmax.f32 %v652, 0.0
      %v781 = vmax.f32 %v653, 0.0
      %v782 = vmax.f32 %v654, 0.0
      %v783 = vmax.f32 %v655, 0.0
      %v784 = vmax.f32 %v656, 0.0
      %v785 = vmax.f32 %v657, 0.0
      %v786 = vmax.f32 %v658, 0.0
      %v787 = vmax.f32 %v659, 0.0
      %v788 = vmax.f32 %v660, 0.0
      %v789 = vmax.f32 %v661, 0.0
      %v790 = vmax.f32 %v662, 0.0
      %v791 = vmax.f32 %v663, 0.0
      %v792 = vmax.f32 %v664, 0.0
      %v793 = vmax.f32 %v665, 0.0
      %v794 = vmax.f32 %v666, 0.0
      %v795 = vmax.f32 %v667, 0.0
      %v796 = vmax.f32 %v668, 0.0
      %v797 = vmax.f32 %v669, 0.0
      %v798 = vmax.f32 %v670, 0.0
      %v799 = vpack.c.bf16 %v703, %v671
      %v800 = vpack.c.bf16 %v704, %v672
      %v801 = vpack.c.bf16 %v705, %v673
      %v802 = vpack.c.bf16 %v706, %v674
      %v803 = vpack.c.bf16 %v707, %v675
      %v804 = vpack.c.bf16 %v708, %v676
      %v805 = vpack.c.bf16 %v709, %v677
      %v806 = vpack.c.bf16 %v710, %v678
      %v807 = vpack.c.bf16 %v711, %v679
      %v808 = vpack.c.bf16 %v712, %v680
      %v809 = vpack.c.bf16 %v713, %v681
      %v810 = vpack.c.bf16 %v714, %v682
      %v811 = vpack.c.bf16 %v715, %v683
      %v812 = vpack.c.bf16 %v716, %v684
      %v813 = vpack.c.bf16 %v717, %v685
      %v814 = vpack.c.bf16 %v718, %v686
      %v815 = vpack.c.bf16 %v719, %v687
      %v816 = vpack.c.bf16 %v720, %v688
      %v817 = vpack.c.bf16 %v721, %v689
      %v818 = vpack.c.bf16 %v722, %v690
      %v819 = vpack.c.bf16 %v723, %v691
      %v820 = vpack.c.bf16 %v724, %v692
      %v821 = vpack.c.bf16 %v725, %v693
      %v822 = vpack.c.bf16 %v726, %v694
      %v823 = vpack.c.bf16 %v727, %v695
      %v824 = vpack.c.bf16 %v728, %v696
      %v825 = vpack.c.bf16 %v729, %v697
      %v826 = vpack.c.bf16 %v730, %v698
      %v827 = vpack.c.bf16 %v731, %v699
      %v828 = vpack.c.bf16 %v732, %v700
      %v829 = vpack.c.bf16 %v733, %v701
      %v830 = vpack.c.bf16 %v734, %v702
      %v831 = vpack.c.bf16 %v767, %v735
      %v832 = vpack.c.bf16 %v768, %v736
      %v833 = vpack.c.bf16 %v769, %v737
      %v834 = vpack.c.bf16 %v770, %v738
      %v835 = vpack.c.bf16 %v771, %v739
      %v836 = vpack.c.bf16 %v772, %v740
      %v837 = vpack.c.bf16 %v773, %v741
      %v838 = vpack.c.bf16 %v774, %v742
      %v839 = vpack.c.bf16 %v775, %v743
      %v840 = vpack.c.bf16 %v776, %v744
      %v841 = vpack.c.bf16 %v777, %v745
      %v842 = vpack.c.bf16 %v778, %v746
      %v843 = vpack.c.bf16 %v779, %v747
      %v844 = vpack.c.bf16 %v780, %v748
      %v845 = vpack.c.bf16 %v781, %v749
      %v846 = vpack.c.bf16 %v782, %v750
      %v847 = vpack.c.bf16 %v783, %v751
      %v848 = vpack.c.bf16 %v784, %v752
      %v849 = vpack.c.bf16 %v785, %v753
      %v850 = vpack.c.bf16 %v786, %v754
      %v851 = vpack.c.bf16 %v787, %v755
      %v852 = vpack.c.bf16 %v788, %v756
      %v853 = vpack.c.bf16 %v789, %v757
      %v854 = vpack.c.bf16 %v790, %v758
      %v855 = vpack.c.bf16 %v791, %v759
      %v856 = vpack.c.bf16 %v792, %v760
      %v857 = vpack.c.bf16 %v793, %v761
      %v858 = vpack.c.bf16 %v794, %v762
      %v859 = vpack.c.bf16 %v795, %v763
      %v860 = vpack.c.bf16 %v796, %v764
      %v861 = vpack.c.bf16 %v797, %v765
      %v862 = vpack.c.bf16 %v798, %v766
      %v927 = vunpack.c.l.b16 %v799
      %v928 = vunpack.c.l.b16 %v800
      %v929 = vunpack.c.l.b16 %v801
      %v930 = vunpack.c.l.b16 %v802
      %v931 = vunpack.c.l.b16 %v803
      %v932 = vunpack.c.l.b16 %v804
      %v933 = vunpack.c.l.b16 %v805
      %v934 = vunpack.c.l.b16 %v806
      %v935 = vunpack.c.l.b16 %v807
      %v936 = vunpack.c.l.b16 %v808
      %v937 = vunpack.c.l.b16 %v809
      %v938 = vunpack.c.l.b16 %v810
      %v939 = vunpack.c.l.b16 %v811
      %v940 = vunpack.c.l.b16 %v812
      %v941 = vunpack.c.l.b16 %v813
      %v942 = vunpack.c.l.b16 %v814
      %v943 = vunpack.c.l.b16 %v815
      %v944 = vunpack.c.l.b16 %v816
      %v945 = vunpack.c.l.b16 %v817
      %v946 = vunpack.c.l.b16 %v818
      %v947 = vunpack.c.l.b16 %v819
      %v948 = vunpack.c.l.b16 %v820
      %v949 = vunpack.c.l.b16 %v821
      %v950 = vunpack.c.l.b16 %v822
      %v951 = vunpack.c.l.b16 %v823
      %v952 = vunpack.c.l.b16 %v824
      %v953 = vunpack.c.l.b16 %v825
      %v954 = vunpack.c.l.b16 %v826
      %v955 = vunpack.c.l.b16 %v827
      %v956 = vunpack.c.l.b16 %v828
      %v957 = vunpack.c.l.b16 %v829
      %v958 = vunpack.c.l.b16 %v830
      %v959 = vunpack.c.h.b16 %v799
      %v960 = vunpack.c.h.b16 %v800
      %v961 = vunpack.c.h.b16 %v801
      %v962 = vunpack.c.h.b16 %v802
      %v963 = vunpack.c.h.b16 %v803
      %v964 = vunpack.c.h.b16 %v804
      %v965 = vunpack.c.h.b16 %v805
      %v966 = vunpack.c.h.b16 %v806
      %v967 = vunpack.c.h.b16 %v807
      %v968 = vunpack.c.h.b16 %v808
      %v969 = vunpack.c.h.b16 %v809
      %v970 = vunpack.c.h.b16 %v810
      %v971 = vunpack.c.h.b16 %v811
      %v972 = vunpack.c.h.b16 %v812
      %v973 = vunpack.c.h.b16 %v813
      %v974 = vunpack.c.h.b16 %v814
      %v975 = vunpack.c.h.b16 %v815
      %v976 = vunpack.c.h.b16 %v816
      %v977 = vunpack.c.h.b16 %v817
      %v978 = vunpack.c.h.b16 %v818
      %v979 = vunpack.c.h.b16 %v819
      %v980 = vunpack.c.h.b16 %v820
      %v981 = vunpack.c.h.b16 %v821
      %v982 = vunpack.c.h.b16 %v822
      %v983 = vunpack.c.h.b16 %v823
      %v984 = vunpack.c.h.b16 %v824
      %v985 = vunpack.c.h.b16 %v825
      %v986 = vunpack.c.h.b16 %v826
      %v987 = vunpack.c.h.b16 %v827
      %v988 = vunpack.c.h.b16 %v828
      %v989 = vunpack.c.h.b16 %v829
      %v990 = vunpack.c.h.b16 %v830
      %v991 = vunpack.c.l.b16 %v831
      %v992 = vunpack.c.l.b16 %v832
      %v993 = vunpack.c.l.b16 %v833
      %v994 = vunpack.c.l.b16 %v834
      %v995 = vunpack.c.l.b16 %v835
      %v996 = vunpack.c.l.b16 %v836
      %v997 = vunpack.c.l.b16 %v837
      %v998 = vunpack.c.l.b16 %v838
      %v999 = vunpack.c.l.b16 %v839
      %v1000 = vunpack.c.l.b16 %v840
      %v1001 = vunpack.c.l.b16 %v841
      %v1002 = vunpack.c.l.b16 %v842
      %v1003 = vunpack.c.l.b16 %v843
      %v1004 = vunpack.c.l.b16 %v844
      %v1005 = vunpack.c.l.b16 %v845
      %v1006 = vunpack.c.l.b16 %v846
      %v1007 = vunpack.c.l.b16 %v847
      %v1008 = vunpack.c.l.b16 %v848
      %v1009 = vunpack.c.l.b16 %v849
      %v1010 = vunpack.c.l.b16 %v850
      %v1011 = vunpack.c.l.b16 %v851
      %v1012 = vunpack.c.l.b16 %v852
      %v1013 = vunpack.c.l.b16 %v853
      %v1014 = vunpack.c.l.b16 %v854
      %v1015 = vunpack.c.l.b16 %v855
      %v1016 = vunpack.c.l.b16 %v856
      %v1017 = vunpack.c.l.b16 %v857
      %v1018 = vunpack.c.l.b16 %v858
      %v1019 = vunpack.c.l.b16 %v859
      %v1020 = vunpack.c.l.b16 %v860
      %v1021 = vunpack.c.l.b16 %v861
      %v1022 = vunpack.c.l.b16 %v862
      %v1023 = vunpack.c.h.b16 %v831
      %v1024 = vunpack.c.h.b16 %v832
      %v1025 = vunpack.c.h.b16 %v833
      %v1026 = vunpack.c.h.b16 %v834
      %v1027 = vunpack.c.h.b16 %v835
      %v1028 = vunpack.c.h.b16 %v836
      %v1029 = vunpack.c.h.b16 %v837
      %v1030 = vunpack.c.h.b16 %v838
      %v1031 = vunpack.c.h.b16 %v839
      %v1032 = vunpack.c.h.b16 %v840
      %v1033 = vunpack.c.h.b16 %v841
      %v1034 = vunpack.c.h.b16 %v842
      %v1035 = vunpack.c.h.b16 %v843
      %v1036 = vunpack.c.h.b16 %v844
      %v1037 = vunpack.c.h.b16 %v845
      %v1038 = vunpack.c.h.b16 %v846
      %v1039 = vunpack.c.h.b16 %v847
      %v1040 = vunpack.c.h.b16 %v848
      %v1041 = vunpack.c.h.b16 %v849
      %v1042 = vunpack.c.h.b16 %v850
      %v1043 = vunpack.c.h.b16 %v851
      %v1044 = vunpack.c.h.b16 %v852
      %v1045 = vunpack.c.h.b16 %v853
      %v1046 = vunpack.c.h.b16 %v854
      %v1047 = vunpack.c.h.b16 %v855
      %v1048 = vunpack.c.h.b16 %v856
      %v1049 = vunpack.c.h.b16 %v857
      %v1050 = vunpack.c.h.b16 %v858
      %v1051 = vunpack.c.h.b16 %v859
      %v1052 = vunpack.c.h.b16 %v860
      %v1053 = vunpack.c.h.b16 %v861
      %v1054 = vunpack.c.h.b16 %v862
      %v1055 = vpack.c.b16 %v928, %v927
      %v1056 = vpack.c.b16 %v930, %v929
      %v1057 = vpack.c.b16 %v932, %v931
      %v1058 = vpack.c.b16 %v934, %v933
      %v1059 = vpack.c.b16 %v936, %v935
      %v1060 = vpack.c.b16 %v938, %v937
      %v1061 = vpack.c.b16 %v940, %v939
      %v1062 = vpack.c.b16 %v942, %v941
      %v1063 = vpack.c.b16 %v944, %v943
      %v1064 = vpack.c.b16 %v946, %v945
      %v1065 = vpack.c.b16 %v948, %v947
      %v1066 = vpack.c.b16 %v950, %v949
      %v1067 = vpack.c.b16 %v952, %v951
      %v1068 = vpack.c.b16 %v954, %v953
      %v1069 = vpack.c.b16 %v956, %v955
      %v1070 = vpack.c.b16 %v958, %v957
      %v1071 = vpack.c.b16 %v960, %v959
      %v1072 = vpack.c.b16 %v962, %v961
      %v1073 = vpack.c.b16 %v964, %v963
      %v1074 = vpack.c.b16 %v966, %v965
      %v1075 = vpack.c.b16 %v968, %v967
      %v1076 = vpack.c.b16 %v970, %v969
      %v1077 = vpack.c.b16 %v972, %v971
      %v1078 = vpack.c.b16 %v974, %v973
      %v1079 = vpack.c.b16 %v976, %v975
      %v1080 = vpack.c.b16 %v978, %v977
      %v1081 = vpack.c.b16 %v980, %v979
      %v1082 = vpack.c.b16 %v982, %v981
      %v1083 = vpack.c.b16 %v984, %v983
      %v1084 = vpack.c.b16 %v986, %v985
      %v1085 = vpack.c.b16 %v988, %v987
      %v1086 = vpack.c.b16 %v990, %v989
      %v1087 = vpack.c.b16 %v992, %v991
      %v1088 = vpack.c.b16 %v994, %v993
      %v1089 = vpack.c.b16 %v996, %v995
      %v1090 = vpack.c.b16 %v998, %v997
      %v1091 = vpack.c.b16 %v1000, %v999
      %v1092 = vpack.c.b16 %v1002, %v1001
      %v1093 = vpack.c.b16 %v1004, %v1003
      %v1094 = vpack.c.b16 %v1006, %v1005
      %v1095 = vpack.c.b16 %v1008, %v1007
      %v1096 = vpack.c.b16 %v1010, %v1009
      %v1097 = vpack.c.b16 %v1012, %v1011
      %v1098 = vpack.c.b16 %v1014, %v1013
      %v1099 = vpack.c.b16 %v1016, %v1015
      %v1100 = vpack.c.b16 %v1018, %v1017
      %v1101 = vpack.c.b16 %v1020, %v1019
      %v1102 = vpack.c.b16 %v1022, %v1021
      %v1103 = vpack.c.b16 %v1024, %v1023
      %v1104 = vpack.c.b16 %v1026, %v1025
      %v1105 = vpack.c.b16 %v1028, %v1027
      %v1106 = vpack.c.b16 %v1030, %v1029
      %v1107 = vpack.c.b16 %v1032, %v1031
      %v1108 = vpack.c.b16 %v1034, %v1033
      %v1109 = vpack.c.b16 %v1036, %v1035
      %v1110 = vpack.c.b16 %v1038, %v1037
      %v1111 = vpack.c.b16 %v1040, %v1039
      %v1112 = vpack.c.b16 %v1042, %v1041
      %v1113 = vpack.c.b16 %v1044, %v1043
      %v1114 = vpack.c.b16 %v1046, %v1045
      %v1115 = vpack.c.b16 %v1048, %v1047
      %v1116 = vpack.c.b16 %v1050, %v1049
      %v1117 = vpack.c.b16 %v1052, %v1051
      %v1118 = vpack.c.b16 %v1054, %v1053
      %1183 = vst [vmem:[%s181] sm:$0xff] %v1055
      %1184 = vst [vmem:[%s181 + $0x8] sm:$0xff] %v1056
      %1185 = vst [vmem:[%s181 + $0x10] sm:$0xff] %v1057
      %1186 = vst [vmem:[%s181 + $0x18] sm:$0xff] %v1058
      %1187 = vst [vmem:[%s181 + $0x20] sm:$0xff] %v1059
      %1188 = vst [vmem:[%s181 + $0x28] sm:$0xff] %v1060
      %1189 = vst [vmem:[%s181 + $0x30] sm:$0xff] %v1061
      %1190 = vst [vmem:[%s181 + $0x38] sm:$0xff] %v1062
      %1191 = vst [vmem:[%s181 + $0x40] sm:$0xff] %v1063
      %1192 = vst [vmem:[%s181 + $0x48] sm:$0xff] %v1064
      %1193 = vst [vmem:[%s181 + $0x50] sm:$0xff] %v1065
      %1194 = vst [vmem:[%s181 + $0x58] sm:$0xff] %v1066
      %1195 = vst [vmem:[%s181 + $0x60] sm:$0xff] %v1067
      %1196 = vst [vmem:[%s181 + $0x68] sm:$0xff] %v1068
      %1197 = vst [vmem:[%s181 + $0x70] sm:$0xff] %v1069
      %1198 = vst [vmem:[%s181 + $0x78] sm:$0xff] %v1070
      %1199 = vst [vmem:[%s181 + $0x80] sm:$0xff] %v1071
      %1200 = vst [vmem:[%s181 + $0x88] sm:$0xff] %v1072
      %1201 = vst [vmem:[%s181 + $0x90] sm:$0xff] %v1073
      %1202 = vst [vmem:[%s181 + $0x98] sm:$0xff] %v1074
      %1203 = vst [vmem:[%s181 + $0xa0] sm:$0xff] %v1075
      %1204 = vst [vmem:[%s181 + $0xa8] sm:$0xff] %v1076
      %1205 = vst [vmem:[%s181 + $0xb0] sm:$0xff] %v1077
      %1206 = vst [vmem:[%s181 + $0xb8] sm:$0xff] %v1078
      %1207 = vst [vmem:[%s181 + $0xc0] sm:$0xff] %v1079
      %1208 = vst [vmem:[%s181 + $0xc8] sm:$0xff] %v1080
      %1209 = vst [vmem:[%s181 + $0xd0] sm:$0xff] %v1081
      %1210 = vst [vmem:[%s181 + $0xd8] sm:$0xff] %v1082
      %1211 = vst [vmem:[%s181 + $0xe0] sm:$0xff] %v1083
      %1212 = vst [vmem:[%s181 + $0xe8] sm:$0xff] %v1084
      %1213 = vst [vmem:[%s181 + $0xf0] sm:$0xff] %v1085
      %1214 = vst [vmem:[%s181 + $0xf8] sm:$0xff] %v1086
      %1215 = vst [vmem:[%s181 + $0x100] sm:$0xff] %v1087
      %1216 = vst [vmem:[%s181 + $0x108] sm:$0xff] %v1088
      %1217 = vst [vmem:[%s181 + $0x110] sm:$0xff] %v1089
      %1218 = vst [vmem:[%s181 + $0x118] sm:$0xff] %v1090
      %1219 = vst [vmem:[%s181 + $0x120] sm:$0xff] %v1091
      %1220 = vst [vmem:[%s181 + $0x128] sm:$0xff] %v1092
      %1221 = vst [vmem:[%s181 + $0x130] sm:$0xff] %v1093
      %1222 = vst [vmem:[%s181 + $0x138] sm:$0xff] %v1094
      %1223 = vst [vmem:[%s181 + $0x140] sm:$0xff] %v1095
      %1224 = vst [vmem:[%s181 + $0x148] sm:$0xff] %v1096
      %1225 = vst [vmem:[%s181 + $0x150] sm:$0xff] %v1097
      %1226 = vst [vmem:[%s181 + $0x158] sm:$0xff] %v1098
      %1227 = vst [vmem:[%s181 + $0x160] sm:$0xff] %v1099
      %1228 = vst [vmem:[%s181 + $0x168] sm:$0xff] %v1100
      %1229 = vst [vmem:[%s181 + $0x170] sm:$0xff] %v1101
      %1230 = vst [vmem:[%s181 + $0x178] sm:$0xff] %v1102
      %1231 = vst [vmem:[%s181 + $0x180] sm:$0xff] %v1103
      %1232 = vst [vmem:[%s181 + $0x188] sm:$0xff] %v1104
      %1233 = vst [vmem:[%s181 + $0x190] sm:$0xff] %v1105
      %1234 = vst [vmem:[%s181 + $0x198] sm:$0xff] %v1106
      %1235 = vst [vmem:[%s181 + $0x1a0] sm:$0xff] %v1107
      %1236 = vst [vmem:[%s181 + $0x1a8] sm:$0xff] %v1108
      %1237 = vst [vmem:[%s181 + $0x1b0] sm:$0xff] %v1109
      %1238 = vst [vmem:[%s181 + $0x1b8] sm:$0xff] %v1110
      %1239 = vst [vmem:[%s181 + $0x1c0] sm:$0xff] %v1111
      %1240 = vst [vmem:[%s181 + $0x1c8] sm:$0xff] %v1112
      %1241 = vst [vmem:[%s181 + $0x1d0] sm:$0xff] %v1113
      %1242 = vst [vmem:[%s181 + $0x1d8] sm:$0xff] %v1114
      %1243 = vst [vmem:[%s181 + $0x1e0] sm:$0xff] %v1115
      %1244 = vst [vmem:[%s181 + $0x1e8] sm:$0xff] %v1116
      %1245 = vst [vmem:[%s181 + $0x1f0] sm:$0xff] %v1117
      %1246 = vst [vmem:[%s181 + $0x1f8] sm:$0xff] %v1118
      %s1247 = smul.u32 32, %s18
      %p1248 = scmp.lt.s32.totalorder %s17, 1
      %s1249 = scalar_select %p1248, %s17, 1
      %p1250 = scmp.lt.s32.totalorder %s1247, 31
      %s1251 = scalar_select %p1250, %s1247, 31
      %s1252 = smul.addr %s1249, 128
      %s1253 = sadd.s32 %s1251, %s1252
      %s1254 = smul.addr %s1253, 4
      %s1255 = scalar_lea.vmem %s2, %s1254
      // Predicated region
      $region29: #{conv3d_block.3} parent=27 // pred_check
        %p1256 = pneg %p94
      $region30: #{conv3d_block.3} parent=27 // pred_check_branch
        %1258 = sbr.rel (%p1256) target = $region32
      $region31: #{conv3d_block.3} parent=27 // pred_region
        %s1259 = smul.u32 32, %s18
      $region32: #{conv3d_block.3} parent=27 // pred_fallthru
        _
    $region28: #{conv3d_block.3} parent=5 // pred_fallthru
      _
    %p1260 = scmp.le.s32.totalorder 2, %s8
    // Predicated region
    $region33: #{conv3d_block.3} parent=5 // pred_check
      %p1261 = pneg %p1260
    $region34: #{conv3d_block.3} parent=5 // pred_check_branch
      %1263 = sbr.rel (%p1261) target = $region36
    $region35: #{conv3d_block.3} parent=5 // pred_region
      %s1264 = ssub.s32 %s8, 2
      // Predicated region
      $region37: #{conv3d_block.3} parent=35 // pred_check
        %p1265 = pneg %p100
      $region38: #{conv3d_block.3} parent=35 // pred_check_branch
        %1267 = sbr.rel (%p1265) target = $region40
      $region39: #{conv3d_block.3} parent=35 // pred_region
        %s1268 = smul.u32 32, %s20
        %p1269 = scmp.lt.s32.totalorder %s19, 1
        %s1270 = scalar_select %p1269, %s19, 1
        %p1271 = scmp.lt.s32.totalorder %s1268, 31
        %s1272 = scalar_select %p1271, %s1268, 31
        %s1273 = smul.addr %s1270, 128
        %s1274 = sadd.s32 %s1272, %s1273
        %s1275 = smul.addr %s1274, 4
        %s1276 = scalar_lea.vmem %s2, %s1275
      $region40: #{conv3d_block.3} parent=35 // pred_fallthru
        _
    $region36: #{conv3d_block.3} parent=5 // pred_fallthru
      _
  $region6: #{conv3d_block.3} parent=0 // loop_footer
    %s12 = sadd.s32 1, %s8
  $region7: #{conv3d_block.3} parent=0 // loop_footer_branch
    %7 = sbr.rel target = $region3
  $region8: #{conv3d_block.3} parent=0 // loop_exit
    _

</llo_original>
